<compile_context>
chip_gen: v7x
topology: tpu7x:2x2x1
jax: 0.10.0
libtpu: 0.0.40
codegen_flags: <defaults>
</compile_context>

<pallas_src>
import functools

import jax
import jax.numpy as jnp
from jax import lax
from jax.experimental import pallas as pl
from jax.experimental.pallas import tpu as pltpu

_LANE = 128


def _round_up(x, m):
    return (x + m - 1) // m * m


def _largest_divisor_le(n, cap):
    cap = max(1, min(cap, n))
    for d in range(cap, 0, -1):
        if n % d == 0:
            return d
    return 1


def _pad_gate_cols(w, h, hp):
    """Re-lay the trailing 4*h gate axis into 4*hp lanes (zero padded per gate)."""
    if hp == h:
        return w
    pads = [(0, 0)] * (w.ndim - 1) + [(0, hp - h)]
    parts = [jnp.pad(w[..., g * h:(g + 1) * h], pads) for g in range(4)]
    return jnp.concatenate(parts, axis=-1)


def lstm_fc_kernel(xw_ref, whh_ref, h0_ref, c0_ref, wfc_ref, bfc_ref,
                   out_ref, hn_ref, cn_ref, *, hidden_dim, t_chunk):
    """One grid step = T_CHUNK LSTM timesteps for one batch block.

    grid = (num_batch_blocks, num_time_chunks); time is the serial carry axis.
    h/c live in hn_ref/cn_ref (constant block index along time => resident).
    """
    t = pl.program_id(1)

    @pl.when(t == 0)
    def _():
        hn_ref[...] = h0_ref[...]
        cn_ref[...] = c0_ref[...]

    H = hidden_dim
    whh = whh_ref[...]                       # (H, 4H) bf16, hoisted out of loop

    def step(tt, carry):
        h, c = carry
        # Input projection (x @ W_ih^T + b) was hoisted out of the recurrence;
        # only the (B_BLK, H) x (H, 4H) recurrent matmul stays per timestep.
        gates = xw_ref[tt] + jnp.dot(h.astype(whh.dtype), whh,
                                     preferred_element_type=jnp.float32)
        # Lane-aligned gate slices (H padded to a multiple of 128).
        i_g = jax.nn.sigmoid(gates[:, 0 * H:1 * H])
        f_g = jax.nn.sigmoid(gates[:, 1 * H:2 * H])
        g_g = jnp.tanh(gates[:, 2 * H:3 * H])
        o_g = jax.nn.sigmoid(gates[:, 3 * H:4 * H])
        c = f_g * c + i_g * g_g              # elementwise gate math kept in f32
        h = o_g * jnp.tanh(c)
        return h, c

    h, c = lax.fori_loop(0, t_chunk, step, (hn_ref[...], cn_ref[...]),
                         unroll=True)
    hn_ref[...] = h
    cn_ref[...] = c

    @pl.when(t == pl.num_programs(1) - 1)
    def _():
        # fc on every timestep then [:, -1]  ==  fc(last hidden state).
        out_ref[...] = (jnp.dot(h, wfc_ref[...],
                                preferred_element_type=jnp.float32)
                        + bfc_ref[...])


def rnn_forward(tokens, hidden, params, *, t_chunk=16, b_block=8):
    """Mirror of RNN.forward: returns (logits_last, (h_n, c_n))."""
    emb, w_ih, w_hh, b_ih, b_hh, w_fc, b_fc = (
        params["emb"], params["w_ih"], params["w_hh"], params["b_ih"],
        params["b_hh"], params["w_fc"], params["b_fc"])
    h0, c0 = hidden                                   # (1, B, H) each
    B, T = tokens.shape
    H = w_hh.shape[1]
    O = w_fc.shape[0]

    Hp = _round_up(H, _LANE)                          # lane-aligned gate slabs
    Op = _round_up(O, _LANE)                          # unmasked logits store

    # ---- JAX glue (not the hot path): embedding gather + HOISTED input
    # projection: one big (B*T, E) x (E, 4H) matmul with the bias folded in.
    x_emb = jnp.take(emb, tokens, axis=0)             # (B, T, E)
    xw = jnp.einsum("bte,ge->btg", x_emb, w_ih) + (b_ih + b_hh)   # (B, T, 4H)
    xw = _pad_gate_cols(xw, H, Hp)                    # (B, T, 4Hp)
    xw_tm = jnp.transpose(xw, (1, 0, 2))              # (T, B, 4Hp) time-major

    # Recurrent weights: bf16 => 2x MXU throughput, half resident VMEM; the
    # matmul still accumulates in f32 (preferred_element_type).
    whh_t = _pad_gate_cols(jnp.pad(w_hh.T, ((0, Hp - H), (0, 0))), H, Hp)
    whh_t = whh_t.astype(jnp.bfloat16)                # (Hp, 4Hp)
    wfc_t = jnp.pad(w_fc.T, ((0, Hp - H), (0, Op - O)))           # (Hp, Op)
    bfc = jnp.pad(b_fc, (0, Op - O)).reshape(1, Op)   # (1, Op)

    h0_p = jnp.pad(h0[0], ((0, 0), (0, Hp - H)))      # (B, Hp)
    c0_p = jnp.pad(c0[0], ((0, 0), (0, Hp - H)))

    # Grid: batch blocks ("parallel" -> v7x megacore) x time chunks (serial).
    if (b_block is not None and 0 < b_block < B
            and B % b_block == 0 and b_block % 8 == 0):
        b_blk = b_block
    else:
        b_blk = B
    tc = _largest_divisor_le(T, t_chunk)
    grid = (B // b_blk, T // tc)

    # Explicit VMEM budget (double-buffered xW slab + resident weights + state).
    vmem_est = (2 * tc * b_blk * 4 * Hp * 4           # streamed xw (f32, 2 bufs)
                + Hp * 4 * Hp * 2                     # W_hh^T (bf16)
                + Hp * Op * 4 + Op * 4                # W_fc^T + b_fc
                + 8 * b_blk * Hp * 4                  # h0/c0 + hn/cn
                + 2 * b_blk * Op * 4)                 # logits
    vmem_limit = int(min(max(2 * vmem_est, 4 << 20), 32 << 20))

    kernel = functools.partial(lstm_fc_kernel, hidden_dim=Hp, t_chunk=tc)

    out, h_n, c_n = pl.pallas_call(
        kernel,
        out_shape=(
            jax.ShapeDtypeStruct((B, Op), jnp.float32),
            jax.ShapeDtypeStruct((B, Hp), jnp.float32),
            jax.ShapeDtypeStruct((B, Hp), jnp.float32),
        ),
        grid_spec=pltpu.PrefetchScalarGridSpec(
            num_scalar_prefetch=0,
            grid=grid,
            in_specs=[
                pl.BlockSpec((tc, b_blk, 4 * Hp), lambda b, t: (t, b, 0)),  # xW
                pl.BlockSpec((Hp, 4 * Hp), lambda b, t: (0, 0)),   # W_hh^T
                pl.BlockSpec((b_blk, Hp), lambda b, t: (b, 0)),    # h0
                pl.BlockSpec((b_blk, Hp), lambda b, t: (b, 0)),    # c0
                pl.BlockSpec((Hp, Op), lambda b, t: (0, 0)),       # W_fc^T
                pl.BlockSpec((1, Op), lambda b, t: (0, 0)),        # b_fc
            ],
            out_specs=[
                pl.BlockSpec((b_blk, Op), lambda b, t: (b, 0)),    # logits
                pl.BlockSpec((b_blk, Hp), lambda b, t: (b, 0)),    # h_n (carry)
                pl.BlockSpec((b_blk, Hp), lambda b, t: (b, 0)),    # c_n (carry)
            ],
        ),
        # h0 -> h_n, c0 -> c_n share buffers (no extra copy / HBM allocation).
        input_output_aliases={2: 1, 3: 2},
        compiler_params=pltpu.CompilerParams(
            dimension_semantics=("parallel", "arbitrary"),
            vmem_limit_bytes=vmem_limit),
    )(xw_tm, whh_t, h0_p, c0_p, wfc_t, bfc)

    out = out[:, :O]
    h_n = h_n[:, :H]
    c_n = c_n[:, :H]
    return out, (h_n[None], c_n[None])


def rnn_forward_ref(tokens, hidden, params):
    """Pure-JAX f32 reference (matches PyTorch nn.LSTM + Linear + [:, -1])."""
    emb, w_ih, w_hh, b_ih, b_hh, w_fc, b_fc = (
        params["emb"], params["w_ih"], params["w_hh"], params["b_ih"],
        params["b_hh"], params["w_fc"], params["b_fc"])
    h, c = hidden[0][0], hidden[1][0]
    H = h.shape[1]
    x_emb = jnp.take(emb, tokens, axis=0)
    for t in range(tokens.shape[1]):
        gates = x_emb[:, t] @ w_ih.T + h @ w_hh.T + b_ih + b_hh
        i = jax.nn.sigmoid(gates[:, 0 * H:1 * H])
        f = jax.nn.sigmoid(gates[:, 1 * H:2 * H])
        g = jnp.tanh(gates[:, 2 * H:3 * H])
        o = jax.nn.sigmoid(gates[:, 3 * H:4 * H])
        c = f * c + i * g
        h = o * jnp.tanh(c)
    out = h @ w_fc.T + b_fc
    return out, (h[None], c[None])


def init_params(key, vocab_size, output_size, embedding_dim, hidden_dim):
    ks = jax.random.split(key, 7)
    s = 1.0 / jnp.sqrt(hidden_dim)
    return {
        "emb": jax.random.normal(ks[0], (vocab_size, embedding_dim), jnp.float32),
        "w_ih": jax.random.uniform(ks[1], (4 * hidden_dim, embedding_dim),
                                   jnp.float32, -s, s),
        "w_hh": jax.random.uniform(ks[2], (4 * hidden_dim, hidden_dim),
                                   jnp.float32, -s, s),
        "b_ih": jax.random.uniform(ks[3], (4 * hidden_dim,), jnp.float32, -s, s),
        "b_hh": jax.random.uniform(ks[4], (4 * hidden_dim,), jnp.float32, -s, s),
        "w_fc": jax.random.uniform(ks[5], (output_size, hidden_dim),
                                   jnp.float32, -s, s),
        "b_fc": jax.random.uniform(ks[6], (output_size,), jnp.float32, -s, s),
    }


if __name__ == "__main__":
    # Small, tile-friendly shapes consistent with the module (batch is the main
    # free throughput knob on TPU; kept small here per the test requirements).
    batch, seq = 16, 64
    vocab_size = 128
    output_size = vocab_size
    embedding_dim = 30      # matches the module spec; handled in the JAX glue
    hidden_dim = 128        # lane-aligned gates; 4H=512 is a multiple of 256
    n_layers = 1

    key = jax.random.PRNGKey(0)
    kp, kt = jax.random.split(key)
    params = init_params(kp, vocab_size, output_size, embedding_dim, hidden_dim)

    tokens = jax.random.randint(kt, (batch, seq), 0, vocab_size, jnp.int32)
    hidden = (jnp.zeros((n_layers, batch, hidden_dim), jnp.float32),
              jnp.zeros((n_layers, batch, hidden_dim), jnp.float32))

    fwd = jax.jit(rnn_forward)
    out, (h_n, c_n) = fwd(tokens, hidden, params)
    jax.block_until_ready((out, h_n, c_n))

    out_ref, (h_ref, c_ref) = rnn_forward_ref(tokens, hidden, params)
    assert out.shape == (batch, output_size)
    assert h_n.shape == (n_layers, batch, hidden_dim)
    assert c_n.shape == (n_layers, batch, hidden_dim)
    # bf16 recurrent matmul (f32 accumulate) -> slightly relaxed tolerance.
    assert jnp.allclose(out, out_ref, atol=2e-2, rtol=2e-2)
    assert jnp.allclose(h_n, h_ref, atol=2e-2, rtol=2e-2)
    assert jnp.allclose(c_n, c_ref, atol=2e-2, rtol=2e-2)
    print("KERNEL_OK")
</pallas_src>

<mosaic_0001>
module attributes {stable_mosaic.version = 11 : i64} {
  func.func @lstm_fc_kernel(%arg0: i32, %arg1: i32, %arg2: memref<16x8x512xf32, #tpu.memory_space<vmem>>, %arg3: memref<128x512xbf16, #tpu.memory_space<vmem>>, %arg4: memref<8x128xf32, #tpu.memory_space<vmem>>, %arg5: memref<8x128xf32, #tpu.memory_space<vmem>>, %arg6: memref<128x128xf32, #tpu.memory_space<vmem>>, %arg7: memref<1x128xf32, #tpu.memory_space<vmem>>, %arg8: memref<8x128xf32, #tpu.memory_space<vmem>>, %arg9: memref<8x128xf32, #tpu.memory_space<vmem>>, %arg10: memref<8x128xf32, #tpu.memory_space<vmem>>) attributes {dimension_semantics = [#tpu.dimension_semantics<parallel>, #tpu.dimension_semantics<arbitrary>], iteration_bounds = array<i64: 2, 4>, scalar_prefetch = 0 : i64, scratch_operands = 0 : i64, tpu.core_type = #tpu.core_type<tc>, window_params = [{transform_indices = @transform_0, window_bounds = array<i64: 16, 8, 512>}, {pipeline_mode = #tpu.pipeline_mode<synchronous>, transform_indices = @transform_1, window_bounds = array<i64: 128, 512>}, {transform_indices = @transform_2, window_bounds = array<i64: 8, 128>}, {transform_indices = @transform_3, window_bounds = array<i64: 8, 128>}, {pipeline_mode = #tpu.pipeline_mode<synchronous>, transform_indices = @transform_4, window_bounds = array<i64: 128, 128>}, {pipeline_mode = #tpu.pipeline_mode<synchronous>, transform_indices = @transform_5, window_bounds = array<i64: 1, 128>}, {transform_indices = @transform_6, window_bounds = array<i64: 8, 128>}, {transform_indices = @transform_7, window_bounds = array<i64: 8, 128>}, {transform_indices = @transform_8, window_bounds = array<i64: 8, 128>}]} {
    %c0_i32 = arith.constant 0 : i32
    %0 = arith.cmpi eq, %arg1, %c0_i32 : i32
    %1 = arith.extui %0 : i1 to i32
    %c0_i32_0 = arith.constant 0 : i32
    %2 = arith.cmpi ne, %1, %c0_i32_0 : i32
    scf.if %2 {
      %c0_108 = arith.constant 0 : index
      %c0_109 = arith.constant 0 : index
      %507 = vector.load %arg4[%c0_108, %c0_109] : memref<8x128xf32, #tpu.memory_space<vmem>>, vector<8x128xf32>
      %c0_110 = arith.constant 0 : index
      %c0_111 = arith.constant 0 : index
      %508 = vector.load %arg9[%c0_110, %c0_111] : memref<8x128xf32, #tpu.memory_space<vmem>>, vector<8x128xf32>
      tpu.vector_store %arg9[%c0_110, %c0_111], %507 {strides = array<i32>} : memref<8x128xf32, #tpu.memory_space<vmem>>, vector<8x128xf32>,
      %c0_112 = arith.constant 0 : index
      %c0_113 = arith.constant 0 : index
      %509 = vector.load %arg5[%c0_112, %c0_113] : memref<8x128xf32, #tpu.memory_space<vmem>>, vector<8x128xf32>
      %c0_114 = arith.constant 0 : index
      %c0_115 = arith.constant 0 : index
      %510 = vector.load %arg10[%c0_114, %c0_115] : memref<8x128xf32, #tpu.memory_space<vmem>>, vector<8x128xf32>
      tpu.vector_store %arg10[%c0_114, %c0_115], %509 {strides = array<i32>} : memref<8x128xf32, #tpu.memory_space<vmem>>, vector<8x128xf32>,
    } else {
    }
    %c0 = arith.constant 0 : index
    %c0_1 = arith.constant 0 : index
    %3 = vector.load %arg3[%c0, %c0_1] : memref<128x512xbf16, #tpu.memory_space<vmem>>, vector<128x512xbf16>
    %c0_2 = arith.constant 0 : index
    %c0_3 = arith.constant 0 : index
    %4 = vector.load %arg9[%c0_2, %c0_3] : memref<8x128xf32, #tpu.memory_space<vmem>>, vector<8x128xf32>
    %c0_4 = arith.constant 0 : index
    %c0_5 = arith.constant 0 : index
    %5 = vector.load %arg10[%c0_4, %c0_5] : memref<8x128xf32, #tpu.memory_space<vmem>>, vector<8x128xf32>
    %c0_i32_6 = arith.constant 0 : i32
    %6 = arith.index_cast %c0_i32_6 : i32 to index
    %c0_7 = arith.constant 0 : index
    %c0_8 = arith.constant 0 : index
    %7 = vector.load %arg2[%6, %c0_7, %c0_8] : memref<16x8x512xf32, #tpu.memory_space<vmem>>, vector<1x8x512xf32>
    %8 = vector.shape_cast %7 : vector<1x8x512xf32> to vector<8x512xf32>
    %9 = arith.truncf %4 : vector<8x128xf32> to vector<8x128xbf16>
    %cst = arith.constant dense<0.000000e+00> : vector<8x512xf32>
    %10 = tpu.matmul %9, %3, %cst {dimension_numbers = #tpu.dot_dimension_numbers<[1], [0], [0], [1], [0, 0, 1, 1], [], []>} : vector<8x128xbf16>, vector<128x512xbf16>, vector<8x512xf32> -> vector<8x512xf32>
    %11 = arith.addf %8, %10 : vector<8x512xf32>
    %12 = vector.extract_strided_slice %11 {offsets = [0, 0], sizes = [8, 128], strides = [1, 1]} : vector<8x512xf32> to vector<8x128xf32>
    %13 = arith.negf %12 : vector<8x128xf32>
    %14 = math.exp %13 : vector<8x128xf32>
    %cst_9 = arith.constant 1.000000e+00 : f32
    %15 = vector.broadcast %cst_9 : f32 to vector<8x128xf32>
    %16 = arith.addf %15, %14 : vector<8x128xf32>
    %17 = arith.divf %15, %16 : vector<8x128xf32>
    %18 = vector.extract_strided_slice %11 {offsets = [0, 128], sizes = [8, 128], strides = [1, 1]} : vector<8x512xf32> to vector<8x128xf32>
    %19 = arith.negf %18 : vector<8x128xf32>
    %20 = math.exp %19 : vector<8x128xf32>
    %cst_10 = arith.constant 1.000000e+00 : f32
    %21 = vector.broadcast %cst_10 : f32 to vector<8x128xf32>
    %22 = arith.addf %21, %20 : vector<8x128xf32>
    %23 = arith.divf %21, %22 : vector<8x128xf32>
    %24 = vector.extract_strided_slice %11 {offsets = [0, 256], sizes = [8, 128], strides = [1, 1]} : vector<8x512xf32> to vector<8x128xf32>
    %25 = math.tanh %24 : vector<8x128xf32>
    %26 = vector.extract_strided_slice %11 {offsets = [0, 384], sizes = [8, 128], strides = [1, 1]} : vector<8x512xf32> to vector<8x128xf32>
    %27 = arith.negf %26 : vector<8x128xf32>
    %28 = math.exp %27 : vector<8x128xf32>
    %cst_11 = arith.constant 1.000000e+00 : f32
    %29 = vector.broadcast %cst_11 : f32 to vector<8x128xf32>
    %30 = arith.addf %29, %28 : vector<8x128xf32>
    %31 = arith.divf %29, %30 : vector<8x128xf32>
    %32 = arith.mulf %23, %5 : vector<8x128xf32>
    %33 = arith.mulf %17, %25 : vector<8x128xf32>
    %34 = arith.addf %32, %33 : vector<8x128xf32>
    %35 = math.tanh %34 : vector<8x128xf32>
    %36 = arith.mulf %31, %35 : vector<8x128xf32>
    %c1_i32 = arith.constant 1 : i32
    %37 = arith.index_cast %c1_i32 : i32 to index
    %c0_12 = arith.constant 0 : index
    %c0_13 = arith.constant 0 : index
    %38 = vector.load %arg2[%37, %c0_12, %c0_13] : memref<16x8x512xf32, #tpu.memory_space<vmem>>, vector<1x8x512xf32>
    %39 = vector.shape_cast %38 : vector<1x8x512xf32> to vector<8x512xf32>
    %40 = arith.truncf %36 : vector<8x128xf32> to vector<8x128xbf16>
    %cst_14 = arith.constant dense<0.000000e+00> : vector<8x512xf32>
    %41 = tpu.matmul %40, %3, %cst_14 {dimension_numbers = #tpu.dot_dimension_numbers<[1], [0], [0], [1], [0, 0, 1, 1], [], []>} : vector<8x128xbf16>, vector<128x512xbf16>, vector<8x512xf32> -> vector<8x512xf32>
    %42 = arith.addf %39, %41 : vector<8x512xf32>
    %43 = vector.extract_strided_slice %42 {offsets = [0, 0], sizes = [8, 128], strides = [1, 1]} : vector<8x512xf32> to vector<8x128xf32>
    %44 = arith.negf %43 : vector<8x128xf32>
    %45 = math.exp %44 : vector<8x128xf32>
    %cst_15 = arith.constant 1.000000e+00 : f32
    %46 = vector.broadcast %cst_15 : f32 to vector<8x128xf32>
    %47 = arith.addf %46, %45 : vector<8x128xf32>
    %48 = arith.divf %46, %47 : vector<8x128xf32>
    %49 = vector.extract_strided_slice %42 {offsets = [0, 128], sizes = [8, 128], strides = [1, 1]} : vector<8x512xf32> to vector<8x128xf32>
    %50 = arith.negf %49 : vector<8x128xf32>
    %51 = math.exp %50 : vector<8x128xf32>
    %cst_16 = arith.constant 1.000000e+00 : f32
    %52 = vector.broadcast %cst_16 : f32 to vector<8x128xf32>
    %53 = arith.addf %52, %51 : vector<8x128xf32>
    %54 = arith.divf %52, %53 : vector<8x128xf32>
    %55 = vector.extract_strided_slice %42 {offsets = [0, 256], sizes = [8, 128], strides = [1, 1]} : vector<8x512xf32> to vector<8x128xf32>
    %56 = math.tanh %55 : vector<8x128xf32>
    %57 = vector.extract_strided_slice %42 {offsets = [0, 384], sizes = [8, 128], strides = [1, 1]} : vector<8x512xf32> to vector<8x128xf32>
    %58 = arith.negf %57 : vector<8x128xf32>
    %59 = math.exp %58 : vector<8x128xf32>
    %cst_17 = arith.constant 1.000000e+00 : f32
    %60 = vector.broadcast %cst_17 : f32 to vector<8x128xf32>
    %61 = arith.addf %60, %59 : vector<8x128xf32>
    %62 = arith.divf %60, %61 : vector<8x128xf32>
    %63 = arith.mulf %54, %34 : vector<8x128xf32>
    %64 = arith.mulf %48, %56 : vector<8x128xf32>
    %65 = arith.addf %63, %64 : vector<8x128xf32>
    %66 = math.tanh %65 : vector<8x128xf32>
    %67 = arith.mulf %62, %66 : vector<8x128xf32>
    %c2_i32 = arith.constant 2 : i32
    %68 = arith.index_cast %c2_i32 : i32 to index
    %c0_18 = arith.constant 0 : index
    %c0_19 = arith.constant 0 : index
    %69 = vector.load %arg2[%68, %c0_18, %c0_19] : memref<16x8x512xf32, #tpu.memory_space<vmem>>, vector<1x8x512xf32>
    %70 = vector.shape_cast %69 : vector<1x8x512xf32> to vector<8x512xf32>
    %71 = arith.truncf %67 : vector<8x128xf32> to vector<8x128xbf16>
    %cst_20 = arith.constant dense<0.000000e+00> : vector<8x512xf32>
    %72 = tpu.matmul %71, %3, %cst_20 {dimension_numbers = #tpu.dot_dimension_numbers<[1], [0], [0], [1], [0, 0, 1, 1], [], []>} : vector<8x128xbf16>, vector<128x512xbf16>, vector<8x512xf32> -> vector<8x512xf32>
    %73 = arith.addf %70, %72 : vector<8x512xf32>
    %74 = vector.extract_strided_slice %73 {offsets = [0, 0], sizes = [8, 128], strides = [1, 1]} : vector<8x512xf32> to vector<8x128xf32>
    %75 = arith.negf %74 : vector<8x128xf32>
    %76 = math.exp %75 : vector<8x128xf32>
    %cst_21 = arith.constant 1.000000e+00 : f32
    %77 = vector.broadcast %cst_21 : f32 to vector<8x128xf32>
    %78 = arith.addf %77, %76 : vector<8x128xf32>
    %79 = arith.divf %77, %78 : vector<8x128xf32>
    %80 = vector.extract_strided_slice %73 {offsets = [0, 128], sizes = [8, 128], strides = [1, 1]} : vector<8x512xf32> to vector<8x128xf32>
    %81 = arith.negf %80 : vector<8x128xf32>
    %82 = math.exp %81 : vector<8x128xf32>
    %cst_22 = arith.constant 1.000000e+00 : f32
    %83 = vector.broadcast %cst_22 : f32 to vector<8x128xf32>
    %84 = arith.addf %83, %82 : vector<8x128xf32>
    %85 = arith.divf %83, %84 : vector<8x128xf32>
    %86 = vector.extract_strided_slice %73 {offsets = [0, 256], sizes = [8, 128], strides = [1, 1]} : vector<8x512xf32> to vector<8x128xf32>
    %87 = math.tanh %86 : vector<8x128xf32>
    %88 = vector.extract_strided_slice %73 {offsets = [0, 384], sizes = [8, 128], strides = [1, 1]} : vector<8x512xf32> to vector<8x128xf32>
    %89 = arith.negf %88 : vector<8x128xf32>
    %90 = math.exp %89 : vector<8x128xf32>
    %cst_23 = arith.constant 1.000000e+00 : f32
    %91 = vector.broadcast %cst_23 : f32 to vector<8x128xf32>
    %92 = arith.addf %91, %90 : vector<8x128xf32>
    %93 = arith.divf %91, %92 : vector<8x128xf32>
    %94 = arith.mulf %85, %65 : vector<8x128xf32>
    %95 = arith.mulf %79, %87 : vector<8x128xf32>
    %96 = arith.addf %94, %95 : vector<8x128xf32>
    %97 = math.tanh %96 : vector<8x128xf32>
    %98 = arith.mulf %93, %97 : vector<8x128xf32>
    %c3_i32 = arith.constant 3 : i32
    %99 = arith.index_cast %c3_i32 : i32 to index
    %c0_24 = arith.constant 0 : index
    %c0_25 = arith.constant 0 : index
    %100 = vector.load %arg2[%99, %c0_24, %c0_25] : memref<16x8x512xf32, #tpu.memory_space<vmem>>, vector<1x8x512xf32>
    %101 = vector.shape_cast %100 : vector<1x8x512xf32> to vector<8x512xf32>
    %102 = arith.truncf %98 : vector<8x128xf32> to vector<8x128xbf16>
    %cst_26 = arith.constant dense<0.000000e+00> : vector<8x512xf32>
    %103 = tpu.matmul %102, %3, %cst_26 {dimension_numbers = #tpu.dot_dimension_numbers<[1], [0], [0], [1], [0, 0, 1, 1], [], []>} : vector<8x128xbf16>, vector<128x512xbf16>, vector<8x512xf32> -> vector<8x512xf32>
    %104 = arith.addf %101, %103 : vector<8x512xf32>
    %105 = vector.extract_strided_slice %104 {offsets = [0, 0], sizes = [8, 128], strides = [1, 1]} : vector<8x512xf32> to vector<8x128xf32>
    %106 = arith.negf %105 : vector<8x128xf32>
    %107 = math.exp %106 : vector<8x128xf32>
    %cst_27 = arith.constant 1.000000e+00 : f32
    %108 = vector.broadcast %cst_27 : f32 to vector<8x128xf32>
    %109 = arith.addf %108, %107 : vector<8x128xf32>
    %110 = arith.divf %108, %109 : vector<8x128xf32>
    %111 = vector.extract_strided_slice %104 {offsets = [0, 128], sizes = [8, 128], strides = [1, 1]} : vector<8x512xf32> to vector<8x128xf32>
    %112 = arith.negf %111 : vector<8x128xf32>
    %113 = math.exp %112 : vector<8x128xf32>
    %cst_28 = arith.constant 1.000000e+00 : f32
    %114 = vector.broadcast %cst_28 : f32 to vector<8x128xf32>
    %115 = arith.addf %114, %113 : vector<8x128xf32>
    %116 = arith.divf %114, %115 : vector<8x128xf32>
    %117 = vector.extract_strided_slice %104 {offsets = [0, 256], sizes = [8, 128], strides = [1, 1]} : vector<8x512xf32> to vector<8x128xf32>
    %118 = math.tanh %117 : vector<8x128xf32>
    %119 = vector.extract_strided_slice %104 {offsets = [0, 384], sizes = [8, 128], strides = [1, 1]} : vector<8x512xf32> to vector<8x128xf32>
    %120 = arith.negf %119 : vector<8x128xf32>
    %121 = math.exp %120 : vector<8x128xf32>
    %cst_29 = arith.constant 1.000000e+00 : f32
    %122 = vector.broadcast %cst_29 : f32 to vector<8x128xf32>
    %123 = arith.addf %122, %121 : vector<8x128xf32>
    %124 = arith.divf %122, %123 : vector<8x128xf32>
    %125 = arith.mulf %116, %96 : vector<8x128xf32>
    %126 = arith.mulf %110, %118 : vector<8x128xf32>
    %127 = arith.addf %125, %126 : vector<8x128xf32>
    %128 = math.tanh %127 : vector<8x128xf32>
    %129 = arith.mulf %124, %128 : vector<8x128xf32>
    %c4_i32 = arith.constant 4 : i32
    %130 = arith.index_cast %c4_i32 : i32 to index
    %c0_30 = arith.constant 0 : index
    %c0_31 = arith.constant 0 : index
    %131 = vector.load %arg2[%130, %c0_30, %c0_31] : memref<16x8x512xf32, #tpu.memory_space<vmem>>, vector<1x8x512xf32>
    %132 = vector.shape_cast %131 : vector<1x8x512xf32> to vector<8x512xf32>
    %133 = arith.truncf %129 : vector<8x128xf32> to vector<8x128xbf16>
    %cst_32 = arith.constant dense<0.000000e+00> : vector<8x512xf32>
    %134 = tpu.matmul %133, %3, %cst_32 {dimension_numbers = #tpu.dot_dimension_numbers<[1], [0], [0], [1], [0, 0, 1, 1], [], []>} : vector<8x128xbf16>, vector<128x512xbf16>, vector<8x512xf32> -> vector<8x512xf32>
    %135 = arith.addf %132, %134 : vector<8x512xf32>
    %136 = vector.extract_strided_slice %135 {offsets = [0, 0], sizes = [8, 128], strides = [1, 1]} : vector<8x512xf32> to vector<8x128xf32>
    %137 = arith.negf %136 : vector<8x128xf32>
    %138 = math.exp %137 : vector<8x128xf32>
    %cst_33 = arith.constant 1.000000e+00 : f32
    %139 = vector.broadcast %cst_33 : f32 to vector<8x128xf32>
    %140 = arith.addf %139, %138 : vector<8x128xf32>
    %141 = arith.divf %139, %140 : vector<8x128xf32>
    %142 = vector.extract_strided_slice %135 {offsets = [0, 128], sizes = [8, 128], strides = [1, 1]} : vector<8x512xf32> to vector<8x128xf32>
    %143 = arith.negf %142 : vector<8x128xf32>
    %144 = math.exp %143 : vector<8x128xf32>
    %cst_34 = arith.constant 1.000000e+00 : f32
    %145 = vector.broadcast %cst_34 : f32 to vector<8x128xf32>
    %146 = arith.addf %145, %144 : vector<8x128xf32>
    %147 = arith.divf %145, %146 : vector<8x128xf32>
    %148 = vector.extract_strided_slice %135 {offsets = [0, 256], sizes = [8, 128], strides = [1, 1]} : vector<8x512xf32> to vector<8x128xf32>
    %149 = math.tanh %148 : vector<8x128xf32>
    %150 = vector.extract_strided_slice %135 {offsets = [0, 384], sizes = [8, 128], strides = [1, 1]} : vector<8x512xf32> to vector<8x128xf32>
    %151 = arith.negf %150 : vector<8x128xf32>
    %152 = math.exp %151 : vector<8x128xf32>
    %cst_35 = arith.constant 1.000000e+00 : f32
    %153 = vector.broadcast %cst_35 : f32 to vector<8x128xf32>
    %154 = arith.addf %153, %152 : vector<8x128xf32>
    %155 = arith.divf %153, %154 : vector<8x128xf32>
    %156 = arith.mulf %147, %127 : vector<8x128xf32>
    %157 = arith.mulf %141, %149 : vector<8x128xf32>
    %158 = arith.addf %156, %157 : vector<8x128xf32>
    %159 = math.tanh %158 : vector<8x128xf32>
    %160 = arith.mulf %155, %159 : vector<8x128xf32>
    %c5_i32 = arith.constant 5 : i32
    %161 = arith.index_cast %c5_i32 : i32 to index
    %c0_36 = arith.constant 0 : index
    %c0_37 = arith.constant 0 : index
    %162 = vector.load %arg2[%161, %c0_36, %c0_37] : memref<16x8x512xf32, #tpu.memory_space<vmem>>, vector<1x8x512xf32>
    %163 = vector.shape_cast %162 : vector<1x8x512xf32> to vector<8x512xf32>
    %164 = arith.truncf %160 : vector<8x128xf32> to vector<8x128xbf16>
    %cst_38 = arith.constant dense<0.000000e+00> : vector<8x512xf32>
    %165 = tpu.matmul %164, %3, %cst_38 {dimension_numbers = #tpu.dot_dimension_numbers<[1], [0], [0], [1], [0, 0, 1, 1], [], []>} : vector<8x128xbf16>, vector<128x512xbf16>, vector<8x512xf32> -> vector<8x512xf32>
    %166 = arith.addf %163, %165 : vector<8x512xf32>
    %167 = vector.extract_strided_slice %166 {offsets = [0, 0], sizes = [8, 128], strides = [1, 1]} : vector<8x512xf32> to vector<8x128xf32>
    %168 = arith.negf %167 : vector<8x128xf32>
    %169 = math.exp %168 : vector<8x128xf32>
    %cst_39 = arith.constant 1.000000e+00 : f32
    %170 = vector.broadcast %cst_39 : f32 to vector<8x128xf32>
    %171 = arith.addf %170, %169 : vector<8x128xf32>
    %172 = arith.divf %170, %171 : vector<8x128xf32>
    %173 = vector.extract_strided_slice %166 {offsets = [0, 128], sizes = [8, 128], strides = [1, 1]} : vector<8x512xf32> to vector<8x128xf32>
    %174 = arith.negf %173 : vector<8x128xf32>
    %175 = math.exp %174 : vector<8x128xf32>
    %cst_40 = arith.constant 1.000000e+00 : f32
    %176 = vector.broadcast %cst_40 : f32 to vector<8x128xf32>
    %177 = arith.addf %176, %175 : vector<8x128xf32>
    %178 = arith.divf %176, %177 : vector<8x128xf32>
    %179 = vector.extract_strided_slice %166 {offsets = [0, 256], sizes = [8, 128], strides = [1, 1]} : vector<8x512xf32> to vector<8x128xf32>
    %180 = math.tanh %179 : vector<8x128xf32>
    %181 = vector.extract_strided_slice %166 {offsets = [0, 384], sizes = [8, 128], strides = [1, 1]} : vector<8x512xf32> to vector<8x128xf32>
    %182 = arith.negf %181 : vector<8x128xf32>
    %183 = math.exp %182 : vector<8x128xf32>
    %cst_41 = arith.constant 1.000000e+00 : f32
    %184 = vector.broadcast %cst_41 : f32 to vector<8x128xf32>
    %185 = arith.addf %184, %183 : vector<8x128xf32>
    %186 = arith.divf %184, %185 : vector<8x128xf32>
    %187 = arith.mulf %178, %158 : vector<8x128xf32>
    %188 = arith.mulf %172, %180 : vector<8x128xf32>
    %189 = arith.addf %187, %188 : vector<8x128xf32>
    %190 = math.tanh %189 : vector<8x128xf32>
    %191 = arith.mulf %186, %190 : vector<8x128xf32>
    %c6_i32 = arith.constant 6 : i32
    %192 = arith.index_cast %c6_i32 : i32 to index
    %c0_42 = arith.constant 0 : index
    %c0_43 = arith.constant 0 : index
    %193 = vector.load %arg2[%192, %c0_42, %c0_43] : memref<16x8x512xf32, #tpu.memory_space<vmem>>, vector<1x8x512xf32>
    %194 = vector.shape_cast %193 : vector<1x8x512xf32> to vector<8x512xf32>
    %195 = arith.truncf %191 : vector<8x128xf32> to vector<8x128xbf16>
    %cst_44 = arith.constant dense<0.000000e+00> : vector<8x512xf32>
    %196 = tpu.matmul %195, %3, %cst_44 {dimension_numbers = #tpu.dot_dimension_numbers<[1], [0], [0], [1], [0, 0, 1, 1], [], []>} : vector<8x128xbf16>, vector<128x512xbf16>, vector<8x512xf32> -> vector<8x512xf32>
    %197 = arith.addf %194, %196 : vector<8x512xf32>
    %198 = vector.extract_strided_slice %197 {offsets = [0, 0], sizes = [8, 128], strides = [1, 1]} : vector<8x512xf32> to vector<8x128xf32>
    %199 = arith.negf %198 : vector<8x128xf32>
    %200 = math.exp %199 : vector<8x128xf32>
    %cst_45 = arith.constant 1.000000e+00 : f32
    %201 = vector.broadcast %cst_45 : f32 to vector<8x128xf32>
    %202 = arith.addf %201, %200 : vector<8x128xf32>
    %203 = arith.divf %201, %202 : vector<8x128xf32>
    %204 = vector.extract_strided_slice %197 {offsets = [0, 128], sizes = [8, 128], strides = [1, 1]} : vector<8x512xf32> to vector<8x128xf32>
    %205 = arith.negf %204 : vector<8x128xf32>
    %206 = math.exp %205 : vector<8x128xf32>
    %cst_46 = arith.constant 1.000000e+00 : f32
    %207 = vector.broadcast %cst_46 : f32 to vector<8x128xf32>
    %208 = arith.addf %207, %206 : vector<8x128xf32>
    %209 = arith.divf %207, %208 : vector<8x128xf32>
    %210 = vector.extract_strided_slice %197 {offsets = [0, 256], sizes = [8, 128], strides = [1, 1]} : vector<8x512xf32> to vector<8x128xf32>
    %211 = math.tanh %210 : vector<8x128xf32>
    %212 = vector.extract_strided_slice %197 {offsets = [0, 384], sizes = [8, 128], strides = [1, 1]} : vector<8x512xf32> to vector<8x128xf32>
    %213 = arith.negf %212 : vector<8x128xf32>
    %214 = math.exp %213 : vector<8x128xf32>
    %cst_47 = arith.constant 1.000000e+00 : f32
    %215 = vector.broadcast %cst_47 : f32 to vector<8x128xf32>
    %216 = arith.addf %215, %214 : vector<8x128xf32>
    %217 = arith.divf %215, %216 : vector<8x128xf32>
    %218 = arith.mulf %209, %189 : vector<8x128xf32>
    %219 = arith.mulf %203, %211 : vector<8x128xf32>
    %220 = arith.addf %218, %219 : vector<8x128xf32>
    %221 = math.tanh %220 : vector<8x128xf32>
    %222 = arith.mulf %217, %221 : vector<8x128xf32>
    %c7_i32 = arith.constant 7 : i32
    %223 = arith.index_cast %c7_i32 : i32 to index
    %c0_48 = arith.constant 0 : index
    %c0_49 = arith.constant 0 : index
    %224 = vector.load %arg2[%223, %c0_48, %c0_49] : memref<16x8x512xf32, #tpu.memory_space<vmem>>, vector<1x8x512xf32>
    %225 = vector.shape_cast %224 : vector<1x8x512xf32> to vector<8x512xf32>
    %226 = arith.truncf %222 : vector<8x128xf32> to vector<8x128xbf16>
    %cst_50 = arith.constant dense<0.000000e+00> : vector<8x512xf32>
    %227 = tpu.matmul %226, %3, %cst_50 {dimension_numbers = #tpu.dot_dimension_numbers<[1], [0], [0], [1], [0, 0, 1, 1], [], []>} : vector<8x128xbf16>, vector<128x512xbf16>, vector<8x512xf32> -> vector<8x512xf32>
    %228 = arith.addf %225, %227 : vector<8x512xf32>
    %229 = vector.extract_strided_slice %228 {offsets = [0, 0], sizes = [8, 128], strides = [1, 1]} : vector<8x512xf32> to vector<8x128xf32>
    %230 = arith.negf %229 : vector<8x128xf32>
    %231 = math.exp %230 : vector<8x128xf32>
    %cst_51 = arith.constant 1.000000e+00 : f32
    %232 = vector.broadcast %cst_51 : f32 to vector<8x128xf32>
    %233 = arith.addf %232, %231 : vector<8x128xf32>
    %234 = arith.divf %232, %233 : vector<8x128xf32>
    %235 = vector.extract_strided_slice %228 {offsets = [0, 128], sizes = [8, 128], strides = [1, 1]} : vector<8x512xf32> to vector<8x128xf32>
    %236 = arith.negf %235 : vector<8x128xf32>
    %237 = math.exp %236 : vector<8x128xf32>
    %cst_52 = arith.constant 1.000000e+00 : f32
    %238 = vector.broadcast %cst_52 : f32 to vector<8x128xf32>
    %239 = arith.addf %238, %237 : vector<8x128xf32>
    %240 = arith.divf %238, %239 : vector<8x128xf32>
    %241 = vector.extract_strided_slice %228 {offsets = [0, 256], sizes = [8, 128], strides = [1, 1]} : vector<8x512xf32> to vector<8x128xf32>
    %242 = math.tanh %241 : vector<8x128xf32>
    %243 = vector.extract_strided_slice %228 {offsets = [0, 384], sizes = [8, 128], strides = [1, 1]} : vector<8x512xf32> to vector<8x128xf32>
    %244 = arith.negf %243 : vector<8x128xf32>
    %245 = math.exp %244 : vector<8x128xf32>
    %cst_53 = arith.constant 1.000000e+00 : f32
    %246 = vector.broadcast %cst_53 : f32 to vector<8x128xf32>
    %247 = arith.addf %246, %245 : vector<8x128xf32>
    %248 = arith.divf %246, %247 : vector<8x128xf32>
    %249 = arith.mulf %240, %220 : vector<8x128xf32>
    %250 = arith.mulf %234, %242 : vector<8x128xf32>
    %251 = arith.addf %249, %250 : vector<8x128xf32>
    %252 = math.tanh %251 : vector<8x128xf32>
    %253 = arith.mulf %248, %252 : vector<8x128xf32>
    %c8_i32 = arith.constant 8 : i32
    %254 = arith.index_cast %c8_i32 : i32 to index
    %c0_54 = arith.constant 0 : index
    %c0_55 = arith.constant 0 : index
    %255 = vector.load %arg2[%254, %c0_54, %c0_55] : memref<16x8x512xf32, #tpu.memory_space<vmem>>, vector<1x8x512xf32>
    %256 = vector.shape_cast %255 : vector<1x8x512xf32> to vector<8x512xf32>
    %257 = arith.truncf %253 : vector<8x128xf32> to vector<8x128xbf16>
    %cst_56 = arith.constant dense<0.000000e+00> : vector<8x512xf32>
    %258 = tpu.matmul %257, %3, %cst_56 {dimension_numbers = #tpu.dot_dimension_numbers<[1], [0], [0], [1], [0, 0, 1, 1], [], []>} : vector<8x128xbf16>, vector<128x512xbf16>, vector<8x512xf32> -> vector<8x512xf32>
    %259 = arith.addf %256, %258 : vector<8x512xf32>
    %260 = vector.extract_strided_slice %259 {offsets = [0, 0], sizes = [8, 128], strides = [1, 1]} : vector<8x512xf32> to vector<8x128xf32>
    %261 = arith.negf %260 : vector<8x128xf32>
    %262 = math.exp %261 : vector<8x128xf32>
    %cst_57 = arith.constant 1.000000e+00 : f32
    %263 = vector.broadcast %cst_57 : f32 to vector<8x128xf32>
    %264 = arith.addf %263, %262 : vector<8x128xf32>
    %265 = arith.divf %263, %264 : vector<8x128xf32>
    %266 = vector.extract_strided_slice %259 {offsets = [0, 128], sizes = [8, 128], strides = [1, 1]} : vector<8x512xf32> to vector<8x128xf32>
    %267 = arith.negf %266 : vector<8x128xf32>
    %268 = math.exp %267 : vector<8x128xf32>
    %cst_58 = arith.constant 1.000000e+00 : f32
    %269 = vector.broadcast %cst_58 : f32 to vector<8x128xf32>
    %270 = arith.addf %269, %268 : vector<8x128xf32>
    %271 = arith.divf %269, %270 : vector<8x128xf32>
    %272 = vector.extract_strided_slice %259 {offsets = [0, 256], sizes = [8, 128], strides = [1, 1]} : vector<8x512xf32> to vector<8x128xf32>
    %273 = math.tanh %272 : vector<8x128xf32>
    %274 = vector.extract_strided_slice %259 {offsets = [0, 384], sizes = [8, 128], strides = [1, 1]} : vector<8x512xf32> to vector<8x128xf32>
    %275 = arith.negf %274 : vector<8x128xf32>
    %276 = math.exp %275 : vector<8x128xf32>
    %cst_59 = arith.constant 1.000000e+00 : f32
    %277 = vector.broadcast %cst_59 : f32 to vector<8x128xf32>
    %278 = arith.addf %277, %276 : vector<8x128xf32>
    %279 = arith.divf %277, %278 : vector<8x128xf32>
    %280 = arith.mulf %271, %251 : vector<8x128xf32>
    %281 = arith.mulf %265, %273 : vector<8x128xf32>
    %282 = arith.addf %280, %281 : vector<8x128xf32>
    %283 = math.tanh %282 : vector<8x128xf32>
    %284 = arith.mulf %279, %283 : vector<8x128xf32>
    %c9_i32 = arith.constant 9 : i32
    %285 = arith.index_cast %c9_i32 : i32 to index
    %c0_60 = arith.constant 0 : index
    %c0_61 = arith.constant 0 : index
    %286 = vector.load %arg2[%285, %c0_60, %c0_61] : memref<16x8x512xf32, #tpu.memory_space<vmem>>, vector<1x8x512xf32>
    %287 = vector.shape_cast %286 : vector<1x8x512xf32> to vector<8x512xf32>
    %288 = arith.truncf %284 : vector<8x128xf32> to vector<8x128xbf16>
    %cst_62 = arith.constant dense<0.000000e+00> : vector<8x512xf32>
    %289 = tpu.matmul %288, %3, %cst_62 {dimension_numbers = #tpu.dot_dimension_numbers<[1], [0], [0], [1], [0, 0, 1, 1], [], []>} : vector<8x128xbf16>, vector<128x512xbf16>, vector<8x512xf32> -> vector<8x512xf32>
    %290 = arith.addf %287, %289 : vector<8x512xf32>
    %291 = vector.extract_strided_slice %290 {offsets = [0, 0], sizes = [8, 128], strides = [1, 1]} : vector<8x512xf32> to vector<8x128xf32>
    %292 = arith.negf %291 : vector<8x128xf32>
    %293 = math.exp %292 : vector<8x128xf32>
    %cst_63 = arith.constant 1.000000e+00 : f32
    %294 = vector.broadcast %cst_63 : f32 to vector<8x128xf32>
    %295 = arith.addf %294, %293 : vector<8x128xf32>
    %296 = arith.divf %294, %295 : vector<8x128xf32>
    %297 = vector.extract_strided_slice %290 {offsets = [0, 128], sizes = [8, 128], strides = [1, 1]} : vector<8x512xf32> to vector<8x128xf32>
    %298 = arith.negf %297 : vector<8x128xf32>
    %299 = math.exp %298 : vector<8x128xf32>
    %cst_64 = arith.constant 1.000000e+00 : f32
    %300 = vector.broadcast %cst_64 : f32 to vector<8x128xf32>
    %301 = arith.addf %300, %299 : vector<8x128xf32>
    %302 = arith.divf %300, %301 : vector<8x128xf32>
    %303 = vector.extract_strided_slice %290 {offsets = [0, 256], sizes = [8, 128], strides = [1, 1]} : vector<8x512xf32> to vector<8x128xf32>
    %304 = math.tanh %303 : vector<8x128xf32>
    %305 = vector.extract_strided_slice %290 {offsets = [0, 384], sizes = [8, 128], strides = [1, 1]} : vector<8x512xf32> to vector<8x128xf32>
    %306 = arith.negf %305 : vector<8x128xf32>
    %307 = math.exp %306 : vector<8x128xf32>
    %cst_65 = arith.constant 1.000000e+00 : f32
    %308 = vector.broadcast %cst_65 : f32 to vector<8x128xf32>
    %309 = arith.addf %308, %307 : vector<8x128xf32>
    %310 = arith.divf %308, %309 : vector<8x128xf32>
    %311 = arith.mulf %302, %282 : vector<8x128xf32>
    %312 = arith.mulf %296, %304 : vector<8x128xf32>
    %313 = arith.addf %311, %312 : vector<8x128xf32>
    %314 = math.tanh %313 : vector<8x128xf32>
    %315 = arith.mulf %310, %314 : vector<8x128xf32>
    %c10_i32 = arith.constant 10 : i32
    %316 = arith.index_cast %c10_i32 : i32 to index
    %c0_66 = arith.constant 0 : index
    %c0_67 = arith.constant 0 : index
    %317 = vector.load %arg2[%316, %c0_66, %c0_67] : memref<16x8x512xf32, #tpu.memory_space<vmem>>, vector<1x8x512xf32>
    %318 = vector.shape_cast %317 : vector<1x8x512xf32> to vector<8x512xf32>
    %319 = arith.truncf %315 : vector<8x128xf32> to vector<8x128xbf16>
    %cst_68 = arith.constant dense<0.000000e+00> : vector<8x512xf32>
    %320 = tpu.matmul %319, %3, %cst_68 {dimension_numbers = #tpu.dot_dimension_numbers<[1], [0], [0], [1], [0, 0, 1, 1], [], []>} : vector<8x128xbf16>, vector<128x512xbf16>, vector<8x512xf32> -> vector<8x512xf32>
    %321 = arith.addf %318, %320 : vector<8x512xf32>
    %322 = vector.extract_strided_slice %321 {offsets = [0, 0], sizes = [8, 128], strides = [1, 1]} : vector<8x512xf32> to vector<8x128xf32>
    %323 = arith.negf %322 : vector<8x128xf32>
    %324 = math.exp %323 : vector<8x128xf32>
    %cst_69 = arith.constant 1.000000e+00 : f32
    %325 = vector.broadcast %cst_69 : f32 to vector<8x128xf32>
    %326 = arith.addf %325, %324 : vector<8x128xf32>
    %327 = arith.divf %325, %326 : vector<8x128xf32>
    %328 = vector.extract_strided_slice %321 {offsets = [0, 128], sizes = [8, 128], strides = [1, 1]} : vector<8x512xf32> to vector<8x128xf32>
    %329 = arith.negf %328 : vector<8x128xf32>
    %330 = math.exp %329 : vector<8x128xf32>
    %cst_70 = arith.constant 1.000000e+00 : f32
    %331 = vector.broadcast %cst_70 : f32 to vector<8x128xf32>
    %332 = arith.addf %331, %330 : vector<8x128xf32>
    %333 = arith.divf %331, %332 : vector<8x128xf32>
    %334 = vector.extract_strided_slice %321 {offsets = [0, 256], sizes = [8, 128], strides = [1, 1]} : vector<8x512xf32> to vector<8x128xf32>
    %335 = math.tanh %334 : vector<8x128xf32>
    %336 = vector.extract_strided_slice %321 {offsets = [0, 384], sizes = [8, 128], strides = [1, 1]} : vector<8x512xf32> to vector<8x128xf32>
    %337 = arith.negf %336 : vector<8x128xf32>
    %338 = math.exp %337 : vector<8x128xf32>
    %cst_71 = arith.constant 1.000000e+00 : f32
    %339 = vector.broadcast %cst_71 : f32 to vector<8x128xf32>
    %340 = arith.addf %339, %338 : vector<8x128xf32>
    %341 = arith.divf %339, %340 : vector<8x128xf32>
    %342 = arith.mulf %333, %313 : vector<8x128xf32>
    %343 = arith.mulf %327, %335 : vector<8x128xf32>
    %344 = arith.addf %342, %343 : vector<8x128xf32>
    %345 = math.tanh %344 : vector<8x128xf32>
    %346 = arith.mulf %341, %345 : vector<8x128xf32>
    %c11_i32 = arith.constant 11 : i32
    %347 = arith.index_cast %c11_i32 : i32 to index
    %c0_72 = arith.constant 0 : index
    %c0_73 = arith.constant 0 : index
    %348 = vector.load %arg2[%347, %c0_72, %c0_73] : memref<16x8x512xf32, #tpu.memory_space<vmem>>, vector<1x8x512xf32>
    %349 = vector.shape_cast %348 : vector<1x8x512xf32> to vector<8x512xf32>
    %350 = arith.truncf %346 : vector<8x128xf32> to vector<8x128xbf16>
    %cst_74 = arith.constant dense<0.000000e+00> : vector<8x512xf32>
    %351 = tpu.matmul %350, %3, %cst_74 {dimension_numbers = #tpu.dot_dimension_numbers<[1], [0], [0], [1], [0, 0, 1, 1], [], []>} : vector<8x128xbf16>, vector<128x512xbf16>, vector<8x512xf32> -> vector<8x512xf32>
    %352 = arith.addf %349, %351 : vector<8x512xf32>
    %353 = vector.extract_strided_slice %352 {offsets = [0, 0], sizes = [8, 128], strides = [1, 1]} : vector<8x512xf32> to vector<8x128xf32>
    %354 = arith.negf %353 : vector<8x128xf32>
    %355 = math.exp %354 : vector<8x128xf32>
    %cst_75 = arith.constant 1.000000e+00 : f32
    %356 = vector.broadcast %cst_75 : f32 to vector<8x128xf32>
    %357 = arith.addf %356, %355 : vector<8x128xf32>
    %358 = arith.divf %356, %357 : vector<8x128xf32>
    %359 = vector.extract_strided_slice %352 {offsets = [0, 128], sizes = [8, 128], strides = [1, 1]} : vector<8x512xf32> to vector<8x128xf32>
    %360 = arith.negf %359 : vector<8x128xf32>
    %361 = math.exp %360 : vector<8x128xf32>
    %cst_76 = arith.constant 1.000000e+00 : f32
    %362 = vector.broadcast %cst_76 : f32 to vector<8x128xf32>
    %363 = arith.addf %362, %361 : vector<8x128xf32>
    %364 = arith.divf %362, %363 : vector<8x128xf32>
    %365 = vector.extract_strided_slice %352 {offsets = [0, 256], sizes = [8, 128], strides = [1, 1]} : vector<8x512xf32> to vector<8x128xf32>
    %366 = math.tanh %365 : vector<8x128xf32>
    %367 = vector.extract_strided_slice %352 {offsets = [0, 384], sizes = [8, 128], strides = [1, 1]} : vector<8x512xf32> to vector<8x128xf32>
    %368 = arith.negf %367 : vector<8x128xf32>
    %369 = math.exp %368 : vector<8x128xf32>
    %cst_77 = arith.constant 1.000000e+00 : f32
    %370 = vector.broadcast %cst_77 : f32 to vector<8x128xf32>
    %371 = arith.addf %370, %369 : vector<8x128xf32>
    %372 = arith.divf %370, %371 : vector<8x128xf32>
    %373 = arith.mulf %364, %344 : vector<8x128xf32>
    %374 = arith.mulf %358, %366 : vector<8x128xf32>
    %375 = arith.addf %373, %374 : vector<8x128xf32>
    %376 = math.tanh %375 : vector<8x128xf32>
    %377 = arith.mulf %372, %376 : vector<8x128xf32>
    %c12_i32 = arith.constant 12 : i32
    %378 = arith.index_cast %c12_i32 : i32 to index
    %c0_78 = arith.constant 0 : index
    %c0_79 = arith.constant 0 : index
    %379 = vector.load %arg2[%378, %c0_78, %c0_79] : memref<16x8x512xf32, #tpu.memory_space<vmem>>, vector<1x8x512xf32>
    %380 = vector.shape_cast %379 : vector<1x8x512xf32> to vector<8x512xf32>
    %381 = arith.truncf %377 : vector<8x128xf32> to vector<8x128xbf16>
    %cst_80 = arith.constant dense<0.000000e+00> : vector<8x512xf32>
    %382 = tpu.matmul %381, %3, %cst_80 {dimension_numbers = #tpu.dot_dimension_numbers<[1], [0], [0], [1], [0, 0, 1, 1], [], []>} : vector<8x128xbf16>, vector<128x512xbf16>, vector<8x512xf32> -> vector<8x512xf32>
    %383 = arith.addf %380, %382 : vector<8x512xf32>
    %384 = vector.extract_strided_slice %383 {offsets = [0, 0], sizes = [8, 128], strides = [1, 1]} : vector<8x512xf32> to vector<8x128xf32>
    %385 = arith.negf %384 : vector<8x128xf32>
    %386 = math.exp %385 : vector<8x128xf32>
    %cst_81 = arith.constant 1.000000e+00 : f32
    %387 = vector.broadcast %cst_81 : f32 to vector<8x128xf32>
    %388 = arith.addf %387, %386 : vector<8x128xf32>
    %389 = arith.divf %387, %388 : vector<8x128xf32>
    %390 = vector.extract_strided_slice %383 {offsets = [0, 128], sizes = [8, 128], strides = [1, 1]} : vector<8x512xf32> to vector<8x128xf32>
    %391 = arith.negf %390 : vector<8x128xf32>
    %392 = math.exp %391 : vector<8x128xf32>
    %cst_82 = arith.constant 1.000000e+00 : f32
    %393 = vector.broadcast %cst_82 : f32 to vector<8x128xf32>
    %394 = arith.addf %393, %392 : vector<8x128xf32>
    %395 = arith.divf %393, %394 : vector<8x128xf32>
    %396 = vector.extract_strided_slice %383 {offsets = [0, 256], sizes = [8, 128], strides = [1, 1]} : vector<8x512xf32> to vector<8x128xf32>
    %397 = math.tanh %396 : vector<8x128xf32>
    %398 = vector.extract_strided_slice %383 {offsets = [0, 384], sizes = [8, 128], strides = [1, 1]} : vector<8x512xf32> to vector<8x128xf32>
    %399 = arith.negf %398 : vector<8x128xf32>
    %400 = math.exp %399 : vector<8x128xf32>
    %cst_83 = arith.constant 1.000000e+00 : f32
    %401 = vector.broadcast %cst_83 : f32 to vector<8x128xf32>
    %402 = arith.addf %401, %400 : vector<8x128xf32>
    %403 = arith.divf %401, %402 : vector<8x128xf32>
    %404 = arith.mulf %395, %375 : vector<8x128xf32>
    %405 = arith.mulf %389, %397 : vector<8x128xf32>
    %406 = arith.addf %404, %405 : vector<8x128xf32>
    %407 = math.tanh %406 : vector<8x128xf32>
    %408 = arith.mulf %403, %407 : vector<8x128xf32>
    %c13_i32 = arith.constant 13 : i32
    %409 = arith.index_cast %c13_i32 : i32 to index
    %c0_84 = arith.constant 0 : index
    %c0_85 = arith.constant 0 : index
    %410 = vector.load %arg2[%409, %c0_84, %c0_85] : memref<16x8x512xf32, #tpu.memory_space<vmem>>, vector<1x8x512xf32>
    %411 = vector.shape_cast %410 : vector<1x8x512xf32> to vector<8x512xf32>
    %412 = arith.truncf %408 : vector<8x128xf32> to vector<8x128xbf16>
    %cst_86 = arith.constant dense<0.000000e+00> : vector<8x512xf32>
    %413 = tpu.matmul %412, %3, %cst_86 {dimension_numbers = #tpu.dot_dimension_numbers<[1], [0], [0], [1], [0, 0, 1, 1], [], []>} : vector<8x128xbf16>, vector<128x512xbf16>, vector<8x512xf32> -> vector<8x512xf32>
    %414 = arith.addf %411, %413 : vector<8x512xf32>
    %415 = vector.extract_strided_slice %414 {offsets = [0, 0], sizes = [8, 128], strides = [1, 1]} : vector<8x512xf32> to vector<8x128xf32>
    %416 = arith.negf %415 : vector<8x128xf32>
    %417 = math.exp %416 : vector<8x128xf32>
    %cst_87 = arith.constant 1.000000e+00 : f32
    %418 = vector.broadcast %cst_87 : f32 to vector<8x128xf32>
    %419 = arith.addf %418, %417 : vector<8x128xf32>
    %420 = arith.divf %418, %419 : vector<8x128xf32>
    %421 = vector.extract_strided_slice %414 {offsets = [0, 128], sizes = [8, 128], strides = [1, 1]} : vector<8x512xf32> to vector<8x128xf32>
    %422 = arith.negf %421 : vector<8x128xf32>
    %423 = math.exp %422 : vector<8x128xf32>
    %cst_88 = arith.constant 1.000000e+00 : f32
    %424 = vector.broadcast %cst_88 : f32 to vector<8x128xf32>
    %425 = arith.addf %424, %423 : vector<8x128xf32>
    %426 = arith.divf %424, %425 : vector<8x128xf32>
    %427 = vector.extract_strided_slice %414 {offsets = [0, 256], sizes = [8, 128], strides = [1, 1]} : vector<8x512xf32> to vector<8x128xf32>
    %428 = math.tanh %427 : vector<8x128xf32>
    %429 = vector.extract_strided_slice %414 {offsets = [0, 384], sizes = [8, 128], strides = [1, 1]} : vector<8x512xf32> to vector<8x128xf32>
    %430 = arith.negf %429 : vector<8x128xf32>
    %431 = math.exp %430 : vector<8x128xf32>
    %cst_89 = arith.constant 1.000000e+00 : f32
    %432 = vector.broadcast %cst_89 : f32 to vector<8x128xf32>
    %433 = arith.addf %432, %431 : vector<8x128xf32>
    %434 = arith.divf %432, %433 : vector<8x128xf32>
    %435 = arith.mulf %426, %406 : vector<8x128xf32>
    %436 = arith.mulf %420, %428 : vector<8x128xf32>
    %437 = arith.addf %435, %436 : vector<8x128xf32>
    %438 = math.tanh %437 : vector<8x128xf32>
    %439 = arith.mulf %434, %438 : vector<8x128xf32>
    %c14_i32 = arith.constant 14 : i32
    %440 = arith.index_cast %c14_i32 : i32 to index
    %c0_90 = arith.constant 0 : index
    %c0_91 = arith.constant 0 : index
    %441 = vector.load %arg2[%440, %c0_90, %c0_91] : memref<16x8x512xf32, #tpu.memory_space<vmem>>, vector<1x8x512xf32>
    %442 = vector.shape_cast %441 : vector<1x8x512xf32> to vector<8x512xf32>
    %443 = arith.truncf %439 : vector<8x128xf32> to vector<8x128xbf16>
    %cst_92 = arith.constant dense<0.000000e+00> : vector<8x512xf32>
    %444 = tpu.matmul %443, %3, %cst_92 {dimension_numbers = #tpu.dot_dimension_numbers<[1], [0], [0], [1], [0, 0, 1, 1], [], []>} : vector<8x128xbf16>, vector<128x512xbf16>, vector<8x512xf32> -> vector<8x512xf32>
    %445 = arith.addf %442, %444 : vector<8x512xf32>
    %446 = vector.extract_strided_slice %445 {offsets = [0, 0], sizes = [8, 128], strides = [1, 1]} : vector<8x512xf32> to vector<8x128xf32>
    %447 = arith.negf %446 : vector<8x128xf32>
    %448 = math.exp %447 : vector<8x128xf32>
    %cst_93 = arith.constant 1.000000e+00 : f32
    %449 = vector.broadcast %cst_93 : f32 to vector<8x128xf32>
    %450 = arith.addf %449, %448 : vector<8x128xf32>
    %451 = arith.divf %449, %450 : vector<8x128xf32>
    %452 = vector.extract_strided_slice %445 {offsets = [0, 128], sizes = [8, 128], strides = [1, 1]} : vector<8x512xf32> to vector<8x128xf32>
    %453 = arith.negf %452 : vector<8x128xf32>
    %454 = math.exp %453 : vector<8x128xf32>
    %cst_94 = arith.constant 1.000000e+00 : f32
    %455 = vector.broadcast %cst_94 : f32 to vector<8x128xf32>
    %456 = arith.addf %455, %454 : vector<8x128xf32>
    %457 = arith.divf %455, %456 : vector<8x128xf32>
    %458 = vector.extract_strided_slice %445 {offsets = [0, 256], sizes = [8, 128], strides = [1, 1]} : vector<8x512xf32> to vector<8x128xf32>
    %459 = math.tanh %458 : vector<8x128xf32>
    %460 = vector.extract_strided_slice %445 {offsets = [0, 384], sizes = [8, 128], strides = [1, 1]} : vector<8x512xf32> to vector<8x128xf32>
    %461 = arith.negf %460 : vector<8x128xf32>
    %462 = math.exp %461 : vector<8x128xf32>
    %cst_95 = arith.constant 1.000000e+00 : f32
    %463 = vector.broadcast %cst_95 : f32 to vector<8x128xf32>
    %464 = arith.addf %463, %462 : vector<8x128xf32>
    %465 = arith.divf %463, %464 : vector<8x128xf32>
    %466 = arith.mulf %457, %437 : vector<8x128xf32>
    %467 = arith.mulf %451, %459 : vector<8x128xf32>
    %468 = arith.addf %466, %467 : vector<8x128xf32>
    %469 = math.tanh %468 : vector<8x128xf32>
    %470 = arith.mulf %465, %469 : vector<8x128xf32>
    %c15_i32 = arith.constant 15 : i32
    %471 = arith.index_cast %c15_i32 : i32 to index
    %c0_96 = arith.constant 0 : index
    %c0_97 = arith.constant 0 : index
    %472 = vector.load %arg2[%471, %c0_96, %c0_97] : memref<16x8x512xf32, #tpu.memory_space<vmem>>, vector<1x8x512xf32>
    %473 = vector.shape_cast %472 : vector<1x8x512xf32> to vector<8x512xf32>
    %474 = arith.truncf %470 : vector<8x128xf32> to vector<8x128xbf16>
    %cst_98 = arith.constant dense<0.000000e+00> : vector<8x512xf32>
    %475 = tpu.matmul %474, %3, %cst_98 {dimension_numbers = #tpu.dot_dimension_numbers<[1], [0], [0], [1], [0, 0, 1, 1], [], []>} : vector<8x128xbf16>, vector<128x512xbf16>, vector<8x512xf32> -> vector<8x512xf32>
    %476 = arith.addf %473, %475 : vector<8x512xf32>
    %477 = vector.extract_strided_slice %476 {offsets = [0, 0], sizes = [8, 128], strides = [1, 1]} : vector<8x512xf32> to vector<8x128xf32>
    %478 = arith.negf %477 : vector<8x128xf32>
    %479 = math.exp %478 : vector<8x128xf32>
    %cst_99 = arith.constant 1.000000e+00 : f32
    %480 = vector.broadcast %cst_99 : f32 to vector<8x128xf32>
    %481 = arith.addf %480, %479 : vector<8x128xf32>
    %482 = arith.divf %480, %481 : vector<8x128xf32>
    %483 = vector.extract_strided_slice %476 {offsets = [0, 128], sizes = [8, 128], strides = [1, 1]} : vector<8x512xf32> to vector<8x128xf32>
    %484 = arith.negf %483 : vector<8x128xf32>
    %485 = math.exp %484 : vector<8x128xf32>
    %cst_100 = arith.constant 1.000000e+00 : f32
    %486 = vector.broadcast %cst_100 : f32 to vector<8x128xf32>
    %487 = arith.addf %486, %485 : vector<8x128xf32>
    %488 = arith.divf %486, %487 : vector<8x128xf32>
    %489 = vector.extract_strided_slice %476 {offsets = [0, 256], sizes = [8, 128], strides = [1, 1]} : vector<8x512xf32> to vector<8x128xf32>
    %490 = math.tanh %489 : vector<8x128xf32>
    %491 = vector.extract_strided_slice %476 {offsets = [0, 384], sizes = [8, 128], strides = [1, 1]} : vector<8x512xf32> to vector<8x128xf32>
    %492 = arith.negf %491 : vector<8x128xf32>
    %493 = math.exp %492 : vector<8x128xf32>
    %cst_101 = arith.constant 1.000000e+00 : f32
    %494 = vector.broadcast %cst_101 : f32 to vector<8x128xf32>
    %495 = arith.addf %494, %493 : vector<8x128xf32>
    %496 = arith.divf %494, %495 : vector<8x128xf32>
    %497 = arith.mulf %488, %468 : vector<8x128xf32>
    %498 = arith.mulf %482, %490 : vector<8x128xf32>
    %499 = arith.addf %497, %498 : vector<8x128xf32>
    %500 = math.tanh %499 : vector<8x128xf32>
    %501 = arith.mulf %496, %500 : vector<8x128xf32>
    %c16_i32 = arith.constant 16 : i32
    %c0_102 = arith.constant 0 : index
    %c0_103 = arith.constant 0 : index
    %502 = vector.load %arg9[%c0_102, %c0_103] : memref<8x128xf32, #tpu.memory_space<vmem>>, vector<8x128xf32>
    tpu.vector_store %arg9[%c0_102, %c0_103], %501 {strides = array<i32>} : memref<8x128xf32, #tpu.memory_space<vmem>>, vector<8x128xf32>,
    %c0_104 = arith.constant 0 : index
    %c0_105 = arith.constant 0 : index
    %503 = vector.load %arg10[%c0_104, %c0_105] : memref<8x128xf32, #tpu.memory_space<vmem>>, vector<8x128xf32>
    tpu.vector_store %arg10[%c0_104, %c0_105], %499 {strides = array<i32>} : memref<8x128xf32, #tpu.memory_space<vmem>>, vector<8x128xf32>,
    %c3_i32_106 = arith.constant 3 : i32
    %504 = arith.cmpi eq, %arg1, %c3_i32_106 : i32
    %505 = arith.extui %504 : i1 to i32
    %c0_i32_107 = arith.constant 0 : i32
    %506 = arith.cmpi ne, %505, %c0_i32_107 : i32
    scf.if %506 {
      %c0_108 = arith.constant 0 : index
      %c0_109 = arith.constant 0 : index
      %507 = vector.load %arg6[%c0_108, %c0_109] : memref<128x128xf32, #tpu.memory_space<vmem>>, vector<128x128xf32>
      %cst_110 = arith.constant dense<0.000000e+00> : vector<8x128xf32>
      %508 = tpu.matmul %501, %507, %cst_110 {dimension_numbers = #tpu.dot_dimension_numbers<[1], [0], [0], [1], [0, 0, 1, 1], [], []>} : vector<8x128xf32>, vector<128x128xf32>, vector<8x128xf32> -> vector<8x128xf32>
      %c0_111 = arith.constant 0 : index
      %c0_112 = arith.constant 0 : index
      %509 = vector.load %arg7[%c0_111, %c0_112] : memref<1x128xf32, #tpu.memory_space<vmem>>, vector<1x128xf32>
      %510 = vector.broadcast %509 : vector<1x128xf32> to vector<8x128xf32>
      %511 = arith.addf %508, %510 : vector<8x128xf32>
      %c0_113 = arith.constant 0 : index
      %c0_114 = arith.constant 0 : index
      %512 = vector.load %arg8[%c0_113, %c0_114] : memref<8x128xf32, #tpu.memory_space<vmem>>, vector<8x128xf32>
      tpu.vector_store %arg8[%c0_113, %c0_114], %511 {strides = array<i32>} : memref<8x128xf32, #tpu.memory_space<vmem>>, vector<8x128xf32>,
    } else {
    }
    return
  }
  func.func @transform_0(%arg0: i32, %arg1: i32) -> (i32, i32, i32) {
    %c0_i32 = arith.constant 0 : i32
    %c0_i32_0 = arith.constant 0 : i32
    return %arg1, %arg0, %c0_i32 : i32, i32, i32
  }
  func.func @transform_1(%arg0: i32, %arg1: i32) -> (i32, i32) {
    %c0_i32 = arith.constant 0 : i32
    %c0_i32_0 = arith.constant 0 : i32
    %c0_i32_1 = arith.constant 0 : i32
    return %c0_i32, %c0_i32_0 : i32, i32
  }
  func.func @transform_2(%arg0: i32, %arg1: i32) -> (i32, i32) {
    %c0_i32 = arith.constant 0 : i32
    %c0_i32_0 = arith.constant 0 : i32
    return %arg0, %c0_i32 : i32, i32
  }
  func.func @transform_3(%arg0: i32, %arg1: i32) -> (i32, i32) {
    %c0_i32 = arith.constant 0 : i32
    %c0_i32_0 = arith.constant 0 : i32
    return %arg0, %c0_i32 : i32, i32
  }
  func.func @transform_4(%arg0: i32, %arg1: i32) -> (i32, i32) {
    %c0_i32 = arith.constant 0 : i32
    %c0_i32_0 = arith.constant 0 : i32
    %c0_i32_1 = arith.constant 0 : i32
    return %c0_i32, %c0_i32_0 : i32, i32
  }
  func.func @transform_5(%arg0: i32, %arg1: i32) -> (i32, i32) {
    %c0_i32 = arith.constant 0 : i32
    %c0_i32_0 = arith.constant 0 : i32
    %c0_i32_1 = arith.constant 0 : i32
    return %c0_i32, %c0_i32_0 : i32, i32
  }
  func.func @transform_6(%arg0: i32, %arg1: i32) -> (i32, i32) {
    %c0_i32 = arith.constant 0 : i32
    %c0_i32_0 = arith.constant 0 : i32
    return %arg0, %c0_i32 : i32, i32
  }
  func.func @transform_7(%arg0: i32, %arg1: i32) -> (i32, i32) {
    %c0_i32 = arith.constant 0 : i32
    %c0_i32_0 = arith.constant 0 : i32
    return %arg0, %c0_i32 : i32, i32
  }
  func.func @transform_8(%arg0: i32, %arg1: i32) -> (i32, i32) {
    %c0_i32 = arith.constant 0 : i32
    %c0_i32_0 = arith.constant 0 : i32
    return %arg0, %c0_i32 : i32, i32
  }
}

</mosaic_0001>

<llo_original>
// kernel: rnn_forward.1
$region0: #{rnn_forward.1}
  #allocation0 [shape = 'u32[]', space=smem, size = 0x4, offset = 0x4, fixed_abs, tag = 'smem constant byte address 0x4 - core index']
  #allocation1 [shape = 'u32[144,128]{1,0:T(1,128)}', space=vmem, size = 0x12000, scoped, tag = 'internal scratch']
  %s0 = inlined_call_operand.vmem [shape: f32[64,16,512], index: 0, kind: input, shape index: {}]
  %s1 = inlined_call_operand.vmem [shape: bf16[128,512], index: 1, kind: input, shape index: {}]
  %s2 = inlined_call_operand.vmem [shape: f32[16,128], index: 2, kind: input, shape index: {}, may-alias: {2,7}]
  %s3 = inlined_call_operand.vmem [shape: f32[16,128], index: 3, kind: input, shape index: {}, may-alias: {3,8}]
  %s4 = inlined_call_operand.vmem [shape: f32[128,128], index: 4, kind: input, shape index: {}]
  %s5 = inlined_call_operand.vmem [shape: f32[1,128], index: 5, kind: input, shape index: {}]
  %s6 = inlined_call_operand.hbm [shape: f32[16,128], index: 6, kind: output, shape index: {0}]
  %s7 = inlined_call_operand.vmem [shape: f32[16,128], index: 7, kind: output, shape index: {1}, may-alias: {2,7}]
  %s8 = inlined_call_operand.vmem [shape: f32[16,128], index: 8, kind: output, shape index: {2}, may-alias: {3,8}]
  %9 = xla_tuple %s6, %s7, %s8
  %s10 = sld [smem:[#allocation0]]
  $region104: #{rnn_forward.1} parent=0
    _
  %s12 = ssub.s32 1, %s10
  %s13 = scalar_select 0, %s12, %s10
  $region1: #{rnn_forward.1} parent=0
    #allocation2 [shape = 'u8[524288]{0}', space=vmem, size = 0x80000, scoped, tag = 'input window, operand 0']
    #allocation3 [shape = 'u8[8192]{0}', space=vmem, size = 0x2000, scoped, tag = 'output window, operand 0']
    #allocation4 [shape = 's32[2]{0}', space=sflag, size = 0x8, scoped, tag = 'scoped memory for rnn_forward.1']
    %14 = vsyncpa [#allocation4], 0
    %s15 = scalar_lea.sflag [#allocation4], 1
    %16 = vsyncpa %s15, 0
    loop: start=0, step=1, limit=10
    $region2: #{rnn_forward.1} parent=1 // loop_pre_header
      _
    $region3: #{rnn_forward.1} parent=1 // loop_header
      %s18 = sphi 0, %s22
      %p19 = scmp.ge.s32.totalorder %s18, 10
      %s25 = sphi 0, %s37
      %s26 = sphi 0, %s33
      %s27 = sphi 0, %s25
      %s28 = sphi 0, %s26
      %s29 = sphi 0, %s27
      %s30 = sphi 0, %s28
      %s42 = sphi 0, %s44
      %s45 = sphi 0, %s42
      %s46 = sphi 0, %s45
      %s62 = sphi 0, %s46
      %s66 = sphi 0, %s66
      %s68 = sphi 0, %s66
      %s69 = sphi 0, %s68
      %s83 = sphi 0, %s69
      %s89 = sphi 0, %s91
      %s92 = sphi 0, %s89
      %s93 = sphi 0, %s92
      %s109 = sphi 0, %s93
      %s115 = sphi 0, %s117
      %s118 = sphi 0, %s115
      %s119 = sphi 0, %s118
      %s135 = sphi 0, %s119
      %s139 = sphi 0, %s139
      %s141 = sphi 0, %s139
      %s142 = sphi 0, %s141
      %s156 = sphi 0, %s142
      %s160 = sphi 0, %s160
      %s162 = sphi 0, %s160
      %s163 = sphi 0, %s162
      %s177 = sphi 0, %s163
      %s183 = sphi 0, %s185
      %s186 = sphi 0, %s183
      %s187 = sphi 0, %s186
      %s203 = sphi 0, %s187
      %s209 = sphi 0, %s211
      %s212 = sphi 0, %s209
      %s213 = sphi 0, %s212
      %s229 = sphi 0, %s213
      %s235 = sphi 0, %s237
      %s238 = sphi 0, %s235
      %s239 = sphi 0, %s238
      %s255 = sphi 0, %s239
    $region4: #{rnn_forward.1} parent=1 // loop_header_branch
      %21 = sbr.rel (%p19) target = $region8
    $region5: #{rnn_forward.1} parent=1 // loop_body
      %s23 = ssub.s32 %s18, 1
      %s24 = ssub.s32 %s18, 2
      %s31 = sadd.s32 1, %s26
      %p32 = scmp.ge.s32.totalorder %s31, 4
      %s33 = scalar_select %p32, 0, %s31
      %s34 = sadd.s32 1, %s25
      %s35 = scalar_select %p32, %s34, %s25
      %p36 = scmp.ge.s32.totalorder %s35, 2
      %s37 = scalar_select %p36, 0, %s35
      %s38 = ssub.s32 %s26, %s33
      %s39 = ssub.s32 %s25, %s37
      %s40 = sor.u32 %s38, %s39
      %p41 = scmp.eq.s32.totalorder %s40, 0
      %s43 = sadd.s32 %s42, 1
      %s44 = scalar_select %p41, %s42, %s43
      %p47 = pneg %p41
      %p48 = scmp.eq.s32.totalorder %s18, 7
      %p49 = por %p47, %p48
      %p50 = scmp.ne.s32.totalorder %s42, %s45
      %p51 = scmp.eq.s32.totalorder %s18, 0
      %p52 = por %p50, %p51
      %p53 = scmp.ne.s32.totalorder %s42, %s45
      %p54 = scmp.eq.s32.totalorder %s23, 7
      %p55 = por %p53, %p54
      %p56 = scmp.ne.s32.totalorder %s45, %s46
      %p57 = scmp.eq.s32.totalorder %s23, 0
      %p58 = por %p56, %p57
      %p59 = scmp.ne.s32.totalorder %s45, %s46
      %p60 = scmp.eq.s32.totalorder %s24, 7
      %p61 = por %p59, %p60
      %p63 = scmp.ne.s32.totalorder %s46, %s62
      %p64 = scmp.eq.s32.totalorder %s24, 0
      %p65 = por %p63, %p64
      %s67 = sadd.s32 %s66, 1
      %p70 = scmp.eq.s32.totalorder %s18, 7
      %p71 = scmp.ne.s32.totalorder %s66, %s68
      %p72 = scmp.eq.s32.totalorder %s18, 0
      %p73 = por %p71, %p72
      %p74 = scmp.ne.s32.totalorder %s66, %s68
      %p75 = scmp.eq.s32.totalorder %s23, 7
      %p76 = por %p74, %p75
      %p77 = scmp.ne.s32.totalorder %s68, %s69
      %p78 = scmp.eq.s32.totalorder %s23, 0
      %p79 = por %p77, %p78
      %p80 = scmp.ne.s32.totalorder %s68, %s69
      %p81 = scmp.eq.s32.totalorder %s24, 7
      %p82 = por %p80, %p81
      %p84 = scmp.ne.s32.totalorder %s69, %s83
      %p85 = scmp.eq.s32.totalorder %s24, 0
      %p86 = por %p84, %p85
      %s87 = ssub.s32 %s25, %s37
      %p88 = scmp.eq.s32.totalorder %s87, 0
      %s90 = sadd.s32 %s89, 1
      %s91 = scalar_select %p88, %s89, %s90
      %p94 = pneg %p88
      %p95 = scmp.eq.s32.totalorder %s18, 7
      %p96 = por %p94, %p95
      %p97 = scmp.ne.s32.totalorder %s89, %s92
      %p98 = scmp.eq.s32.totalorder %s18, 0
      %p99 = por %p97, %p98
      %p100 = scmp.ne.s32.totalorder %s89, %s92
      %p101 = scmp.eq.s32.totalorder %s23, 7
      %p102 = por %p100, %p101
      %p103 = scmp.ne.s32.totalorder %s92, %s93
      %p104 = scmp.eq.s32.totalorder %s23, 0
      %p105 = por %p103, %p104
      %p106 = scmp.ne.s32.totalorder %s92, %s93
      %p107 = scmp.eq.s32.totalorder %s24, 7
      %p108 = por %p106, %p107
      %p110 = scmp.ne.s32.totalorder %s93, %s109
      %p111 = scmp.eq.s32.totalorder %s24, 0
      %p112 = por %p110, %p111
      %s113 = ssub.s32 %s25, %s37
      %p114 = scmp.eq.s32.totalorder %s113, 0
      %s116 = sadd.s32 %s115, 1
      %s117 = scalar_select %p114, %s115, %s116
      %p120 = pneg %p114
      %p121 = scmp.eq.s32.totalorder %s18, 7
      %p122 = por %p120, %p121
      %p123 = scmp.ne.s32.totalorder %s115, %s118
      %p124 = scmp.eq.s32.totalorder %s18, 0
      %p125 = por %p123, %p124
      %p126 = scmp.ne.s32.totalorder %s115, %s118
      %p127 = scmp.eq.s32.totalorder %s23, 7
      %p128 = por %p126, %p127
      %p129 = scmp.ne.s32.totalorder %s118, %s119
      %p130 = scmp.eq.s32.totalorder %s23, 0
      %p131 = por %p129, %p130
      %p132 = scmp.ne.s32.totalorder %s118, %s119
      %p133 = scmp.eq.s32.totalorder %s24, 7
      %p134 = por %p132, %p133
      %p136 = scmp.ne.s32.totalorder %s119, %s135
      %p137 = scmp.eq.s32.totalorder %s24, 0
      %p138 = por %p136, %p137
      %s140 = sadd.s32 %s139, 1
      %p143 = scmp.eq.s32.totalorder %s18, 7
      %p144 = scmp.ne.s32.totalorder %s139, %s141
      %p145 = scmp.eq.s32.totalorder %s18, 0
      %p146 = por %p144, %p145
      %p147 = scmp.ne.s32.totalorder %s139, %s141
      %p148 = scmp.eq.s32.totalorder %s23, 7
      %p149 = por %p147, %p148
      %p150 = scmp.ne.s32.totalorder %s141, %s142
      %p151 = scmp.eq.s32.totalorder %s23, 0
      %p152 = por %p150, %p151
      %p153 = scmp.ne.s32.totalorder %s141, %s142
      %p154 = scmp.eq.s32.totalorder %s24, 7
      %p155 = por %p153, %p154
      %p157 = scmp.ne.s32.totalorder %s142, %s156
      %p158 = scmp.eq.s32.totalorder %s24, 0
      %p159 = por %p157, %p158
      %s161 = sadd.s32 %s160, 1
      %p164 = scmp.eq.s32.totalorder %s18, 7
      %p165 = scmp.ne.s32.totalorder %s160, %s162
      %p166 = scmp.eq.s32.totalorder %s18, 0
      %p167 = por %p165, %p166
      %p168 = scmp.ne.s32.totalorder %s160, %s162
      %p169 = scmp.eq.s32.totalorder %s23, 7
      %p170 = por %p168, %p169
      %p171 = scmp.ne.s32.totalorder %s162, %s163
      %p172 = scmp.eq.s32.totalorder %s23, 0
      %p173 = por %p171, %p172
      %p174 = scmp.ne.s32.totalorder %s162, %s163
      %p175 = scmp.eq.s32.totalorder %s24, 7
      %p176 = por %p174, %p175
      %p178 = scmp.ne.s32.totalorder %s163, %s177
      %p179 = scmp.eq.s32.totalorder %s24, 0
      %p180 = por %p178, %p179
      %s181 = ssub.s32 %s25, %s37
      %p182 = scmp.eq.s32.totalorder %s181, 0
      %s184 = sadd.s32 %s183, 1
      %s185 = scalar_select %p182, %s183, %s184
      %p188 = pneg %p182
      %p189 = scmp.eq.s32.totalorder %s18, 7
      %p190 = por %p188, %p189
      %p191 = scmp.ne.s32.totalorder %s183, %s186
      %p192 = scmp.eq.s32.totalorder %s18, 0
      %p193 = por %p191, %p192
      %p194 = scmp.ne.s32.totalorder %s183, %s186
      %p195 = scmp.eq.s32.totalorder %s23, 7
      %p196 = por %p194, %p195
      %p197 = scmp.ne.s32.totalorder %s186, %s187
      %p198 = scmp.eq.s32.totalorder %s23, 0
      %p199 = por %p197, %p198
      %p200 = scmp.ne.s32.totalorder %s186, %s187
      %p201 = scmp.eq.s32.totalorder %s24, 7
      %p202 = por %p200, %p201
      %p204 = scmp.ne.s32.totalorder %s187, %s203
      %p205 = scmp.eq.s32.totalorder %s24, 0
      %p206 = por %p204, %p205
      %s207 = ssub.s32 %s25, %s37
      %p208 = scmp.eq.s32.totalorder %s207, 0
      %s210 = sadd.s32 %s209, 1
      %s211 = scalar_select %p208, %s209, %s210
      %p214 = pneg %p208
      %p215 = scmp.eq.s32.totalorder %s18, 7
      %p216 = por %p214, %p215
      %p217 = scmp.ne.s32.totalorder %s209, %s212
      %p218 = scmp.eq.s32.totalorder %s18, 0
      %p219 = por %p217, %p218
      %p220 = scmp.ne.s32.totalorder %s209, %s212
      %p221 = scmp.eq.s32.totalorder %s23, 7
      %p222 = por %p220, %p221
      %p223 = scmp.ne.s32.totalorder %s212, %s213
      %p224 = scmp.eq.s32.totalorder %s23, 0
      %p225 = por %p223, %p224
      %p226 = scmp.ne.s32.totalorder %s212, %s213
      %p227 = scmp.eq.s32.totalorder %s24, 7
      %p228 = por %p226, %p227
      %p230 = scmp.ne.s32.totalorder %s213, %s229
      %p231 = scmp.eq.s32.totalorder %s24, 0
      %p232 = por %p230, %p231
      %s233 = ssub.s32 %s25, %s37
      %p234 = scmp.eq.s32.totalorder %s233, 0
      %s236 = sadd.s32 %s235, 1
      %s237 = scalar_select %p234, %s235, %s236
      %p240 = pneg %p234
      %p241 = scmp.eq.s32.totalorder %s18, 7
      %p242 = por %p240, %p241
      %p243 = scmp.ne.s32.totalorder %s235, %s238
      %p244 = scmp.eq.s32.totalorder %s18, 0
      %p245 = por %p243, %p244
      %p246 = scmp.ne.s32.totalorder %s235, %s238
      %p247 = scmp.eq.s32.totalorder %s23, 7
      %p248 = por %p246, %p247
      %p249 = scmp.ne.s32.totalorder %s238, %s239
      %p250 = scmp.eq.s32.totalorder %s23, 0
      %p251 = por %p249, %p250
      %p252 = scmp.ne.s32.totalorder %s238, %s239
      %p253 = scmp.eq.s32.totalorder %s24, 7
      %p254 = por %p252, %p253
      %p256 = scmp.ne.s32.totalorder %s239, %s255
      %p257 = scmp.eq.s32.totalorder %s24, 0
      %p258 = por %p256, %p257
      %p259 = scmp.le.s32.totalorder 1, %s18
      %p260 = scmp.lt.s32.totalorder %s18, 9
      %p261 = pnand %p259, %p260
      %p262 = pneg %p261
      // Predicated region
      $region9: #{rnn_forward.1} parent=5 // pred_check
        _
      $region10: #{rnn_forward.1} parent=5 // pred_check_branch
        %264 = sbr.rel (%p261) target = $region12
      $region11: #{rnn_forward.1} parent=5 // pred_region
        %s265 = ssub.s32 %s18, 1
        // Predicated region
        $region13: #{rnn_forward.1} parent=11 // pred_check
          %p266 = pneg %p79
        $region14: #{rnn_forward.1} parent=11 // pred_check_branch
          %268 = sbr.rel (%p266) target = $region16
        $region15: #{rnn_forward.1} parent=11 // pred_region
          _
        $region16: #{rnn_forward.1} parent=11 // pred_fallthru
          _
        // Predicated region
        $region17: #{rnn_forward.1} parent=11 // pred_check
          %p269 = pneg %p152
        $region18: #{rnn_forward.1} parent=11 // pred_check_branch
          %271 = sbr.rel (%p269) target = $region20
        $region19: #{rnn_forward.1} parent=11 // pred_region
          _
        $region20: #{rnn_forward.1} parent=11 // pred_fallthru
          _
        // Predicated region
        $region21: #{rnn_forward.1} parent=11 // pred_check
          %p272 = pneg %p173
        $region22: #{rnn_forward.1} parent=11 // pred_check_branch
          %274 = sbr.rel (%p272) target = $region24
        $region23: #{rnn_forward.1} parent=11 // pred_region
          _
        $region24: #{rnn_forward.1} parent=11 // pred_fallthru
          _
      $region12: #{rnn_forward.1} parent=5 // pred_fallthru
        _
      %p275 = scmp.lt.s32.totalorder %s18, 8
      // Predicated region
      $region25: #{rnn_forward.1} parent=5 // pred_check
        %p276 = pneg %p275
      $region26: #{rnn_forward.1} parent=5 // pred_check_branch
        %278 = sbr.rel (%p276) target = $region28
      $region27: #{rnn_forward.1} parent=5 // pred_region
        // Predicated region
        $region29: #{rnn_forward.1} parent=27 // pred_check
          %p279 = pneg %p52
        $region30: #{rnn_forward.1} parent=27 // pred_check_branch
          %281 = sbr.rel (%p279) target = $region32
        $region31: #{rnn_forward.1} parent=27 // pred_region
          %s282 = sand.u32 %s42, 1
          %s283 = sand.u32 %s42, 1
          %s284 = smul.addr %s283, 512
          %s285 = scalar_lea.vmem [#allocation2], %s284
          %s286 = smul.u32 16, %s26
          %s287 = smul.addr %s25, 4
          %s288 = smul.addr %s286, 8
          %s289 = sadd.s32 %s287, %s288
          %s290 = smul.addr %s289, 8
          %s291 = scalar_lea.vmem %s0, %s290
          // Predicated region
          $region33: #{rnn_forward.1} parent=31 // pred_check
            _
          $region34: #{rnn_forward.1} parent=31 // pred_check_branch
            %293 = sbr.rel (0) target = $region36
          $region35: #{rnn_forward.1} parent=31 // pred_region
            // Predicated region
            $region37: #{rnn_forward.1} parent=35 // pred_check
              _
            $region38: #{rnn_forward.1} parent=35 // pred_check_branch
              %295 = sbr.rel (0) target = $region40
            $region39: #{rnn_forward.1} parent=35 // pred_region
              loop: start=0, step=1, limit=1
              $region41: #{rnn_forward.1} parent=39 // loop_pre_header
                _
              $region42: #{rnn_forward.1} parent=39 // loop_header
                %s297 = sphi 0, %s301
                %p298 = scmp.ge.s32.totalorder %s297, 1
                %s302 = sphi %s291, %s291
                %s303 = sphi %s285, %s285
              $region43: #{rnn_forward.1} parent=39 // loop_header_branch
                %300 = sbr.rel (%p298) target = $region47
              $region44: #{rnn_forward.1} parent=39 // loop_body
                %v304 = vld [vmem:[%s302] sm:$0xff]
                %305 = vst [vmem:[%s303] sm:$0xff] %v304
                %v306 = vld [vmem:[%s302 + $0x8] sm:$0xff]
                %307 = vst [vmem:[%s303 + $0x8] sm:$0xff] %v306
                %v308 = vld [vmem:[%s302 + $0x10] sm:$0xff]
                %309 = vst [vmem:[%s303 + $0x10] sm:$0xff] %v308
                %v310 = vld [vmem:[%s302 + $0x18] sm:$0xff]
                %311 = vst [vmem:[%s303 + $0x18] sm:$0xff] %v310
                %v312 = vld [vmem:[%s302 + $0x40] sm:$0xff]
                %313 = vst [vmem:[%s303 + $0x20] sm:$0xff] %v312
                %v314 = vld [vmem:[%s302 + $0x48] sm:$0xff]
                %315 = vst [vmem:[%s303 + $0x28] sm:$0xff] %v314
                %v316 = vld [vmem:[%s302 + $0x50] sm:$0xff]
                %317 = vst [vmem:[%s303 + $0x30] sm:$0xff] %v316
                %v318 = vld [vmem:[%s302 + $0x58] sm:$0xff]
                %319 = vst [vmem:[%s303 + $0x38] sm:$0xff] %v318
                %v320 = vld [vmem:[%s302 + $0x80] sm:$0xff]
                %321 = vst [vmem:[%s303 + $0x40] sm:$0xff] %v320
                %v322 = vld [vmem:[%s302 + $0x88] sm:$0xff]
                %323 = vst [vmem:[%s303 + $0x48] sm:$0xff] %v322
                %v324 = vld [vmem:[%s302 + $0x90] sm:$0xff]
                %325 = vst [vmem:[%s303 + $0x50] sm:$0xff] %v324
                %v326 = vld [vmem:[%s302 + $0x98] sm:$0xff]
                %327 = vst [vmem:[%s303 + $0x58] sm:$0xff] %v326
                %v328 = vld [vmem:[%s302 + $0xc0] sm:$0xff]
                %329 = vst [vmem:[%s303 + $0x60] sm:$0xff] %v328
                %v330 = vld [vmem:[%s302 + $0xc8] sm:$0xff]
                %331 = vst [vmem:[%s303 + $0x68] sm:$0xff] %v330
                %v332 = vld [vmem:[%s302 + $0xd0] sm:$0xff]
                %333 = vst [vmem:[%s303 + $0x70] sm:$0xff] %v332
                %v334 = vld [vmem:[%s302 + $0xd8] sm:$0xff]
                %335 = vst [vmem:[%s303 + $0x78] sm:$0xff] %v334
                %v336 = vld [vmem:[%s302 + $0x100] sm:$0xff]
                %337 = vst [vmem:[%s303 + $0x80] sm:$0xff] %v336
                %v338 = vld [vmem:[%s302 + $0x108] sm:$0xff]
                %339 = vst [vmem:[%s303 + $0x88] sm:$0xff] %v338
                %v340 = vld [vmem:[%s302 + $0x110] sm:$0xff]
                %341 = vst [vmem:[%s303 + $0x90] sm:$0xff] %v340
                %v342 = vld [vmem:[%s302 + $0x118] sm:$0xff]
                %343 = vst [vmem:[%s303 + $0x98] sm:$0xff] %v342
                %v344 = vld [vmem:[%s302 + $0x140] sm:$0xff]
                %345 = vst [vmem:[%s303 + $0xa0] sm:$0xff] %v344
                %v346 = vld [vmem:[%s302 + $0x148] sm:$0xff]
                %347 = vst [vmem:[%s303 + $0xa8] sm:$0xff] %v346
                %v348 = vld [vmem:[%s302 + $0x150] sm:$0xff]
                %349 = vst [vmem:[%s303 + $0xb0] sm:$0xff] %v348
                %v350 = vld [vmem:[%s302 + $0x158] sm:$0xff]
                %351 = vst [vmem:[%s303 + $0xb8] sm:$0xff] %v350
                %v352 = vld [vmem:[%s302 + $0x180] sm:$0xff]
                %353 = vst [vmem:[%s303 + $0xc0] sm:$0xff] %v352
                %v354 = vld [vmem:[%s302 + $0x188] sm:$0xff]
                %355 = vst [vmem:[%s303 + $0xc8] sm:$0xff] %v354
                %v356 = vld [vmem:[%s302 + $0x190] sm:$0xff]
                %357 = vst [vmem:[%s303 + $0xd0] sm:$0xff] %v356
                %v358 = vld [vmem:[%s302 + $0x198] sm:$0xff]
                %359 = vst [vmem:[%s303 + $0xd8] sm:$0xff] %v358
                %v360 = vld [vmem:[%s302 + $0x1c0] sm:$0xff]
                %361 = vst [vmem:[%s303 + $0xe0] sm:$0xff] %v360
                %v362 = vld [vmem:[%s302 + $0x1c8] sm:$0xff]
                %363 = vst [vmem:[%s303 + $0xe8] sm:$0xff] %v362
                %v364 = vld [vmem:[%s302 + $0x1d0] sm:$0xff]
                %365 = vst [vmem:[%s303 + $0xf0] sm:$0xff] %v364
                %v366 = vld [vmem:[%s302 + $0x1d8] sm:$0xff]
                %367 = vst [vmem:[%s303 + $0xf8] sm:$0xff] %v366
                %v368 = vld [vmem:[%s302 + $0x200] sm:$0xff]
                %369 = vst [vmem:[%s303 + $0x100] sm:$0xff] %v368
                %v370 = vld [vmem:[%s302 + $0x208] sm:$0xff]
                %371 = vst [vmem:[%s303 + $0x108] sm:$0xff] %v370
                %v372 = vld [vmem:[%s302 + $0x210] sm:$0xff]
                %373 = vst [vmem:[%s303 + $0x110] sm:$0xff] %v372
                %v374 = vld [vmem:[%s302 + $0x218] sm:$0xff]
                %375 = vst [vmem:[%s303 + $0x118] sm:$0xff] %v374
                %v376 = vld [vmem:[%s302 + $0x240] sm:$0xff]
                %377 = vst [vmem:[%s303 + $0x120] sm:$0xff] %v376
                %v378 = vld [vmem:[%s302 + $0x248] sm:$0xff]
                %379 = vst [vmem:[%s303 + $0x128] sm:$0xff] %v378
                %v380 = vld [vmem:[%s302 + $0x250] sm:$0xff]
                %381 = vst [vmem:[%s303 + $0x130] sm:$0xff] %v380
                %v382 = vld [vmem:[%s302 + $0x258] sm:$0xff]
                %383 = vst [vmem:[%s303 + $0x138] sm:$0xff] %v382
                %v384 = vld [vmem:[%s302 + $0x280] sm:$0xff]
                %385 = vst [vmem:[%s303 + $0x140] sm:$0xff] %v384
                %v386 = vld [vmem:[%s302 + $0x288] sm:$0xff]
                %387 = vst [vmem:[%s303 + $0x148] sm:$0xff] %v386
                %v388 = vld [vmem:[%s302 + $0x290] sm:$0xff]
                %389 = vst [vmem:[%s303 + $0x150] sm:$0xff] %v388
                %v390 = vld [vmem:[%s302 + $0x298] sm:$0xff]
                %391 = vst [vmem:[%s303 + $0x158] sm:$0xff] %v390
                %v392 = vld [vmem:[%s302 + $0x2c0] sm:$0xff]
                %393 = vst [vmem:[%s303 + $0x160] sm:$0xff] %v392
                %v394 = vld [vmem:[%s302 + $0x2c8] sm:$0xff]
                %395 = vst [vmem:[%s303 + $0x168] sm:$0xff] %v394
                %v396 = vld [vmem:[%s302 + $0x2d0] sm:$0xff]
                %397 = vst [vmem:[%s303 + $0x170] sm:$0xff] %v396
                %v398 = vld [vmem:[%s302 + $0x2d8] sm:$0xff]
                %399 = vst [vmem:[%s303 + $0x178] sm:$0xff] %v398
                %v400 = vld [vmem:[%s302 + $0x300] sm:$0xff]
                %401 = vst [vmem:[%s303 + $0x180] sm:$0xff] %v400
                %v402 = vld [vmem:[%s302 + $0x308] sm:$0xff]
                %403 = vst [vmem:[%s303 + $0x188] sm:$0xff] %v402
                %v404 = vld [vmem:[%s302 + $0x310] sm:$0xff]
                %405 = vst [vmem:[%s303 + $0x190] sm:$0xff] %v404
                %v406 = vld [vmem:[%s302 + $0x318] sm:$0xff]
                %407 = vst [vmem:[%s303 + $0x198] sm:$0xff] %v406
                %v408 = vld [vmem:[%s302 + $0x340] sm:$0xff]
                %409 = vst [vmem:[%s303 + $0x1a0] sm:$0xff] %v408
                %v410 = vld [vmem:[%s302 + $0x348] sm:$0xff]
                %411 = vst [vmem:[%s303 + $0x1a8] sm:$0xff] %v410
                %v412 = vld [vmem:[%s302 + $0x350] sm:$0xff]
                %413 = vst [vmem:[%s303 + $0x1b0] sm:$0xff] %v412
                %v414 = vld [vmem:[%s302 + $0x358] sm:$0xff]
                %415 = vst [vmem:[%s303 + $0x1b8] sm:$0xff] %v414
                %v416 = vld [vmem:[%s302 + $0x380] sm:$0xff]
                %417 = vst [vmem:[%s303 + $0x1c0] sm:$0xff] %v416
                %v418 = vld [vmem:[%s302 + $0x388] sm:$0xff]
                %419 = vst [vmem:[%s303 + $0x1c8] sm:$0xff] %v418
                %v420 = vld [vmem:[%s302 + $0x390] sm:$0xff]
                %421 = vst [vmem:[%s303 + $0x1d0] sm:$0xff] %v420
                %v422 = vld [vmem:[%s302 + $0x398] sm:$0xff]
                %423 = vst [vmem:[%s303 + $0x1d8] sm:$0xff] %v422
                %v424 = vld [vmem:[%s302 + $0x3c0] sm:$0xff]
                %425 = vst [vmem:[%s303 + $0x1e0] sm:$0xff] %v424
                %v426 = vld [vmem:[%s302 + $0x3c8] sm:$0xff]
                %427 = vst [vmem:[%s303 + $0x1e8] sm:$0xff] %v426
                %v428 = vld [vmem:[%s302 + $0x3d0] sm:$0xff]
                %429 = vst [vmem:[%s303 + $0x1f0] sm:$0xff] %v428
                %v430 = vld [vmem:[%s302 + $0x3d8] sm:$0xff]
                %431 = vst [vmem:[%s303 + $0x1f8] sm:$0xff] %v430
              $region45: #{rnn_forward.1} parent=39 // loop_footer
                %s301 = sadd.s32 1, %s297
              $region46: #{rnn_forward.1} parent=39 // loop_footer_branch
                %296 = sbr.rel target = $region42
              $region47: #{rnn_forward.1} parent=39 // loop_exit
                _
            $region40: #{rnn_forward.1} parent=35 // pred_fallthru
              _
            // Predicated region
            $region48: #{rnn_forward.1} parent=35 // pred_check
              _
            $region49: #{rnn_forward.1} parent=35 // pred_check_branch
              %433 = sbr.rel target = $region51
            $region50: #{rnn_forward.1} parent=35 // pred_region
              _
            $region51: #{rnn_forward.1} parent=35 // pred_fallthru
              _
          $region36: #{rnn_forward.1} parent=31 // pred_fallthru
            _
          %434 = vnop
        $region32: #{rnn_forward.1} parent=27 // pred_fallthru
          _
        // Predicated region
        $region52: #{rnn_forward.1} parent=27 // pred_check
          %p435 = pneg %p99
        $region53: #{rnn_forward.1} parent=27 // pred_check_branch
          %437 = sbr.rel (%p435) target = $region55
        $region54: #{rnn_forward.1} parent=27 // pred_region
          %p438 = scmp.lt.s32.totalorder %s25, 1
          %s439 = scalar_select %p438, %s25, 1
          %s440 = smul.addr %s439, 8
          %s441 = scalar_lea.vmem %s2, %s440
        $region55: #{rnn_forward.1} parent=27 // pred_fallthru
          _
        // Predicated region
        $region56: #{rnn_forward.1} parent=27 // pred_check
          %p442 = pneg %p125
        $region57: #{rnn_forward.1} parent=27 // pred_check_branch
          %444 = sbr.rel (%p442) target = $region59
        $region58: #{rnn_forward.1} parent=27 // pred_region
          %p445 = scmp.lt.s32.totalorder %s25, 1
          %s446 = scalar_select %p445, %s25, 1
          %s447 = smul.addr %s446, 8
          %s448 = scalar_lea.vmem %s3, %s447
        $region59: #{rnn_forward.1} parent=27 // pred_fallthru
          _
      $region28: #{rnn_forward.1} parent=5 // pred_fallthru
        _
      %p449 = scmp.le.s32.totalorder 1, %s18
      %p450 = scmp.lt.s32.totalorder %s18, 9
      %p451 = pnand %p449, %p450
      %p452 = pneg %p451
      // Predicated region
      $region60: #{rnn_forward.1} parent=5 // pred_check
        _
      $region61: #{rnn_forward.1} parent=5 // pred_check_branch
        %454 = sbr.rel (%p451) target = $region63
      $region62: #{rnn_forward.1} parent=5 // pred_region
        %s455 = ssub.s32 %s18, 1
        %s456 = sand.u32 %s45, 1
        %s457 = sand.u32 %s45, 1
        %s458 = smul.addr %s457, 512
        %s459 = scalar_lea.vmem [#allocation2], %s458
        // Predicated region
        $region64: #{rnn_forward.1} parent=62 // pred_check
          %p460 = pneg %p58
        $region65: #{rnn_forward.1} parent=62 // pred_check_branch
          %462 = sbr.rel (%p460) target = $region67
        $region66: #{rnn_forward.1} parent=62 // pred_region
          _
        $region67: #{rnn_forward.1} parent=62 // pred_fallthru
          _
        %s463 = sand.u32 %s45, 1
        %s464 = sand.u32 %s45, 1
        %s465 = smul.addr %s464, 512
        %s466 = scalar_lea.vmem [#allocation2], %s465
        %p467 = pneg %p58
        %p468 = pneg %p55
        %p469 = pneg %p79
        %p470 = pneg %p76
        %p471 = scmp.lt.s32.totalorder %s27, 1
        %s472 = scalar_select %p471, %s27, 1
        %s473 = smul.addr %s472, 8
        %s474 = scalar_lea.vmem %s2, %s473
        %p475 = pneg %p105
        %p476 = pneg %p102
        %p477 = scmp.lt.s32.totalorder %s27, 1
        %s478 = scalar_select %p477, %s27, 1
        %s479 = smul.addr %s478, 8
        %s480 = scalar_lea.vmem %s3, %s479
        %p481 = pneg %p131
        %p482 = pneg %p128
        %p483 = pneg %p152
        %p484 = pneg %p149
        %p485 = pneg %p173
        %p486 = pneg %p170
        %p487 = pneg %p199
        %p488 = pneg %p196
        %s489 = sand.u32 %s186, 1
        %s490 = scalar_lea.sflag [#allocation4], %s489
        %s491 = sand.u32 %s186, 1
        %s492 = smul.addr %s491, 8
        %s493 = scalar_lea.vmem [#allocation3], %s492
        %p494 = pneg %p225
        %p495 = pneg %p222
        %p496 = scmp.lt.s32.totalorder %s27, 1
        %s497 = scalar_select %p496, %s27, 1
        %s498 = smul.addr %s497, 8
        %s499 = scalar_lea.vmem %s7, %s498
        %p500 = pneg %p251
        %p501 = pneg %p248
        %p502 = scmp.lt.s32.totalorder %s27, 1
        %s503 = scalar_select %p502, %s27, 1
        %s504 = smul.addr %s503, 8
        %s505 = scalar_lea.vmem %s8, %s504
        %s506 = smul.u32 16, %s28
        %p507 = scmp.lt.s32.totalorder %s27, 1
        %s508 = scalar_select %p507, %s27, 1
        %s509 = smul.addr %s508, 8
        %s510 = scalar_lea.vmem %s2, %s509
        %p511 = scmp.lt.s32.totalorder %s27, 1
        %s512 = scalar_select %p511, %s27, 1
        %s513 = smul.addr %s512, 8
        %s514 = scalar_lea.vmem %s3, %s513
        %p515 = scmp.lt.s32.totalorder %s27, 1
        %s516 = scalar_select %p515, %s27, 1
        %s517 = smul.addr %s516, 8
        %s518 = scalar_lea.vmem %s7, %s517
        %p519 = scmp.lt.s32.totalorder %s27, 1
        %s520 = scalar_select %p519, %s27, 1
        %s521 = smul.addr %s520, 8
        %s522 = scalar_lea.vmem %s8, %s521
        %p524 = scmp.eq.s32.totalorder %s28, 0
        // Predicated region
        $region68: #{rnn_forward.1} parent=62 // pred_check
          %p525 = pneg %p524
        $region69: #{rnn_forward.1} parent=62 // pred_check_branch
          %527 = sbr.rel (%p525) target = $region71
        $region70: #{rnn_forward.1} parent=62 // pred_region
          %v528 = vld [vmem:[%s510] sm:$0xff]
          %529 = vst [vmem:[%s518] sm:$0xff] %v528
          %v530 = vld [vmem:[%s514] sm:$0xff]
          %531 = vst [vmem:[%s522] sm:$0xff] %v530
        $region71: #{rnn_forward.1} parent=62 // pred_fallthru
          _
        %v532 = vld [vmem:[%s1] sm:$0xff]
        %v533 = vld [vmem:[%s1 + $0x8] sm:$0xff]
        %v534 = vld [vmem:[%s1 + $0x10] sm:$0xff]
        %v535 = vld [vmem:[%s1 + $0x18] sm:$0xff]
        %v536 = vld [vmem:[%s1 + $0x20] sm:$0xff]
        %v537 = vld [vmem:[%s1 + $0x28] sm:$0xff]
        %v538 = vld [vmem:[%s1 + $0x30] sm:$0xff]
        %v539 = vld [vmem:[%s1 + $0x38] sm:$0xff]
        %v540 = vld [vmem:[%s1 + $0x40] sm:$0xff]
        %v541 = vld [vmem:[%s1 + $0x48] sm:$0xff]
        %v542 = vld [vmem:[%s1 + $0x50] sm:$0xff]
        %v543 = vld [vmem:[%s1 + $0x58] sm:$0xff]
        %v544 = vld [vmem:[%s1 + $0x60] sm:$0xff]
        %v545 = vld [vmem:[%s1 + $0x68] sm:$0xff]
        %v546 = vld [vmem:[%s1 + $0x70] sm:$0xff]
        %v547 = vld [vmem:[%s1 + $0x78] sm:$0xff]
        %v548 = vld [vmem:[%s1 + $0x80] sm:$0xff]
        %v549 = vld [vmem:[%s1 + $0x88] sm:$0xff]
        %v550 = vld [vmem:[%s1 + $0x90] sm:$0xff]
        %v551 = vld [vmem:[%s1 + $0x98] sm:$0xff]
        %v552 = vld [vmem:[%s1 + $0xa0] sm:$0xff]
        %v553 = vld [vmem:[%s1 + $0xa8] sm:$0xff]
        %v554 = vld [vmem:[%s1 + $0xb0] sm:$0xff]
        %v555 = vld [vmem:[%s1 + $0xb8] sm:$0xff]
        %v556 = vld [vmem:[%s1 + $0xc0] sm:$0xff]
        %v557 = vld [vmem:[%s1 + $0xc8] sm:$0xff]
        %v558 = vld [vmem:[%s1 + $0xd0] sm:$0xff]
        %v559 = vld [vmem:[%s1 + $0xd8] sm:$0xff]
        %v560 = vld [vmem:[%s1 + $0xe0] sm:$0xff]
        %v561 = vld [vmem:[%s1 + $0xe8] sm:$0xff]
        %v562 = vld [vmem:[%s1 + $0xf0] sm:$0xff]
        %v563 = vld [vmem:[%s1 + $0xf8] sm:$0xff]
        %v564 = vld [vmem:[%s518] sm:$0xff]
        %v565 = vld [vmem:[%s522] sm:$0xff]
        %v566 = vld [vmem:[%s459] sm:$0xff]
        %v567 = vld [vmem:[%s459 + $0x8] sm:$0xff]
        %v568 = vld [vmem:[%s459 + $0x10] sm:$0xff]
        %v569 = vld [vmem:[%s459 + $0x18] sm:$0xff]
        %v570 = vpack.c.bf16 %v564, %v564
        %v603 = vunpack.c.l.b16 %v532
        %v604 = vunpack.c.h.b16 %v532
        %v605 = vunpack.c.l.b16 %v533
        %v606 = vunpack.c.h.b16 %v533
        %v607 = vunpack.c.l.b16 %v534
        %v608 = vunpack.c.h.b16 %v534
        %v609 = vunpack.c.l.b16 %v535
        %v610 = vunpack.c.h.b16 %v535
        %v611 = vunpack.c.l.b16 %v536
        %v612 = vunpack.c.h.b16 %v536
        %v613 = vunpack.c.l.b16 %v537
        %v614 = vunpack.c.h.b16 %v537
        %v615 = vunpack.c.l.b16 %v538
        %v616 = vunpack.c.h.b16 %v538
        %v617 = vunpack.c.l.b16 %v539
        %v618 = vunpack.c.h.b16 %v539
        %v619 = vunpack.c.l.b16 %v540
        %v620 = vunpack.c.h.b16 %v540
        %v621 = vunpack.c.l.b16 %v541
        %v622 = vunpack.c.h.b16 %v541
        %v623 = vunpack.c.l.b16 %v542
        %v624 = vunpack.c.h.b16 %v542
        %v625 = vunpack.c.l.b16 %v543
        %v626 = vunpack.c.h.b16 %v543
        %v627 = vunpack.c.l.b16 %v544
        %v628 = vunpack.c.h.b16 %v544
        %v629 = vunpack.c.l.b16 %v545
        %v630 = vunpack.c.h.b16 %v545
        %v631 = vunpack.c.l.b16 %v546
        %v632 = vunpack.c.h.b16 %v546
        %v633 = vunpack.c.l.b16 %v547
        %v634 = vunpack.c.h.b16 %v547
        %v635 = vunpack.c.l.b16 %v548
        %v636 = vunpack.c.h.b16 %v548
        %v637 = vunpack.c.l.b16 %v549
        %v638 = vunpack.c.h.b16 %v549
        %v639 = vunpack.c.l.b16 %v550
        %v640 = vunpack.c.h.b16 %v550
        %v641 = vunpack.c.l.b16 %v551
        %v642 = vunpack.c.h.b16 %v551
        %v643 = vunpack.c.l.b16 %v552
        %v644 = vunpack.c.h.b16 %v552
        %v645 = vunpack.c.l.b16 %v553
        %v646 = vunpack.c.h.b16 %v553
        %v647 = vunpack.c.l.b16 %v554
        %v648 = vunpack.c.h.b16 %v554
        %v649 = vunpack.c.l.b16 %v555
        %v650 = vunpack.c.h.b16 %v555
        %v651 = vunpack.c.l.b16 %v556
        %v652 = vunpack.c.h.b16 %v556
        %v653 = vunpack.c.l.b16 %v557
        %v654 = vunpack.c.h.b16 %v557
        %v655 = vunpack.c.l.b16 %v558
        %v656 = vunpack.c.h.b16 %v558
        %v657 = vunpack.c.l.b16 %v559
        %v658 = vunpack.c.h.b16 %v559
        %v659 = vunpack.c.l.b16 %v560
        %v660 = vunpack.c.h.b16 %v560
        %v661 = vunpack.c.l.b16 %v561
        %v662 = vunpack.c.h.b16 %v561
        %v663 = vunpack.c.l.b16 %v562
        %v664 = vunpack.c.h.b16 %v562
        %v665 = vunpack.c.l.b16 %v563
        %v666 = vunpack.c.h.b16 %v563
        %v667 = vpack.c.b16 %v607, %v603
        %v668 = vpack.c.b16 %v608, %v604
        %v669 = vpack.c.b16 %v609, %v605
        %v670 = vpack.c.b16 %v610, %v606
        %v671 = vpack.c.b16 %v615, %v611
        %v672 = vpack.c.b16 %v616, %v612
        %v673 = vpack.c.b16 %v617, %v613
        %v674 = vpack.c.b16 %v618, %v614
        %v675 = vpack.c.b16 %v623, %v619
        %v676 = vpack.c.b16 %v624, %v620
        %v677 = vpack.c.b16 %v625, %v621
        %v678 = vpack.c.b16 %v626, %v622
        %v679 = vpack.c.b16 %v631, %v627
        %v680 = vpack.c.b16 %v632, %v628
        %v681 = vpack.c.b16 %v633, %v629
        %v682 = vpack.c.b16 %v634, %v630
        %v683 = vpack.c.b16 %v639, %v635
        %v684 = vpack.c.b16 %v640, %v636
        %v685 = vpack.c.b16 %v641, %v637
        %v686 = vpack.c.b16 %v642, %v638
        %v687 = vpack.c.b16 %v647, %v643
        %v688 = vpack.c.b16 %v648, %v644
        %v689 = vpack.c.b16 %v649, %v645
        %v690 = vpack.c.b16 %v650, %v646
        %v691 = vpack.c.b16 %v655, %v651
        %v692 = vpack.c.b16 %v656, %v652
        %v693 = vpack.c.b16 %v657, %v653
        %v694 = vpack.c.b16 %v658, %v654
        %v695 = vpack.c.b16 %v663, %v659
        %v696 = vpack.c.b16 %v664, %v660
        %v697 = vpack.c.b16 %v665, %v661
        %v698 = vpack.c.b16 %v666, %v662
        %731 = vmatprep.subr.bf16.mxu0 %v668
        %732 = vmatpush1.bf16.msra.mxu0 %v667
        %733 = vmatprep.subr.bf16.mxu0 %v672
        %734 = vmatpush1.bf16.msra.mxu0 %v671
        %735 = vmatprep.subr.bf16.mxu0 %v676
        %736 = vmatpush1.bf16.msra.mxu0 %v675
        %737 = vmatprep.subr.bf16.mxu0 %v680
        %738 = vmatpush1.bf16.msra.mxu0 %v679
        %739 = vmatprep.subr.bf16.mxu0 %v684
        %740 = vmatpush1.bf16.msra.mxu0 %v683
        %741 = vmatprep.subr.bf16.mxu0 %v688
        %742 = vmatpush1.bf16.msra.mxu0 %v687
        %743 = vmatprep.subr.bf16.mxu0 %v692
        %744 = vmatpush1.bf16.msra.mxu0 %v691
        %745 = vmatprep.subr.bf16.mxu0 %v696
        %746 = vmatpush1.bf16.msra.mxu0 %v695
        %747 = vmatprep.subr.bf16.mxu0 0
        %748 = vmatpush1.bf16.msra.mxu0 0
        %749 = vmatprep.subr.bf16.mxu0 0
        %750 = vmatpush1.bf16.msra.mxu0 0
        %751 = vmatprep.subr.bf16.mxu0 0
        %752 = vmatpush1.bf16.msra.mxu0 0
        %753 = vmatprep.subr.bf16.mxu0 0
        %754 = vmatpush1.bf16.msra.mxu0 0
        %755 = vmatprep.subr.bf16.mxu0 0
        %756 = vmatpush1.bf16.msra.mxu0 0
        %757 = vmatprep.subr.bf16.mxu0 0
        %758 = vmatpush1.bf16.msra.mxu0 0
        %759 = vmatprep.subr.bf16.mxu0 0
        %760 = vmatpush1.bf16.msra.mxu0 0
        %761 = vmatprep.subr.bf16.mxu0 0
        %762 = vmatpush1.bf16.msra.mxu0 0
        %763 = vmatprep.mubr.bf16.mxu0 0
        %764 = vmatmul.mubr.bf16.gmra.mrb[0].mxu0 %v570
        %v765 = vpop.f32.mrb[0].mxu0
        %v766 = vadd.f32 0.0, %v765
        %v767 = vpop.f32.mrb[0].mxu0
        %v768 = vadd.f32 0.0, %v767
        %v769 = vpop.f32.mrb[0].mxu0
        %v770 = vpop.f32.mrb[0].mxu0
        %771 = vdwg.mxu0
        %772 = vmatprep.subr.bf16.mxu0 %v670
        %773 = vmatpush1.bf16.msra.mxu0 %v669
        %774 = vmatprep.subr.bf16.mxu0 %v674
        %775 = vmatpush1.bf16.msra.mxu0 %v673
        %776 = vmatprep.subr.bf16.mxu0 %v678
        %777 = vmatpush1.bf16.msra.mxu0 %v677
        %778 = vmatprep.subr.bf16.mxu0 %v682
        %779 = vmatpush1.bf16.msra.mxu0 %v681
        %780 = vmatprep.subr.bf16.mxu0 %v686
        %781 = vmatpush1.bf16.msra.mxu0 %v685
        %782 = vmatprep.subr.bf16.mxu0 %v690
        %783 = vmatpush1.bf16.msra.mxu0 %v689
        %784 = vmatprep.subr.bf16.mxu0 %v694
        %785 = vmatpush1.bf16.msra.mxu0 %v693
        %786 = vmatprep.subr.bf16.mxu0 %v698
        %787 = vmatpush1.bf16.msra.mxu0 %v697
        %788 = vmatprep.subr.bf16.mxu0 0
        %789 = vmatpush1.bf16.msra.mxu0 0
        %790 = vmatprep.subr.bf16.mxu0 0
        %791 = vmatpush1.bf16.msra.mxu0 0
        %792 = vmatprep.subr.bf16.mxu0 0
        %793 = vmatpush1.bf16.msra.mxu0 0
        %794 = vmatprep.subr.bf16.mxu0 0
        %795 = vmatpush1.bf16.msra.mxu0 0
        %796 = vmatprep.subr.bf16.mxu0 0
        %797 = vmatpush1.bf16.msra.mxu0 0
        %798 = vmatprep.subr.bf16.mxu0 0
        %799 = vmatpush1.bf16.msra.mxu0 0
        %800 = vmatprep.subr.bf16.mxu0 0
        %801 = vmatpush1.bf16.msra.mxu0 0
        %802 = vmatprep.subr.bf16.mxu0 0
        %803 = vmatpush1.bf16.msra.mxu0 0
        %804 = vmatprep.mubr.bf16.mxu0 0
        %805 = vmatmul.mubr.bf16.gmra.mrb[0].mxu0 %v570
        %v806 = vpop.f32.mrb[0].mxu0
        %v807 = vadd.f32 0.0, %v806
        %v808 = vpop.f32.mrb[0].mxu0
        %v809 = vadd.f32 0.0, %v808
        %v810 = vpop.f32.mrb[0].mxu0
        %v811 = vpop.f32.mrb[0].mxu0
        %812 = vdwg.mxu0
        %v813 = vadd.f32 %v566, %v766
        %v814 = vadd.f32 %v567, %v768
        %v815 = vadd.f32 %v568, %v807
        %v816 = vadd.f32 %v569, %v809
        %v817 = vxor.u32 %v813, 2147483648
        %v818 = vmul.f32 %v817, 1.442695
        %v819 = vpow.pop %v818
        %v820 = vadd.f32 %v819, 1.0
        %v821 = vrcp.pop %v820
        %v822 = vmul.f32 1.0, %v821
        %v823 = vxor.u32 %v814, 2147483648
        %v824 = vmul.f32 %v823, 1.442695
        %v825 = vpow.pop %v824
        %v826 = vadd.f32 %v825, 1.0
        %v827 = vrcp.pop %v826
        %v828 = vmul.f32 1.0, %v827
        %v829 = vtanh.pop %v815
        %v830 = vxor.u32 %v816, 2147483648
        %v831 = vmul.f32 %v830, 1.442695
        %v832 = vpow.pop %v831
        %v833 = vadd.f32 %v832, 1.0
        %v834 = vrcp.pop %v833
        %v835 = vmul.f32 1.0, %v834
        %v836 = vmul.f32 %v828, %v565
        %v837 = vmul.f32 %v822, %v829
        %v838 = vadd.f32 %v836, %v837
        %v839 = vtanh.pop %v838
        %v840 = vmul.f32 %v835, %v839
        %s841 = scalar_lea.vmem %s459, 32 [#allocation2]
        %v842 = vld [vmem:[%s841] sm:$0xff]
        %v843 = vld [vmem:[%s841 + $0x8] sm:$0xff]
        %v844 = vld [vmem:[%s841 + $0x10] sm:$0xff]
        %v845 = vld [vmem:[%s841 + $0x18] sm:$0xff]
        %v846 = vpack.c.bf16 %v840, %v840
        %847 = vmatprep.subr.bf16.mxu0 %v668
        %848 = vmatpush1.bf16.msra.mxu0 %v667
        %849 = vmatprep.subr.bf16.mxu0 %v672
        %850 = vmatpush1.bf16.msra.mxu0 %v671
        %851 = vmatprep.subr.bf16.mxu0 %v676
        %852 = vmatpush1.bf16.msra.mxu0 %v675
        %853 = vmatprep.subr.bf16.mxu0 %v680
        %854 = vmatpush1.bf16.msra.mxu0 %v679
        %855 = vmatprep.subr.bf16.mxu0 %v684
        %856 = vmatpush1.bf16.msra.mxu0 %v683
        %857 = vmatprep.subr.bf16.mxu0 %v688
        %858 = vmatpush1.bf16.msra.mxu0 %v687
        %859 = vmatprep.subr.bf16.mxu0 %v692
        %860 = vmatpush1.bf16.msra.mxu0 %v691
        %861 = vmatprep.subr.bf16.mxu0 %v696
        %862 = vmatpush1.bf16.msra.mxu0 %v695
        %863 = vmatprep.subr.bf16.mxu0 0
        %864 = vmatpush1.bf16.msra.mxu0 0
        %865 = vmatprep.subr.bf16.mxu0 0
        %866 = vmatpush1.bf16.msra.mxu0 0
        %867 = vmatprep.subr.bf16.mxu0 0
        %868 = vmatpush1.bf16.msra.mxu0 0
        %869 = vmatprep.subr.bf16.mxu0 0
        %870 = vmatpush1.bf16.msra.mxu0 0
        %871 = vmatprep.subr.bf16.mxu0 0
        %872 = vmatpush1.bf16.msra.mxu0 0
        %873 = vmatprep.subr.bf16.mxu0 0
        %874 = vmatpush1.bf16.msra.mxu0 0
        %875 = vmatprep.subr.bf16.mxu0 0
        %876 = vmatpush1.bf16.msra.mxu0 0
        %877 = vmatprep.subr.bf16.mxu0 0
        %878 = vmatpush1.bf16.msra.mxu0 0
        %879 = vmatprep.mubr.bf16.mxu0 0
        %880 = vmatmul.mubr.bf16.gmra.mrb[0].mxu0 %v846
        %v881 = vpop.f32.mrb[0].mxu0
        %v882 = vadd.f32 0.0, %v881
        %v883 = vpop.f32.mrb[0].mxu0
        %v884 = vadd.f32 0.0, %v883
        %v885 = vpop.f32.mrb[0].mxu0
        %v886 = vpop.f32.mrb[0].mxu0
        %887 = vdwg.mxu0
        %888 = vmatprep.subr.bf16.mxu0 %v670
        %889 = vmatpush1.bf16.msra.mxu0 %v669
        %890 = vmatprep.subr.bf16.mxu0 %v674
        %891 = vmatpush1.bf16.msra.mxu0 %v673
        %892 = vmatprep.subr.bf16.mxu0 %v678
        %893 = vmatpush1.bf16.msra.mxu0 %v677
        %894 = vmatprep.subr.bf16.mxu0 %v682
        %895 = vmatpush1.bf16.msra.mxu0 %v681
        %896 = vmatprep.subr.bf16.mxu0 %v686
        %897 = vmatpush1.bf16.msra.mxu0 %v685
        %898 = vmatprep.subr.bf16.mxu0 %v690
        %899 = vmatpush1.bf16.msra.mxu0 %v689
        %900 = vmatprep.subr.bf16.mxu0 %v694
        %901 = vmatpush1.bf16.msra.mxu0 %v693
        %902 = vmatprep.subr.bf16.mxu0 %v698
        %903 = vmatpush1.bf16.msra.mxu0 %v697
        %904 = vmatprep.subr.bf16.mxu0 0
        %905 = vmatpush1.bf16.msra.mxu0 0
        %906 = vmatprep.subr.bf16.mxu0 0
        %907 = vmatpush1.bf16.msra.mxu0 0
        %908 = vmatprep.subr.bf16.mxu0 0
        %909 = vmatpush1.bf16.msra.mxu0 0
        %910 = vmatprep.subr.bf16.mxu0 0
        %911 = vmatpush1.bf16.msra.mxu0 0
        %912 = vmatprep.subr.bf16.mxu0 0
        %913 = vmatpush1.bf16.msra.mxu0 0
        %914 = vmatprep.subr.bf16.mxu0 0
        %915 = vmatpush1.bf16.msra.mxu0 0
        %916 = vmatprep.subr.bf16.mxu0 0
        %917 = vmatpush1.bf16.msra.mxu0 0
        %918 = vmatprep.subr.bf16.mxu0 0
        %919 = vmatpush1.bf16.msra.mxu0 0
        %920 = vmatprep.mubr.bf16.mxu0 0
        %921 = vmatmul.mubr.bf16.gmra.mrb[0].mxu0 %v846
        %v922 = vpop.f32.mrb[0].mxu0
        %v923 = vadd.f32 0.0, %v922
        %v924 = vpop.f32.mrb[0].mxu0
        %v925 = vadd.f32 0.0, %v924
        %v926 = vpop.f32.mrb[0].mxu0
        %v927 = vpop.f32.mrb[0].mxu0
        %928 = vdwg.mxu0
        %v929 = vadd.f32 %v842, %v882
        %v930 = vadd.f32 %v843, %v884
        %v931 = vadd.f32 %v844, %v923
        %v932 = vadd.f32 %v845, %v925
        %v933 = vxor.u32 %v929, 2147483648
        %v934 = vmul.f32 %v933, 1.442695
        %v935 = vpow.pop %v934
        %v936 = vadd.f32 %v935, 1.0
        %v937 = vrcp.pop %v936
        %v938 = vmul.f32 1.0, %v937
        %v939 = vxor.u32 %v930, 2147483648
        %v940 = vmul.f32 %v939, 1.442695
        %v941 = vpow.pop %v940
        %v942 = vadd.f32 %v941, 1.0
        %v943 = vrcp.pop %v942
        %v944 = vmul.f32 1.0, %v943
        %v945 = vtanh.pop %v931
        %v946 = vxor.u32 %v932, 2147483648
        %v947 = vmul.f32 %v946, 1.442695
        %v948 = vpow.pop %v947
        %v949 = vadd.f32 %v948, 1.0
        %v950 = vrcp.pop %v949
        %v951 = vmul.f32 1.0, %v950
        %v952 = vmul.f32 %v944, %v838
        %v953 = vmul.f32 %v938, %v945
        %v954 = vadd.f32 %v952, %v953
        %v955 = vtanh.pop %v954
        %v956 = vmul.f32 %v951, %v955
        %s957 = scalar_lea.vmem %s459, 64 [#allocation2]
        %v958 = vld [vmem:[%s957] sm:$0xff]
        %v959 = vld [vmem:[%s957 + $0x8] sm:$0xff]
        %v960 = vld [vmem:[%s957 + $0x10] sm:$0xff]
        %v961 = vld [vmem:[%s957 + $0x18] sm:$0xff]
        %v962 = vpack.c.bf16 %v956, %v956
        %963 = vmatprep.subr.bf16.mxu0 %v668
        %964 = vmatpush1.bf16.msra.mxu0 %v667
        %965 = vmatprep.subr.bf16.mxu0 %v672
        %966 = vmatpush1.bf16.msra.mxu0 %v671
        %967 = vmatprep.subr.bf16.mxu0 %v676
        %968 = vmatpush1.bf16.msra.mxu0 %v675
        %969 = vmatprep.subr.bf16.mxu0 %v680
        %970 = vmatpush1.bf16.msra.mxu0 %v679
        %971 = vmatprep.subr.bf16.mxu0 %v684
        %972 = vmatpush1.bf16.msra.mxu0 %v683
        %973 = vmatprep.subr.bf16.mxu0 %v688
        %974 = vmatpush1.bf16.msra.mxu0 %v687
        %975 = vmatprep.subr.bf16.mxu0 %v692
        %976 = vmatpush1.bf16.msra.mxu0 %v691
        %977 = vmatprep.subr.bf16.mxu0 %v696
        %978 = vmatpush1.bf16.msra.mxu0 %v695
        %979 = vmatprep.subr.bf16.mxu0 0
        %980 = vmatpush1.bf16.msra.mxu0 0
        %981 = vmatprep.subr.bf16.mxu0 0
        %982 = vmatpush1.bf16.msra.mxu0 0
        %983 = vmatprep.subr.bf16.mxu0 0
        %984 = vmatpush1.bf16.msra.mxu0 0
        %985 = vmatprep.subr.bf16.mxu0 0
        %986 = vmatpush1.bf16.msra.mxu0 0
        %987 = vmatprep.subr.bf16.mxu0 0
        %988 = vmatpush1.bf16.msra.mxu0 0
        %989 = vmatprep.subr.bf16.mxu0 0
        %990 = vmatpush1.bf16.msra.mxu0 0
        %991 = vmatprep.subr.bf16.mxu0 0
        %992 = vmatpush1.bf16.msra.mxu0 0
        %993 = vmatprep.subr.bf16.mxu0 0
        %994 = vmatpush1.bf16.msra.mxu0 0
        %995 = vmatprep.mubr.bf16.mxu0 0
        %996 = vmatmul.mubr.bf16.gmra.mrb[0].mxu0 %v962
        %v997 = vpop.f32.mrb[0].mxu0
        %v998 = vadd.f32 0.0, %v997
        %v999 = vpop.f32.mrb[0].mxu0
        %v1000 = vadd.f32 0.0, %v999
        %v1001 = vpop.f32.mrb[0].mxu0
        %v1002 = vpop.f32.mrb[0].mxu0
        %1003 = vdwg.mxu0
        %1004 = vmatprep.subr.bf16.mxu0 %v670
        %1005 = vmatpush1.bf16.msra.mxu0 %v669
        %1006 = vmatprep.subr.bf16.mxu0 %v674
        %1007 = vmatpush1.bf16.msra.mxu0 %v673
        %1008 = vmatprep.subr.bf16.mxu0 %v678
        %1009 = vmatpush1.bf16.msra.mxu0 %v677
        %1010 = vmatprep.subr.bf16.mxu0 %v682
        %1011 = vmatpush1.bf16.msra.mxu0 %v681
        %1012 = vmatprep.subr.bf16.mxu0 %v686
        %1013 = vmatpush1.bf16.msra.mxu0 %v685
        %1014 = vmatprep.subr.bf16.mxu0 %v690
        %1015 = vmatpush1.bf16.msra.mxu0 %v689
        %1016 = vmatprep.subr.bf16.mxu0 %v694
        %1017 = vmatpush1.bf16.msra.mxu0 %v693
        %1018 = vmatprep.subr.bf16.mxu0 %v698
        %1019 = vmatpush1.bf16.msra.mxu0 %v697
        %1020 = vmatprep.subr.bf16.mxu0 0
        %1021 = vmatpush1.bf16.msra.mxu0 0
        %1022 = vmatprep.subr.bf16.mxu0 0
        %1023 = vmatpush1.bf16.msra.mxu0 0
        %1024 = vmatprep.subr.bf16.mxu0 0
        %1025 = vmatpush1.bf16.msra.mxu0 0
        %1026 = vmatprep.subr.bf16.mxu0 0
        %1027 = vmatpush1.bf16.msra.mxu0 0
        %1028 = vmatprep.subr.bf16.mxu0 0
        %1029 = vmatpush1.bf16.msra.mxu0 0
        %1030 = vmatprep.subr.bf16.mxu0 0
        %1031 = vmatpush1.bf16.msra.mxu0 0
        %1032 = vmatprep.subr.bf16.mxu0 0
        %1033 = vmatpush1.bf16.msra.mxu0 0
        %1034 = vmatprep.subr.bf16.mxu0 0
        %1035 = vmatpush1.bf16.msra.mxu0 0
        %1036 = vmatprep.mubr.bf16.mxu0 0
        %1037 = vmatmul.mubr.bf16.gmra.mrb[0].mxu0 %v962
        %v1038 = vpop.f32.mrb[0].mxu0
        %v1039 = vadd.f32 0.0, %v1038
        %v1040 = vpop.f32.mrb[0].mxu0
        %v1041 = vadd.f32 0.0, %v1040
        %v1042 = vpop.f32.mrb[0].mxu0
        %v1043 = vpop.f32.mrb[0].mxu0
        %1044 = vdwg.mxu0
        %v1045 = vadd.f32 %v958, %v998
        %v1046 = vadd.f32 %v959, %v1000
        %v1047 = vadd.f32 %v960, %v1039
        %v1048 = vadd.f32 %v961, %v1041
        %v1049 = vxor.u32 %v1045, 2147483648
        %v1050 = vmul.f32 %v1049, 1.442695
        %v1051 = vpow.pop %v1050
        %v1052 = vadd.f32 %v1051, 1.0
        %v1053 = vrcp.pop %v1052
        %v1054 = vmul.f32 1.0, %v1053
        %v1055 = vxor.u32 %v1046, 2147483648
        %v1056 = vmul.f32 %v1055, 1.442695
        %v1057 = vpow.pop %v1056
        %v1058 = vadd.f32 %v1057, 1.0
        %v1059 = vrcp.pop %v1058
        %v1060 = vmul.f32 1.0, %v1059
        %v1061 = vtanh.pop %v1047
        %v1062 = vxor.u32 %v1048, 2147483648
        %v1063 = vmul.f32 %v1062, 1.442695
        %v1064 = vpow.pop %v1063
        %v1065 = vadd.f32 %v1064, 1.0
        %v1066 = vrcp.pop %v1065
        %v1067 = vmul.f32 1.0, %v1066
        %v1068 = vmul.f32 %v1060, %v954
        %v1069 = vmul.f32 %v1054, %v1061
        %v1070 = vadd.f32 %v1068, %v1069
        %v1071 = vtanh.pop %v1070
        %v1072 = vmul.f32 %v1067, %v1071
        %s1073 = scalar_lea.vmem %s459, 96 [#allocation2]
        %v1074 = vld [vmem:[%s1073] sm:$0xff]
        %v1075 = vld [vmem:[%s1073 + $0x8] sm:$0xff]
        %v1076 = vld [vmem:[%s1073 + $0x10] sm:$0xff]
        %v1077 = vld [vmem:[%s1073 + $0x18] sm:$0xff]
        %v1078 = vpack.c.bf16 %v1072, %v1072
        %1079 = vmatprep.subr.bf16.mxu0 %v668
        %1080 = vmatpush1.bf16.msra.mxu0 %v667
        %1081 = vmatprep.subr.bf16.mxu0 %v672
        %1082 = vmatpush1.bf16.msra.mxu0 %v671
        %1083 = vmatprep.subr.bf16.mxu0 %v676
        %1084 = vmatpush1.bf16.msra.mxu0 %v675
        %1085 = vmatprep.subr.bf16.mxu0 %v680
        %1086 = vmatpush1.bf16.msra.mxu0 %v679
        %1087 = vmatprep.subr.bf16.mxu0 %v684
        %1088 = vmatpush1.bf16.msra.mxu0 %v683
        %1089 = vmatprep.subr.bf16.mxu0 %v688
        %1090 = vmatpush1.bf16.msra.mxu0 %v687
        %1091 = vmatprep.subr.bf16.mxu0 %v692
        %1092 = vmatpush1.bf16.msra.mxu0 %v691
        %1093 = vmatprep.subr.bf16.mxu0 %v696
        %1094 = vmatpush1.bf16.msra.mxu0 %v695
        %1095 = vmatprep.subr.bf16.mxu0 0
        %1096 = vmatpush1.bf16.msra.mxu0 0
        %1097 = vmatprep.subr.bf16.mxu0 0
        %1098 = vmatpush1.bf16.msra.mxu0 0
        %1099 = vmatprep.subr.bf16.mxu0 0
        %1100 = vmatpush1.bf16.msra.mxu0 0
        %1101 = vmatprep.subr.bf16.mxu0 0
        %1102 = vmatpush1.bf16.msra.mxu0 0
        %1103 = vmatprep.subr.bf16.mxu0 0
        %1104 = vmatpush1.bf16.msra.mxu0 0
        %1105 = vmatprep.subr.bf16.mxu0 0
        %1106 = vmatpush1.bf16.msra.mxu0 0
        %1107 = vmatprep.subr.bf16.mxu0 0
        %1108 = vmatpush1.bf16.msra.mxu0 0
        %1109 = vmatprep.subr.bf16.mxu0 0
        %1110 = vmatpush1.bf16.msra.mxu0 0
        %1111 = vmatprep.mubr.bf16.mxu0 0
        %1112 = vmatmul.mubr.bf16.gmra.mrb[0].mxu0 %v1078
        %v1113 = vpop.f32.mrb[0].mxu0
        %v1114 = vadd.f32 0.0, %v1113
        %v1115 = vpop.f32.mrb[0].mxu0
        %v1116 = vadd.f32 0.0, %v1115
        %v1117 = vpop.f32.mrb[0].mxu0
        %v1118 = vpop.f32.mrb[0].mxu0
        %1119 = vdwg.mxu0
        %1120 = vmatprep.subr.bf16.mxu0 %v670
        %1121 = vmatpush1.bf16.msra.mxu0 %v669
        %1122 = vmatprep.subr.bf16.mxu0 %v674
        %1123 = vmatpush1.bf16.msra.mxu0 %v673
        %1124 = vmatprep.subr.bf16.mxu0 %v678
        %1125 = vmatpush1.bf16.msra.mxu0 %v677
        %1126 = vmatprep.subr.bf16.mxu0 %v682
        %1127 = vmatpush1.bf16.msra.mxu0 %v681
        %1128 = vmatprep.subr.bf16.mxu0 %v686
        %1129 = vmatpush1.bf16.msra.mxu0 %v685
        %1130 = vmatprep.subr.bf16.mxu0 %v690
        %1131 = vmatpush1.bf16.msra.mxu0 %v689
        %1132 = vmatprep.subr.bf16.mxu0 %v694
        %1133 = vmatpush1.bf16.msra.mxu0 %v693
        %1134 = vmatprep.subr.bf16.mxu0 %v698
        %1135 = vmatpush1.bf16.msra.mxu0 %v697
        %1136 = vmatprep.subr.bf16.mxu0 0
        %1137 = vmatpush1.bf16.msra.mxu0 0
        %1138 = vmatprep.subr.bf16.mxu0 0
        %1139 = vmatpush1.bf16.msra.mxu0 0
        %1140 = vmatprep.subr.bf16.mxu0 0
        %1141 = vmatpush1.bf16.msra.mxu0 0
        %1142 = vmatprep.subr.bf16.mxu0 0
        %1143 = vmatpush1.bf16.msra.mxu0 0
        %1144 = vmatprep.subr.bf16.mxu0 0
        %1145 = vmatpush1.bf16.msra.mxu0 0
        %1146 = vmatprep.subr.bf16.mxu0 0
        %1147 = vmatpush1.bf16.msra.mxu0 0
        %1148 = vmatprep.subr.bf16.mxu0 0
        %1149 = vmatpush1.bf16.msra.mxu0 0
        %1150 = vmatprep.subr.bf16.mxu0 0
        %1151 = vmatpush1.bf16.msra.mxu0 0
        %1152 = vmatprep.mubr.bf16.mxu0 0
        %1153 = vmatmul.mubr.bf16.gmra.mrb[0].mxu0 %v1078
        %v1154 = vpop.f32.mrb[0].mxu0
        %v1155 = vadd.f32 0.0, %v1154
        %v1156 = vpop.f32.mrb[0].mxu0
        %v1157 = vadd.f32 0.0, %v1156
        %v1158 = vpop.f32.mrb[0].mxu0
        %v1159 = vpop.f32.mrb[0].mxu0
        %1160 = vdwg.mxu0
        %v1161 = vadd.f32 %v1074, %v1114
        %v1162 = vadd.f32 %v1075, %v1116
        %v1163 = vadd.f32 %v1076, %v1155
        %v1164 = vadd.f32 %v1077, %v1157
        %v1165 = vxor.u32 %v1161, 2147483648
        %v1166 = vmul.f32 %v1165, 1.442695
        %v1167 = vpow.pop %v1166
        %v1168 = vadd.f32 %v1167, 1.0
        %v1169 = vrcp.pop %v1168
        %v1170 = vmul.f32 1.0, %v1169
        %v1171 = vxor.u32 %v1162, 2147483648
        %v1172 = vmul.f32 %v1171, 1.442695
        %v1173 = vpow.pop %v1172
        %v1174 = vadd.f32 %v1173, 1.0
        %v1175 = vrcp.pop %v1174
        %v1176 = vmul.f32 1.0, %v1175
        %v1177 = vtanh.pop %v1163
        %v1178 = vxor.u32 %v1164, 2147483648
        %v1179 = vmul.f32 %v1178, 1.442695
        %v1180 = vpow.pop %v1179
        %v1181 = vadd.f32 %v1180, 1.0
        %v1182 = vrcp.pop %v1181
        %v1183 = vmul.f32 1.0, %v1182
        %v1184 = vmul.f32 %v1176, %v1070
        %v1185 = vmul.f32 %v1170, %v1177
        %v1186 = vadd.f32 %v1184, %v1185
        %v1187 = vtanh.pop %v1186
        %v1188 = vmul.f32 %v1183, %v1187
        %s1189 = scalar_lea.vmem %s459, 128 [#allocation2]
        %v1190 = vld [vmem:[%s1189] sm:$0xff]
        %v1191 = vld [vmem:[%s1189 + $0x8] sm:$0xff]
        %v1192 = vld [vmem:[%s1189 + $0x10] sm:$0xff]
        %v1193 = vld [vmem:[%s1189 + $0x18] sm:$0xff]
        %v1194 = vpack.c.bf16 %v1188, %v1188
        %1195 = vmatprep.subr.bf16.mxu0 %v668
        %1196 = vmatpush1.bf16.msra.mxu0 %v667
        %1197 = vmatprep.subr.bf16.mxu0 %v672
        %1198 = vmatpush1.bf16.msra.mxu0 %v671
        %1199 = vmatprep.subr.bf16.mxu0 %v676
        %1200 = vmatpush1.bf16.msra.mxu0 %v675
        %1201 = vmatprep.subr.bf16.mxu0 %v680
        %1202 = vmatpush1.bf16.msra.mxu0 %v679
        %1203 = vmatprep.subr.bf16.mxu0 %v684
        %1204 = vmatpush1.bf16.msra.mxu0 %v683
        %1205 = vmatprep.subr.bf16.mxu0 %v688
        %1206 = vmatpush1.bf16.msra.mxu0 %v687
        %1207 = vmatprep.subr.bf16.mxu0 %v692
        %1208 = vmatpush1.bf16.msra.mxu0 %v691
        %1209 = vmatprep.subr.bf16.mxu0 %v696
        %1210 = vmatpush1.bf16.msra.mxu0 %v695
        %1211 = vmatprep.subr.bf16.mxu0 0
        %1212 = vmatpush1.bf16.msra.mxu0 0
        %1213 = vmatprep.subr.bf16.mxu0 0
        %1214 = vmatpush1.bf16.msra.mxu0 0
        %1215 = vmatprep.subr.bf16.mxu0 0
        %1216 = vmatpush1.bf16.msra.mxu0 0
        %1217 = vmatprep.subr.bf16.mxu0 0
        %1218 = vmatpush1.bf16.msra.mxu0 0
        %1219 = vmatprep.subr.bf16.mxu0 0
        %1220 = vmatpush1.bf16.msra.mxu0 0
        %1221 = vmatprep.subr.bf16.mxu0 0
        %1222 = vmatpush1.bf16.msra.mxu0 0
        %1223 = vmatprep.subr.bf16.mxu0 0
        %1224 = vmatpush1.bf16.msra.mxu0 0
        %1225 = vmatprep.subr.bf16.mxu0 0
        %1226 = vmatpush1.bf16.msra.mxu0 0
        %1227 = vmatprep.mubr.bf16.mxu0 0
        %1228 = vmatmul.mubr.bf16.gmra.mrb[0].mxu0 %v1194
        %v1229 = vpop.f32.mrb[0].mxu0
        %v1230 = vadd.f32 0.0, %v1229
        %v1231 = vpop.f32.mrb[0].mxu0
        %v1232 = vadd.f32 0.0, %v1231
        %v1233 = vpop.f32.mrb[0].mxu0
        %v1234 = vpop.f32.mrb[0].mxu0
        %1235 = vdwg.mxu0
        %1236 = vmatprep.subr.bf16.mxu0 %v670
        %1237 = vmatpush1.bf16.msra.mxu0 %v669
        %1238 = vmatprep.subr.bf16.mxu0 %v674
        %1239 = vmatpush1.bf16.msra.mxu0 %v673
        %1240 = vmatprep.subr.bf16.mxu0 %v678
        %1241 = vmatpush1.bf16.msra.mxu0 %v677
        %1242 = vmatprep.subr.bf16.mxu0 %v682
        %1243 = vmatpush1.bf16.msra.mxu0 %v681
        %1244 = vmatprep.subr.bf16.mxu0 %v686
        %1245 = vmatpush1.bf16.msra.mxu0 %v685
        %1246 = vmatprep.subr.bf16.mxu0 %v690
        %1247 = vmatpush1.bf16.msra.mxu0 %v689
        %1248 = vmatprep.subr.bf16.mxu0 %v694
        %1249 = vmatpush1.bf16.msra.mxu0 %v693
        %1250 = vmatprep.subr.bf16.mxu0 %v698
        %1251 = vmatpush1.bf16.msra.mxu0 %v697
        %1252 = vmatprep.subr.bf16.mxu0 0
        %1253 = vmatpush1.bf16.msra.mxu0 0
        %1254 = vmatprep.subr.bf16.mxu0 0
        %1255 = vmatpush1.bf16.msra.mxu0 0
        %1256 = vmatprep.subr.bf16.mxu0 0
        %1257 = vmatpush1.bf16.msra.mxu0 0
        %1258 = vmatprep.subr.bf16.mxu0 0
        %1259 = vmatpush1.bf16.msra.mxu0 0
        %1260 = vmatprep.subr.bf16.mxu0 0
        %1261 = vmatpush1.bf16.msra.mxu0 0
        %1262 = vmatprep.subr.bf16.mxu0 0
        %1263 = vmatpush1.bf16.msra.mxu0 0
        %1264 = vmatprep.subr.bf16.mxu0 0
        %1265 = vmatpush1.bf16.msra.mxu0 0
        %1266 = vmatprep.subr.bf16.mxu0 0
        %1267 = vmatpush1.bf16.msra.mxu0 0
        %1268 = vmatprep.mubr.bf16.mxu0 0
        %1269 = vmatmul.mubr.bf16.gmra.mrb[0].mxu0 %v1194
        %v1270 = vpop.f32.mrb[0].mxu0
        %v1271 = vadd.f32 0.0, %v1270
        %v1272 = vpop.f32.mrb[0].mxu0
        %v1273 = vadd.f32 0.0, %v1272
        %v1274 = vpop.f32.mrb[0].mxu0
        %v1275 = vpop.f32.mrb[0].mxu0
        %1276 = vdwg.mxu0
        %v1277 = vadd.f32 %v1190, %v1230
        %v1278 = vadd.f32 %v1191, %v1232
        %v1279 = vadd.f32 %v1192, %v1271
        %v1280 = vadd.f32 %v1193, %v1273
        %v1281 = vxor.u32 %v1277, 2147483648
        %v1282 = vmul.f32 %v1281, 1.442695
        %v1283 = vpow.pop %v1282
        %v1284 = vadd.f32 %v1283, 1.0
        %v1285 = vrcp.pop %v1284
        %v1286 = vmul.f32 1.0, %v1285
        %v1287 = vxor.u32 %v1278, 2147483648
        %v1288 = vmul.f32 %v1287, 1.442695
        %v1289 = vpow.pop %v1288
        %v1290 = vadd.f32 %v1289, 1.0
        %v1291 = vrcp.pop %v1290
        %v1292 = vmul.f32 1.0, %v1291
        %v1293 = vtanh.pop %v1279
        %v1294 = vxor.u32 %v1280, 2147483648
        %v1295 = vmul.f32 %v1294, 1.442695
        %v1296 = vpow.pop %v1295
        %v1297 = vadd.f32 %v1296, 1.0
        %v1298 = vrcp.pop %v1297
        %v1299 = vmul.f32 1.0, %v1298
        %v1300 = vmul.f32 %v1292, %v1186
        %v1301 = vmul.f32 %v1286, %v1293
        %v1302 = vadd.f32 %v1300, %v1301
        %v1303 = vtanh.pop %v1302
        %v1304 = vmul.f32 %v1299, %v1303
        %s1305 = scalar_lea.vmem %s459, 160 [#allocation2]
        %v1306 = vld [vmem:[%s1305] sm:$0xff]
        %v1307 = vld [vmem:[%s1305 + $0x8] sm:$0xff]
        %v1308 = vld [vmem:[%s1305 + $0x10] sm:$0xff]
        %v1309 = vld [vmem:[%s1305 + $0x18] sm:$0xff]
        %v1310 = vpack.c.bf16 %v1304, %v1304
        %1311 = vmatprep.subr.bf16.mxu0 %v668
        %1312 = vmatpush1.bf16.msra.mxu0 %v667
        %1313 = vmatprep.subr.bf16.mxu0 %v672
        %1314 = vmatpush1.bf16.msra.mxu0 %v671
        %1315 = vmatprep.subr.bf16.mxu0 %v676
        %1316 = vmatpush1.bf16.msra.mxu0 %v675
        %1317 = vmatprep.subr.bf16.mxu0 %v680
        %1318 = vmatpush1.bf16.msra.mxu0 %v679
        %1319 = vmatprep.subr.bf16.mxu0 %v684
        %1320 = vmatpush1.bf16.msra.mxu0 %v683
        %1321 = vmatprep.subr.bf16.mxu0 %v688
        %1322 = vmatpush1.bf16.msra.mxu0 %v687
        %1323 = vmatprep.subr.bf16.mxu0 %v692
        %1324 = vmatpush1.bf16.msra.mxu0 %v691
        %1325 = vmatprep.subr.bf16.mxu0 %v696
        %1326 = vmatpush1.bf16.msra.mxu0 %v695
        %1327 = vmatprep.subr.bf16.mxu0 0
        %1328 = vmatpush1.bf16.msra.mxu0 0
        %1329 = vmatprep.subr.bf16.mxu0 0
        %1330 = vmatpush1.bf16.msra.mxu0 0
        %1331 = vmatprep.subr.bf16.mxu0 0
        %1332 = vmatpush1.bf16.msra.mxu0 0
        %1333 = vmatprep.subr.bf16.mxu0 0
        %1334 = vmatpush1.bf16.msra.mxu0 0
        %1335 = vmatprep.subr.bf16.mxu0 0
        %1336 = vmatpush1.bf16.msra.mxu0 0
        %1337 = vmatprep.subr.bf16.mxu0 0
        %1338 = vmatpush1.bf16.msra.mxu0 0
        %1339 = vmatprep.subr.bf16.mxu0 0
        %1340 = vmatpush1.bf16.msra.mxu0 0
        %1341 = vmatprep.subr.bf16.mxu0 0
        %1342 = vmatpush1.bf16.msra.mxu0 0
        %1343 = vmatprep.mubr.bf16.mxu0 0
        %1344 = vmatmul.mubr.bf16.gmra.mrb[0].mxu0 %v1310
        %v1345 = vpop.f32.mrb[0].mxu0
        %v1346 = vadd.f32 0.0, %v1345
        %v1347 = vpop.f32.mrb[0].mxu0
        %v1348 = vadd.f32 0.0, %v1347
        %v1349 = vpop.f32.mrb[0].mxu0
        %v1350 = vpop.f32.mrb[0].mxu0
        %1351 = vdwg.mxu0
        %1352 = vmatprep.subr.bf16.mxu0 %v670
        %1353 = vmatpush1.bf16.msra.mxu0 %v669
        %1354 = vmatprep.subr.bf16.mxu0 %v674
        %1355 = vmatpush1.bf16.msra.mxu0 %v673
        %1356 = vmatprep.subr.bf16.mxu0 %v678
        %1357 = vmatpush1.bf16.msra.mxu0 %v677
        %1358 = vmatprep.subr.bf16.mxu0 %v682
        %1359 = vmatpush1.bf16.msra.mxu0 %v681
        %1360 = vmatprep.subr.bf16.mxu0 %v686
        %1361 = vmatpush1.bf16.msra.mxu0 %v685
        %1362 = vmatprep.subr.bf16.mxu0 %v690
        %1363 = vmatpush1.bf16.msra.mxu0 %v689
        %1364 = vmatprep.subr.bf16.mxu0 %v694
        %1365 = vmatpush1.bf16.msra.mxu0 %v693
        %1366 = vmatprep.subr.bf16.mxu0 %v698
        %1367 = vmatpush1.bf16.msra.mxu0 %v697
        %1368 = vmatprep.subr.bf16.mxu0 0
        %1369 = vmatpush1.bf16.msra.mxu0 0
        %1370 = vmatprep.subr.bf16.mxu0 0
        %1371 = vmatpush1.bf16.msra.mxu0 0
        %1372 = vmatprep.subr.bf16.mxu0 0
        %1373 = vmatpush1.bf16.msra.mxu0 0
        %1374 = vmatprep.subr.bf16.mxu0 0
        %1375 = vmatpush1.bf16.msra.mxu0 0
        %1376 = vmatprep.subr.bf16.mxu0 0
        %1377 = vmatpush1.bf16.msra.mxu0 0
        %1378 = vmatprep.subr.bf16.mxu0 0
        %1379 = vmatpush1.bf16.msra.mxu0 0
        %1380 = vmatprep.subr.bf16.mxu0 0
        %1381 = vmatpush1.bf16.msra.mxu0 0
        %1382 = vmatprep.subr.bf16.mxu0 0
        %1383 = vmatpush1.bf16.msra.mxu0 0
        %1384 = vmatprep.mubr.bf16.mxu0 0
        %1385 = vmatmul.mubr.bf16.gmra.mrb[0].mxu0 %v1310
        %v1386 = vpop.f32.mrb[0].mxu0
        %v1387 = vadd.f32 0.0, %v1386
        %v1388 = vpop.f32.mrb[0].mxu0
        %v1389 = vadd.f32 0.0, %v1388
        %v1390 = vpop.f32.mrb[0].mxu0
        %v1391 = vpop.f32.mrb[0].mxu0
        %1392 = vdwg.mxu0
        %v1393 = vadd.f32 %v1306, %v1346
        %v1394 = vadd.f32 %v1307, %v1348
        %v1395 = vadd.f32 %v1308, %v1387
        %v1396 = vadd.f32 %v1309, %v1389
        %v1397 = vxor.u32 %v1393, 2147483648
        %v1398 = vmul.f32 %v1397, 1.442695
        %v1399 = vpow.pop %v1398
        %v1400 = vadd.f32 %v1399, 1.0
        %v1401 = vrcp.pop %v1400
        %v1402 = vmul.f32 1.0, %v1401
        %v1403 = vxor.u32 %v1394, 2147483648
        %v1404 = vmul.f32 %v1403, 1.442695
        %v1405 = vpow.pop %v1404
        %v1406 = vadd.f32 %v1405, 1.0
        %v1407 = vrcp.pop %v1406
        %v1408 = vmul.f32 1.0, %v1407
        %v1409 = vtanh.pop %v1395
        %v1410 = vxor.u32 %v1396, 2147483648
        %v1411 = vmul.f32 %v1410, 1.442695
        %v1412 = vpow.pop %v1411
        %v1413 = vadd.f32 %v1412, 1.0
        %v1414 = vrcp.pop %v1413
        %v1415 = vmul.f32 1.0, %v1414
        %v1416 = vmul.f32 %v1408, %v1302
        %v1417 = vmul.f32 %v1402, %v1409
        %v1418 = vadd.f32 %v1416, %v1417
        %v1419 = vtanh.pop %v1418
        %v1420 = vmul.f32 %v1415, %v1419
        %s1421 = scalar_lea.vmem %s459, 192 [#allocation2]
        %v1422 = vld [vmem:[%s1421] sm:$0xff]
        %v1423 = vld [vmem:[%s1421 + $0x8] sm:$0xff]
        %v1424 = vld [vmem:[%s1421 + $0x10] sm:$0xff]
        %v1425 = vld [vmem:[%s1421 + $0x18] sm:$0xff]
        %v1426 = vpack.c.bf16 %v1420, %v1420
        %1427 = vmatprep.subr.bf16.mxu0 %v668
        %1428 = vmatpush1.bf16.msra.mxu0 %v667
        %1429 = vmatprep.subr.bf16.mxu0 %v672
        %1430 = vmatpush1.bf16.msra.mxu0 %v671
        %1431 = vmatprep.subr.bf16.mxu0 %v676
        %1432 = vmatpush1.bf16.msra.mxu0 %v675
        %1433 = vmatprep.subr.bf16.mxu0 %v680
        %1434 = vmatpush1.bf16.msra.mxu0 %v679
        %1435 = vmatprep.subr.bf16.mxu0 %v684
        %1436 = vmatpush1.bf16.msra.mxu0 %v683
        %1437 = vmatprep.subr.bf16.mxu0 %v688
        %1438 = vmatpush1.bf16.msra.mxu0 %v687
        %1439 = vmatprep.subr.bf16.mxu0 %v692
        %1440 = vmatpush1.bf16.msra.mxu0 %v691
        %1441 = vmatprep.subr.bf16.mxu0 %v696
        %1442 = vmatpush1.bf16.msra.mxu0 %v695
        %1443 = vmatprep.subr.bf16.mxu0 0
        %1444 = vmatpush1.bf16.msra.mxu0 0
        %1445 = vmatprep.subr.bf16.mxu0 0
        %1446 = vmatpush1.bf16.msra.mxu0 0
        %1447 = vmatprep.subr.bf16.mxu0 0
        %1448 = vmatpush1.bf16.msra.mxu0 0
        %1449 = vmatprep.subr.bf16.mxu0 0
        %1450 = vmatpush1.bf16.msra.mxu0 0
        %1451 = vmatprep.subr.bf16.mxu0 0
        %1452 = vmatpush1.bf16.msra.mxu0 0
        %1453 = vmatprep.subr.bf16.mxu0 0
        %1454 = vmatpush1.bf16.msra.mxu0 0
        %1455 = vmatprep.subr.bf16.mxu0 0
        %1456 = vmatpush1.bf16.msra.mxu0 0
        %1457 = vmatprep.subr.bf16.mxu0 0
        %1458 = vmatpush1.bf16.msra.mxu0 0
        %1459 = vmatprep.mubr.bf16.mxu0 0
        %1460 = vmatmul.mubr.bf16.gmra.mrb[0].mxu0 %v1426
        %v1461 = vpop.f32.mrb[0].mxu0
        %v1462 = vadd.f32 0.0, %v1461
        %v1463 = vpop.f32.mrb[0].mxu0
        %v1464 = vadd.f32 0.0, %v1463
        %v1465 = vpop.f32.mrb[0].mxu0
        %v1466 = vpop.f32.mrb[0].mxu0
        %1467 = vdwg.mxu0
        %1468 = vmatprep.subr.bf16.mxu0 %v670
        %1469 = vmatpush1.bf16.msra.mxu0 %v669
        %1470 = vmatprep.subr.bf16.mxu0 %v674
        %1471 = vmatpush1.bf16.msra.mxu0 %v673
        %1472 = vmatprep.subr.bf16.mxu0 %v678
        %1473 = vmatpush1.bf16.msra.mxu0 %v677
        %1474 = vmatprep.subr.bf16.mxu0 %v682
        %1475 = vmatpush1.bf16.msra.mxu0 %v681
        %1476 = vmatprep.subr.bf16.mxu0 %v686
        %1477 = vmatpush1.bf16.msra.mxu0 %v685
        %1478 = vmatprep.subr.bf16.mxu0 %v690
        %1479 = vmatpush1.bf16.msra.mxu0 %v689
        %1480 = vmatprep.subr.bf16.mxu0 %v694
        %1481 = vmatpush1.bf16.msra.mxu0 %v693
        %1482 = vmatprep.subr.bf16.mxu0 %v698
        %1483 = vmatpush1.bf16.msra.mxu0 %v697
        %1484 = vmatprep.subr.bf16.mxu0 0
        %1485 = vmatpush1.bf16.msra.mxu0 0
        %1486 = vmatprep.subr.bf16.mxu0 0
        %1487 = vmatpush1.bf16.msra.mxu0 0
        %1488 = vmatprep.subr.bf16.mxu0 0
        %1489 = vmatpush1.bf16.msra.mxu0 0
        %1490 = vmatprep.subr.bf16.mxu0 0
        %1491 = vmatpush1.bf16.msra.mxu0 0
        %1492 = vmatprep.subr.bf16.mxu0 0
        %1493 = vmatpush1.bf16.msra.mxu0 0
        %1494 = vmatprep.subr.bf16.mxu0 0
        %1495 = vmatpush1.bf16.msra.mxu0 0
        %1496 = vmatprep.subr.bf16.mxu0 0
        %1497 = vmatpush1.bf16.msra.mxu0 0
        %1498 = vmatprep.subr.bf16.mxu0 0
        %1499 = vmatpush1.bf16.msra.mxu0 0
        %1500 = vmatprep.mubr.bf16.mxu0 0
        %1501 = vmatmul.mubr.bf16.gmra.mrb[0].mxu0 %v1426
        %v1502 = vpop.f32.mrb[0].mxu0
        %v1503 = vadd.f32 0.0, %v1502
        %v1504 = vpop.f32.mrb[0].mxu0
        %v1505 = vadd.f32 0.0, %v1504
        %v1506 = vpop.f32.mrb[0].mxu0
        %v1507 = vpop.f32.mrb[0].mxu0
        %1508 = vdwg.mxu0
        %v1509 = vadd.f32 %v1422, %v1462
        %v1510 = vadd.f32 %v1423, %v1464
        %v1511 = vadd.f32 %v1424, %v1503
        %v1512 = vadd.f32 %v1425, %v1505
        %v1513 = vxor.u32 %v1509, 2147483648
        %v1514 = vmul.f32 %v1513, 1.442695
        %v1515 = vpow.pop %v1514
        %v1516 = vadd.f32 %v1515, 1.0
        %v1517 = vrcp.pop %v1516
        %v1518 = vmul.f32 1.0, %v1517
        %v1519 = vxor.u32 %v1510, 2147483648
        %v1520 = vmul.f32 %v1519, 1.442695
        %v1521 = vpow.pop %v1520
        %v1522 = vadd.f32 %v1521, 1.0
        %v1523 = vrcp.pop %v1522
        %v1524 = vmul.f32 1.0, %v1523
        %v1525 = vtanh.pop %v1511
        %v1526 = vxor.u32 %v1512, 2147483648
        %v1527 = vmul.f32 %v1526, 1.442695
        %v1528 = vpow.pop %v1527
        %v1529 = vadd.f32 %v1528, 1.0
        %v1530 = vrcp.pop %v1529
        %v1531 = vmul.f32 1.0, %v1530
        %v1532 = vmul.f32 %v1524, %v1418
        %v1533 = vmul.f32 %v1518, %v1525
        %v1534 = vadd.f32 %v1532, %v1533
        %v1535 = vtanh.pop %v1534
        %v1536 = vmul.f32 %v1531, %v1535
        %s1537 = scalar_lea.vmem %s459, 224 [#allocation2]
        %v1538 = vld [vmem:[%s1537] sm:$0xff]
        %v1539 = vld [vmem:[%s1537 + $0x8] sm:$0xff]
        %v1540 = vld [vmem:[%s1537 + $0x10] sm:$0xff]
        %v1541 = vld [vmem:[%s1537 + $0x18] sm:$0xff]
        %v1542 = vpack.c.bf16 %v1536, %v1536
        %1543 = vmatprep.subr.bf16.mxu0 %v668
        %1544 = vmatpush1.bf16.msra.mxu0 %v667
        %1545 = vmatprep.subr.bf16.mxu0 %v672
        %1546 = vmatpush1.bf16.msra.mxu0 %v671
        %1547 = vmatprep.subr.bf16.mxu0 %v676
        %1548 = vmatpush1.bf16.msra.mxu0 %v675
        %1549 = vmatprep.subr.bf16.mxu0 %v680
        %1550 = vmatpush1.bf16.msra.mxu0 %v679
        %1551 = vmatprep.subr.bf16.mxu0 %v684
        %1552 = vmatpush1.bf16.msra.mxu0 %v683
        %1553 = vmatprep.subr.bf16.mxu0 %v688
        %1554 = vmatpush1.bf16.msra.mxu0 %v687
        %1555 = vmatprep.subr.bf16.mxu0 %v692
        %1556 = vmatpush1.bf16.msra.mxu0 %v691
        %1557 = vmatprep.subr.bf16.mxu0 %v696
        %1558 = vmatpush1.bf16.msra.mxu0 %v695
        %1559 = vmatprep.subr.bf16.mxu0 0
        %1560 = vmatpush1.bf16.msra.mxu0 0
        %1561 = vmatprep.subr.bf16.mxu0 0
        %1562 = vmatpush1.bf16.msra.mxu0 0
        %1563 = vmatprep.subr.bf16.mxu0 0
        %1564 = vmatpush1.bf16.msra.mxu0 0
        %1565 = vmatprep.subr.bf16.mxu0 0
        %1566 = vmatpush1.bf16.msra.mxu0 0
        %1567 = vmatprep.subr.bf16.mxu0 0
        %1568 = vmatpush1.bf16.msra.mxu0 0
        %1569 = vmatprep.subr.bf16.mxu0 0
        %1570 = vmatpush1.bf16.msra.mxu0 0
        %1571 = vmatprep.subr.bf16.mxu0 0
        %1572 = vmatpush1.bf16.msra.mxu0 0
        %1573 = vmatprep.subr.bf16.mxu0 0
        %1574 = vmatpush1.bf16.msra.mxu0 0
        %1575 = vmatprep.mubr.bf16.mxu0 0
        %1576 = vmatmul.mubr.bf16.gmra.mrb[0].mxu0 %v1542
        %v1577 = vpop.f32.mrb[0].mxu0
        %v1578 = vadd.f32 0.0, %v1577
        %v1579 = vpop.f32.mrb[0].mxu0
        %v1580 = vadd.f32 0.0, %v1579
        %v1581 = vpop.f32.mrb[0].mxu0
        %v1582 = vpop.f32.mrb[0].mxu0
        %1583 = vdwg.mxu0
        %1584 = vmatprep.subr.bf16.mxu0 %v670
        %1585 = vmatpush1.bf16.msra.mxu0 %v669
        %1586 = vmatprep.subr.bf16.mxu0 %v674
        %1587 = vmatpush1.bf16.msra.mxu0 %v673
        %1588 = vmatprep.subr.bf16.mxu0 %v678
        %1589 = vmatpush1.bf16.msra.mxu0 %v677
        %1590 = vmatprep.subr.bf16.mxu0 %v682
        %1591 = vmatpush1.bf16.msra.mxu0 %v681
        %1592 = vmatprep.subr.bf16.mxu0 %v686
        %1593 = vmatpush1.bf16.msra.mxu0 %v685
        %1594 = vmatprep.subr.bf16.mxu0 %v690
        %1595 = vmatpush1.bf16.msra.mxu0 %v689
        %1596 = vmatprep.subr.bf16.mxu0 %v694
        %1597 = vmatpush1.bf16.msra.mxu0 %v693
        %1598 = vmatprep.subr.bf16.mxu0 %v698
        %1599 = vmatpush1.bf16.msra.mxu0 %v697
        %1600 = vmatprep.subr.bf16.mxu0 0
        %1601 = vmatpush1.bf16.msra.mxu0 0
        %1602 = vmatprep.subr.bf16.mxu0 0
        %1603 = vmatpush1.bf16.msra.mxu0 0
        %1604 = vmatprep.subr.bf16.mxu0 0
        %1605 = vmatpush1.bf16.msra.mxu0 0
        %1606 = vmatprep.subr.bf16.mxu0 0
        %1607 = vmatpush1.bf16.msra.mxu0 0
        %1608 = vmatprep.subr.bf16.mxu0 0
        %1609 = vmatpush1.bf16.msra.mxu0 0
        %1610 = vmatprep.subr.bf16.mxu0 0
        %1611 = vmatpush1.bf16.msra.mxu0 0
        %1612 = vmatprep.subr.bf16.mxu0 0
        %1613 = vmatpush1.bf16.msra.mxu0 0
        %1614 = vmatprep.subr.bf16.mxu0 0
        %1615 = vmatpush1.bf16.msra.mxu0 0
        %1616 = vmatprep.mubr.bf16.mxu0 0
        %1617 = vmatmul.mubr.bf16.gmra.mrb[0].mxu0 %v1542
        %v1618 = vpop.f32.mrb[0].mxu0
        %v1619 = vadd.f32 0.0, %v1618
        %v1620 = vpop.f32.mrb[0].mxu0
        %v1621 = vadd.f32 0.0, %v1620
        %v1622 = vpop.f32.mrb[0].mxu0
        %v1623 = vpop.f32.mrb[0].mxu0
        %1624 = vdwg.mxu0
        %v1625 = vadd.f32 %v1538, %v1578
        %v1626 = vadd.f32 %v1539, %v1580
        %v1627 = vadd.f32 %v1540, %v1619
        %v1628 = vadd.f32 %v1541, %v1621
        %v1629 = vxor.u32 %v1625, 2147483648
        %v1630 = vmul.f32 %v1629, 1.442695
        %v1631 = vpow.pop %v1630
        %v1632 = vadd.f32 %v1631, 1.0
        %v1633 = vrcp.pop %v1632
        %v1634 = vmul.f32 1.0, %v1633
        %v1635 = vxor.u32 %v1626, 2147483648
        %v1636 = vmul.f32 %v1635, 1.442695
        %v1637 = vpow.pop %v1636
        %v1638 = vadd.f32 %v1637, 1.0
        %v1639 = vrcp.pop %v1638
        %v1640 = vmul.f32 1.0, %v1639
        %v1641 = vtanh.pop %v1627
        %v1642 = vxor.u32 %v1628, 2147483648
        %v1643 = vmul.f32 %v1642, 1.442695
        %v1644 = vpow.pop %v1643
        %v1645 = vadd.f32 %v1644, 1.0
        %v1646 = vrcp.pop %v1645
        %v1647 = vmul.f32 1.0, %v1646
        %v1648 = vmul.f32 %v1640, %v1534
        %v1649 = vmul.f32 %v1634, %v1641
        %v1650 = vadd.f32 %v1648, %v1649
        %v1651 = vtanh.pop %v1650
        %v1652 = vmul.f32 %v1647, %v1651
        %s1653 = scalar_lea.vmem %s459, 256 [#allocation2]
        %v1654 = vld [vmem:[%s1653] sm:$0xff]
        %v1655 = vld [vmem:[%s1653 + $0x8] sm:$0xff]
        %v1656 = vld [vmem:[%s1653 + $0x10] sm:$0xff]
        %v1657 = vld [vmem:[%s1653 + $0x18] sm:$0xff]
        %v1658 = vpack.c.bf16 %v1652, %v1652
        %1659 = vmatprep.subr.bf16.mxu0 %v668
        %1660 = vmatpush1.bf16.msra.mxu0 %v667
        %1661 = vmatprep.subr.bf16.mxu0 %v672
        %1662 = vmatpush1.bf16.msra.mxu0 %v671
        %1663 = vmatprep.subr.bf16.mxu0 %v676
        %1664 = vmatpush1.bf16.msra.mxu0 %v675
        %1665 = vmatprep.subr.bf16.mxu0 %v680
        %1666 = vmatpush1.bf16.msra.mxu0 %v679
        %1667 = vmatprep.subr.bf16.mxu0 %v684
        %1668 = vmatpush1.bf16.msra.mxu0 %v683
        %1669 = vmatprep.subr.bf16.mxu0 %v688
        %1670 = vmatpush1.bf16.msra.mxu0 %v687
        %1671 = vmatprep.subr.bf16.mxu0 %v692
        %1672 = vmatpush1.bf16.msra.mxu0 %v691
        %1673 = vmatprep.subr.bf16.mxu0 %v696
        %1674 = vmatpush1.bf16.msra.mxu0 %v695
        %1675 = vmatprep.subr.bf16.mxu0 0
        %1676 = vmatpush1.bf16.msra.mxu0 0
        %1677 = vmatprep.subr.bf16.mxu0 0
        %1678 = vmatpush1.bf16.msra.mxu0 0
        %1679 = vmatprep.subr.bf16.mxu0 0
        %1680 = vmatpush1.bf16.msra.mxu0 0
        %1681 = vmatprep.subr.bf16.mxu0 0
        %1682 = vmatpush1.bf16.msra.mxu0 0
        %1683 = vmatprep.subr.bf16.mxu0 0
        %1684 = vmatpush1.bf16.msra.mxu0 0
        %1685 = vmatprep.subr.bf16.mxu0 0
        %1686 = vmatpush1.bf16.msra.mxu0 0
        %1687 = vmatprep.subr.bf16.mxu0 0
        %1688 = vmatpush1.bf16.msra.mxu0 0
        %1689 = vmatprep.subr.bf16.mxu0 0
        %1690 = vmatpush1.bf16.msra.mxu0 0
        %1691 = vmatprep.mubr.bf16.mxu0 0
        %1692 = vmatmul.mubr.bf16.gmra.mrb[0].mxu0 %v1658
        %v1693 = vpop.f32.mrb[0].mxu0
        %v1694 = vadd.f32 0.0, %v1693
        %v1695 = vpop.f32.mrb[0].mxu0
        %v1696 = vadd.f32 0.0, %v1695
        %v1697 = vpop.f32.mrb[0].mxu0
        %v1698 = vpop.f32.mrb[0].mxu0
        %1699 = vdwg.mxu0
        %1700 = vmatprep.subr.bf16.mxu0 %v670
        %1701 = vmatpush1.bf16.msra.mxu0 %v669
        %1702 = vmatprep.subr.bf16.mxu0 %v674
        %1703 = vmatpush1.bf16.msra.mxu0 %v673
        %1704 = vmatprep.subr.bf16.mxu0 %v678
        %1705 = vmatpush1.bf16.msra.mxu0 %v677
        %1706 = vmatprep.subr.bf16.mxu0 %v682
        %1707 = vmatpush1.bf16.msra.mxu0 %v681
        %1708 = vmatprep.subr.bf16.mxu0 %v686
        %1709 = vmatpush1.bf16.msra.mxu0 %v685
        %1710 = vmatprep.subr.bf16.mxu0 %v690
        %1711 = vmatpush1.bf16.msra.mxu0 %v689
        %1712 = vmatprep.subr.bf16.mxu0 %v694
        %1713 = vmatpush1.bf16.msra.mxu0 %v693
        %1714 = vmatprep.subr.bf16.mxu0 %v698
        %1715 = vmatpush1.bf16.msra.mxu0 %v697
        %1716 = vmatprep.subr.bf16.mxu0 0
        %1717 = vmatpush1.bf16.msra.mxu0 0
        %1718 = vmatprep.subr.bf16.mxu0 0
        %1719 = vmatpush1.bf16.msra.mxu0 0
        %1720 = vmatprep.subr.bf16.mxu0 0
        %1721 = vmatpush1.bf16.msra.mxu0 0
        %1722 = vmatprep.subr.bf16.mxu0 0
        %1723 = vmatpush1.bf16.msra.mxu0 0
        %1724 = vmatprep.subr.bf16.mxu0 0
        %1725 = vmatpush1.bf16.msra.mxu0 0
        %1726 = vmatprep.subr.bf16.mxu0 0
        %1727 = vmatpush1.bf16.msra.mxu0 0
        %1728 = vmatprep.subr.bf16.mxu0 0
        %1729 = vmatpush1.bf16.msra.mxu0 0
        %1730 = vmatprep.subr.bf16.mxu0 0
        %1731 = vmatpush1.bf16.msra.mxu0 0
        %1732 = vmatprep.mubr.bf16.mxu0 0
        %1733 = vmatmul.mubr.bf16.gmra.mrb[0].mxu0 %v1658
        %v1734 = vpop.f32.mrb[0].mxu0
        %v1735 = vadd.f32 0.0, %v1734
        %v1736 = vpop.f32.mrb[0].mxu0
        %v1737 = vadd.f32 0.0, %v1736
        %v1738 = vpop.f32.mrb[0].mxu0
        %v1739 = vpop.f32.mrb[0].mxu0
        %1740 = vdwg.mxu0
        %v1741 = vadd.f32 %v1654, %v1694
        %v1742 = vadd.f32 %v1655, %v1696
        %v1743 = vadd.f32 %v1656, %v1735
        %v1744 = vadd.f32 %v1657, %v1737
        %v1745 = vxor.u32 %v1741, 2147483648
        %v1746 = vmul.f32 %v1745, 1.442695
        %v1747 = vpow.pop %v1746
        %v1748 = vadd.f32 %v1747, 1.0
        %v1749 = vrcp.pop %v1748
        %v1750 = vmul.f32 1.0, %v1749
        %v1751 = vxor.u32 %v1742, 2147483648
        %v1752 = vmul.f32 %v1751, 1.442695
        %v1753 = vpow.pop %v1752
        %v1754 = vadd.f32 %v1753, 1.0
        %v1755 = vrcp.pop %v1754
        %v1756 = vmul.f32 1.0, %v1755
        %v1757 = vtanh.pop %v1743
        %v1758 = vxor.u32 %v1744, 2147483648
        %v1759 = vmul.f32 %v1758, 1.442695
        %v1760 = vpow.pop %v1759
        %v1761 = vadd.f32 %v1760, 1.0
        %v1762 = vrcp.pop %v1761
        %v1763 = vmul.f32 1.0, %v1762
        %v1764 = vmul.f32 %v1756, %v1650
        %v1765 = vmul.f32 %v1750, %v1757
        %v1766 = vadd.f32 %v1764, %v1765
        %v1767 = vtanh.pop %v1766
        %v1768 = vmul.f32 %v1763, %v1767
        %s1769 = scalar_lea.vmem %s459, 288 [#allocation2]
        %v1770 = vld [vmem:[%s1769] sm:$0xff]
        %v1771 = vld [vmem:[%s1769 + $0x8] sm:$0xff]
        %v1772 = vld [vmem:[%s1769 + $0x10] sm:$0xff]
        %v1773 = vld [vmem:[%s1769 + $0x18] sm:$0xff]
        %v1774 = vpack.c.bf16 %v1768, %v1768
        %1775 = vmatprep.subr.bf16.mxu0 %v668
        %1776 = vmatpush1.bf16.msra.mxu0 %v667
        %1777 = vmatprep.subr.bf16.mxu0 %v672
        %1778 = vmatpush1.bf16.msra.mxu0 %v671
        %1779 = vmatprep.subr.bf16.mxu0 %v676
        %1780 = vmatpush1.bf16.msra.mxu0 %v675
        %1781 = vmatprep.subr.bf16.mxu0 %v680
        %1782 = vmatpush1.bf16.msra.mxu0 %v679
        %1783 = vmatprep.subr.bf16.mxu0 %v684
        %1784 = vmatpush1.bf16.msra.mxu0 %v683
        %1785 = vmatprep.subr.bf16.mxu0 %v688
        %1786 = vmatpush1.bf16.msra.mxu0 %v687
        %1787 = vmatprep.subr.bf16.mxu0 %v692
        %1788 = vmatpush1.bf16.msra.mxu0 %v691
        %1789 = vmatprep.subr.bf16.mxu0 %v696
        %1790 = vmatpush1.bf16.msra.mxu0 %v695
        %1791 = vmatprep.subr.bf16.mxu0 0
        %1792 = vmatpush1.bf16.msra.mxu0 0
        %1793 = vmatprep.subr.bf16.mxu0 0
        %1794 = vmatpush1.bf16.msra.mxu0 0
        %1795 = vmatprep.subr.bf16.mxu0 0
        %1796 = vmatpush1.bf16.msra.mxu0 0
        %1797 = vmatprep.subr.bf16.mxu0 0
        %1798 = vmatpush1.bf16.msra.mxu0 0
        %1799 = vmatprep.subr.bf16.mxu0 0
        %1800 = vmatpush1.bf16.msra.mxu0 0
        %1801 = vmatprep.subr.bf16.mxu0 0
        %1802 = vmatpush1.bf16.msra.mxu0 0
        %1803 = vmatprep.subr.bf16.mxu0 0
        %1804 = vmatpush1.bf16.msra.mxu0 0
        %1805 = vmatprep.subr.bf16.mxu0 0
        %1806 = vmatpush1.bf16.msra.mxu0 0
        %1807 = vmatprep.mubr.bf16.mxu0 0
        %1808 = vmatmul.mubr.bf16.gmra.mrb[0].mxu0 %v1774
        %v1809 = vpop.f32.mrb[0].mxu0
        %v1810 = vadd.f32 0.0, %v1809
        %v1811 = vpop.f32.mrb[0].mxu0
        %v1812 = vadd.f32 0.0, %v1811
        %v1813 = vpop.f32.mrb[0].mxu0
        %v1814 = vpop.f32.mrb[0].mxu0
        %1815 = vdwg.mxu0
        %1816 = vmatprep.subr.bf16.mxu0 %v670
        %1817 = vmatpush1.bf16.msra.mxu0 %v669
        %1818 = vmatprep.subr.bf16.mxu0 %v674
        %1819 = vmatpush1.bf16.msra.mxu0 %v673
        %1820 = vmatprep.subr.bf16.mxu0 %v678
        %1821 = vmatpush1.bf16.msra.mxu0 %v677
        %1822 = vmatprep.subr.bf16.mxu0 %v682
        %1823 = vmatpush1.bf16.msra.mxu0 %v681
        %1824 = vmatprep.subr.bf16.mxu0 %v686
        %1825 = vmatpush1.bf16.msra.mxu0 %v685
        %1826 = vmatprep.subr.bf16.mxu0 %v690
        %1827 = vmatpush1.bf16.msra.mxu0 %v689
        %1828 = vmatprep.subr.bf16.mxu0 %v694
        %1829 = vmatpush1.bf16.msra.mxu0 %v693
        %1830 = vmatprep.subr.bf16.mxu0 %v698
        %1831 = vmatpush1.bf16.msra.mxu0 %v697
        %1832 = vmatprep.subr.bf16.mxu0 0
        %1833 = vmatpush1.bf16.msra.mxu0 0
        %1834 = vmatprep.subr.bf16.mxu0 0
        %1835 = vmatpush1.bf16.msra.mxu0 0
        %1836 = vmatprep.subr.bf16.mxu0 0
        %1837 = vmatpush1.bf16.msra.mxu0 0
        %1838 = vmatprep.subr.bf16.mxu0 0
        %1839 = vmatpush1.bf16.msra.mxu0 0
        %1840 = vmatprep.subr.bf16.mxu0 0
        %1841 = vmatpush1.bf16.msra.mxu0 0
        %1842 = vmatprep.subr.bf16.mxu0 0
        %1843 = vmatpush1.bf16.msra.mxu0 0
        %1844 = vmatprep.subr.bf16.mxu0 0
        %1845 = vmatpush1.bf16.msra.mxu0 0
        %1846 = vmatprep.subr.bf16.mxu0 0
        %1847 = vmatpush1.bf16.msra.mxu0 0
        %1848 = vmatprep.mubr.bf16.mxu0 0
        %1849 = vmatmul.mubr.bf16.gmra.mrb[0].mxu0 %v1774
        %v1850 = vpop.f32.mrb[0].mxu0
        %v1851 = vadd.f32 0.0, %v1850
        %v1852 = vpop.f32.mrb[0].mxu0
        %v1853 = vadd.f32 0.0, %v1852
        %v1854 = vpop.f32.mrb[0].mxu0
        %v1855 = vpop.f32.mrb[0].mxu0
        %1856 = vdwg.mxu0
        %v1857 = vadd.f32 %v1770, %v1810
        %v1858 = vadd.f32 %v1771, %v1812
        %v1859 = vadd.f32 %v1772, %v1851
        %v1860 = vadd.f32 %v1773, %v1853
        %v1861 = vxor.u32 %v1857, 2147483648
        %v1862 = vmul.f32 %v1861, 1.442695
        %v1863 = vpow.pop %v1862
        %v1864 = vadd.f32 %v1863, 1.0
        %v1865 = vrcp.pop %v1864
        %v1866 = vmul.f32 1.0, %v1865
        %v1867 = vxor.u32 %v1858, 2147483648
        %v1868 = vmul.f32 %v1867, 1.442695
        %v1869 = vpow.pop %v1868
        %v1870 = vadd.f32 %v1869, 1.0
        %v1871 = vrcp.pop %v1870
        %v1872 = vmul.f32 1.0, %v1871
        %v1873 = vtanh.pop %v1859
        %v1874 = vxor.u32 %v1860, 2147483648
        %v1875 = vmul.f32 %v1874, 1.442695
        %v1876 = vpow.pop %v1875
        %v1877 = vadd.f32 %v1876, 1.0
        %v1878 = vrcp.pop %v1877
        %v1879 = vmul.f32 1.0, %v1878
        %v1880 = vmul.f32 %v1872, %v1766
        %v1881 = vmul.f32 %v1866, %v1873
        %v1882 = vadd.f32 %v1880, %v1881
        %v1883 = vtanh.pop %v1882
        %v1884 = vmul.f32 %v1879, %v1883
        %s1885 = scalar_lea.vmem %s459, 320 [#allocation2]
        %v1886 = vld [vmem:[%s1885] sm:$0xff]
        %v1887 = vld [vmem:[%s1885 + $0x8] sm:$0xff]
        %v1888 = vld [vmem:[%s1885 + $0x10] sm:$0xff]
        %v1889 = vld [vmem:[%s1885 + $0x18] sm:$0xff]
        %v1890 = vpack.c.bf16 %v1884, %v1884
        %1891 = vmatprep.subr.bf16.mxu0 %v668
        %1892 = vmatpush1.bf16.msra.mxu0 %v667
        %1893 = vmatprep.subr.bf16.mxu0 %v672
        %1894 = vmatpush1.bf16.msra.mxu0 %v671
        %1895 = vmatprep.subr.bf16.mxu0 %v676
        %1896 = vmatpush1.bf16.msra.mxu0 %v675
        %1897 = vmatprep.subr.bf16.mxu0 %v680
        %1898 = vmatpush1.bf16.msra.mxu0 %v679
        %1899 = vmatprep.subr.bf16.mxu0 %v684
        %1900 = vmatpush1.bf16.msra.mxu0 %v683
        %1901 = vmatprep.subr.bf16.mxu0 %v688
        %1902 = vmatpush1.bf16.msra.mxu0 %v687
        %1903 = vmatprep.subr.bf16.mxu0 %v692
        %1904 = vmatpush1.bf16.msra.mxu0 %v691
        %1905 = vmatprep.subr.bf16.mxu0 %v696
        %1906 = vmatpush1.bf16.msra.mxu0 %v695
        %1907 = vmatprep.subr.bf16.mxu0 0
        %1908 = vmatpush1.bf16.msra.mxu0 0
        %1909 = vmatprep.subr.bf16.mxu0 0
        %1910 = vmatpush1.bf16.msra.mxu0 0
        %1911 = vmatprep.subr.bf16.mxu0 0
        %1912 = vmatpush1.bf16.msra.mxu0 0
        %1913 = vmatprep.subr.bf16.mxu0 0
        %1914 = vmatpush1.bf16.msra.mxu0 0
        %1915 = vmatprep.subr.bf16.mxu0 0
        %1916 = vmatpush1.bf16.msra.mxu0 0
        %1917 = vmatprep.subr.bf16.mxu0 0
        %1918 = vmatpush1.bf16.msra.mxu0 0
        %1919 = vmatprep.subr.bf16.mxu0 0
        %1920 = vmatpush1.bf16.msra.mxu0 0
        %1921 = vmatprep.subr.bf16.mxu0 0
        %1922 = vmatpush1.bf16.msra.mxu0 0
        %1923 = vmatprep.mubr.bf16.mxu0 0
        %1924 = vmatmul.mubr.bf16.gmra.mrb[0].mxu0 %v1890
        %v1925 = vpop.f32.mrb[0].mxu0
        %v1926 = vadd.f32 0.0, %v1925
        %v1927 = vpop.f32.mrb[0].mxu0
        %v1928 = vadd.f32 0.0, %v1927
        %v1929 = vpop.f32.mrb[0].mxu0
        %v1930 = vpop.f32.mrb[0].mxu0
        %1931 = vdwg.mxu0
        %1932 = vmatprep.subr.bf16.mxu0 %v670
        %1933 = vmatpush1.bf16.msra.mxu0 %v669
        %1934 = vmatprep.subr.bf16.mxu0 %v674
        %1935 = vmatpush1.bf16.msra.mxu0 %v673
        %1936 = vmatprep.subr.bf16.mxu0 %v678
        %1937 = vmatpush1.bf16.msra.mxu0 %v677
        %1938 = vmatprep.subr.bf16.mxu0 %v682
        %1939 = vmatpush1.bf16.msra.mxu0 %v681
        %1940 = vmatprep.subr.bf16.mxu0 %v686
        %1941 = vmatpush1.bf16.msra.mxu0 %v685
        %1942 = vmatprep.subr.bf16.mxu0 %v690
        %1943 = vmatpush1.bf16.msra.mxu0 %v689
        %1944 = vmatprep.subr.bf16.mxu0 %v694
        %1945 = vmatpush1.bf16.msra.mxu0 %v693
        %1946 = vmatprep.subr.bf16.mxu0 %v698
        %1947 = vmatpush1.bf16.msra.mxu0 %v697
        %1948 = vmatprep.subr.bf16.mxu0 0
        %1949 = vmatpush1.bf16.msra.mxu0 0
        %1950 = vmatprep.subr.bf16.mxu0 0
        %1951 = vmatpush1.bf16.msra.mxu0 0
        %1952 = vmatprep.subr.bf16.mxu0 0
        %1953 = vmatpush1.bf16.msra.mxu0 0
        %1954 = vmatprep.subr.bf16.mxu0 0
        %1955 = vmatpush1.bf16.msra.mxu0 0
        %1956 = vmatprep.subr.bf16.mxu0 0
        %1957 = vmatpush1.bf16.msra.mxu0 0
        %1958 = vmatprep.subr.bf16.mxu0 0
        %1959 = vmatpush1.bf16.msra.mxu0 0
        %1960 = vmatprep.subr.bf16.mxu0 0
        %1961 = vmatpush1.bf16.msra.mxu0 0
        %1962 = vmatprep.subr.bf16.mxu0 0
        %1963 = vmatpush1.bf16.msra.mxu0 0
        %1964 = vmatprep.mubr.bf16.mxu0 0
        %1965 = vmatmul.mubr.bf16.gmra.mrb[0].mxu0 %v1890
        %v1966 = vpop.f32.mrb[0].mxu0
        %v1967 = vadd.f32 0.0, %v1966
        %v1968 = vpop.f32.mrb[0].mxu0
        %v1969 = vadd.f32 0.0, %v1968
        %v1970 = vpop.f32.mrb[0].mxu0
        %v1971 = vpop.f32.mrb[0].mxu0
        %1972 = vdwg.mxu0
        %v1973 = vadd.f32 %v1886, %v1926
        %v1974 = vadd.f32 %v1887, %v1928
        %v1975 = vadd.f32 %v1888, %v1967
        %v1976 = vadd.f32 %v1889, %v1969
        %v1977 = vxor.u32 %v1973, 2147483648
        %v1978 = vmul.f32 %v1977, 1.442695
        %v1979 = vpow.pop %v1978
        %v1980 = vadd.f32 %v1979, 1.0
        %v1981 = vrcp.pop %v1980
        %v1982 = vmul.f32 1.0, %v1981
        %v1983 = vxor.u32 %v1974, 2147483648
        %v1984 = vmul.f32 %v1983, 1.442695
        %v1985 = vpow.pop %v1984
        %v1986 = vadd.f32 %v1985, 1.0
        %v1987 = vrcp.pop %v1986
        %v1988 = vmul.f32 1.0, %v1987
        %v1989 = vtanh.pop %v1975
        %v1990 = vxor.u32 %v1976, 2147483648
        %v1991 = vmul.f32 %v1990, 1.442695
        %v1992 = vpow.pop %v1991
        %v1993 = vadd.f32 %v1992, 1.0
        %v1994 = vrcp.pop %v1993
        %v1995 = vmul.f32 1.0, %v1994
        %v1996 = vmul.f32 %v1988, %v1882
        %v1997 = vmul.f32 %v1982, %v1989
        %v1998 = vadd.f32 %v1996, %v1997
        %v1999 = vtanh.pop %v1998
        %v2000 = vmul.f32 %v1995, %v1999
        %s2001 = scalar_lea.vmem %s459, 352 [#allocation2]
        %v2002 = vld [vmem:[%s2001] sm:$0xff]
        %v2003 = vld [vmem:[%s2001 + $0x8] sm:$0xff]
        %v2004 = vld [vmem:[%s2001 + $0x10] sm:$0xff]
        %v2005 = vld [vmem:[%s2001 + $0x18] sm:$0xff]
        %v2006 = vpack.c.bf16 %v2000, %v2000
        %2007 = vmatprep.subr.bf16.mxu0 %v668
        %2008 = vmatpush1.bf16.msra.mxu0 %v667
        %2009 = vmatprep.subr.bf16.mxu0 %v672
        %2010 = vmatpush1.bf16.msra.mxu0 %v671
        %2011 = vmatprep.subr.bf16.mxu0 %v676
        %2012 = vmatpush1.bf16.msra.mxu0 %v675
        %2013 = vmatprep.subr.bf16.mxu0 %v680
        %2014 = vmatpush1.bf16.msra.mxu0 %v679
        %2015 = vmatprep.subr.bf16.mxu0 %v684
        %2016 = vmatpush1.bf16.msra.mxu0 %v683
        %2017 = vmatprep.subr.bf16.mxu0 %v688
        %2018 = vmatpush1.bf16.msra.mxu0 %v687
        %2019 = vmatprep.subr.bf16.mxu0 %v692
        %2020 = vmatpush1.bf16.msra.mxu0 %v691
        %2021 = vmatprep.subr.bf16.mxu0 %v696
        %2022 = vmatpush1.bf16.msra.mxu0 %v695
        %2023 = vmatprep.subr.bf16.mxu0 0
        %2024 = vmatpush1.bf16.msra.mxu0 0
        %2025 = vmatprep.subr.bf16.mxu0 0
        %2026 = vmatpush1.bf16.msra.mxu0 0
        %2027 = vmatprep.subr.bf16.mxu0 0
        %2028 = vmatpush1.bf16.msra.mxu0 0
        %2029 = vmatprep.subr.bf16.mxu0 0
        %2030 = vmatpush1.bf16.msra.mxu0 0
        %2031 = vmatprep.subr.bf16.mxu0 0
        %2032 = vmatpush1.bf16.msra.mxu0 0
        %2033 = vmatprep.subr.bf16.mxu0 0
        %2034 = vmatpush1.bf16.msra.mxu0 0
        %2035 = vmatprep.subr.bf16.mxu0 0
        %2036 = vmatpush1.bf16.msra.mxu0 0
        %2037 = vmatprep.subr.bf16.mxu0 0
        %2038 = vmatpush1.bf16.msra.mxu0 0
        %2039 = vmatprep.mubr.bf16.mxu0 0
        %2040 = vmatmul.mubr.bf16.gmra.mrb[0].mxu0 %v2006
        %v2041 = vpop.f32.mrb[0].mxu0
        %v2042 = vadd.f32 0.0, %v2041
        %v2043 = vpop.f32.mrb[0].mxu0
        %v2044 = vadd.f32 0.0, %v2043
        %v2045 = vpop.f32.mrb[0].mxu0
        %v2046 = vpop.f32.mrb[0].mxu0
        %2047 = vdwg.mxu0
        %2048 = vmatprep.subr.bf16.mxu0 %v670
        %2049 = vmatpush1.bf16.msra.mxu0 %v669
        %2050 = vmatprep.subr.bf16.mxu0 %v674
        %2051 = vmatpush1.bf16.msra.mxu0 %v673
        %2052 = vmatprep.subr.bf16.mxu0 %v678
        %2053 = vmatpush1.bf16.msra.mxu0 %v677
        %2054 = vmatprep.subr.bf16.mxu0 %v682
        %2055 = vmatpush1.bf16.msra.mxu0 %v681
        %2056 = vmatprep.subr.bf16.mxu0 %v686
        %2057 = vmatpush1.bf16.msra.mxu0 %v685
        %2058 = vmatprep.subr.bf16.mxu0 %v690
        %2059 = vmatpush1.bf16.msra.mxu0 %v689
        %2060 = vmatprep.subr.bf16.mxu0 %v694
        %2061 = vmatpush1.bf16.msra.mxu0 %v693
        %2062 = vmatprep.subr.bf16.mxu0 %v698
        %2063 = vmatpush1.bf16.msra.mxu0 %v697
        %2064 = vmatprep.subr.bf16.mxu0 0
        %2065 = vmatpush1.bf16.msra.mxu0 0
        %2066 = vmatprep.subr.bf16.mxu0 0
        %2067 = vmatpush1.bf16.msra.mxu0 0
        %2068 = vmatprep.subr.bf16.mxu0 0
        %2069 = vmatpush1.bf16.msra.mxu0 0
        %2070 = vmatprep.subr.bf16.mxu0 0
        %2071 = vmatpush1.bf16.msra.mxu0 0
        %2072 = vmatprep.subr.bf16.mxu0 0
        %2073 = vmatpush1.bf16.msra.mxu0 0
        %2074 = vmatprep.subr.bf16.mxu0 0
        %2075 = vmatpush1.bf16.msra.mxu0 0
        %2076 = vmatprep.subr.bf16.mxu0 0
        %2077 = vmatpush1.bf16.msra.mxu0 0
        %2078 = vmatprep.subr.bf16.mxu0 0
        %2079 = vmatpush1.bf16.msra.mxu0 0
        %2080 = vmatprep.mubr.bf16.mxu0 0
        %2081 = vmatmul.mubr.bf16.gmra.mrb[0].mxu0 %v2006
        %v2082 = vpop.f32.mrb[0].mxu0
        %v2083 = vadd.f32 0.0, %v2082
        %v2084 = vpop.f32.mrb[0].mxu0
        %v2085 = vadd.f32 0.0, %v2084
        %v2086 = vpop.f32.mrb[0].mxu0
        %v2087 = vpop.f32.mrb[0].mxu0
        %2088 = vdwg.mxu0
        %v2089 = vadd.f32 %v2002, %v2042
        %v2090 = vadd.f32 %v2003, %v2044
        %v2091 = vadd.f32 %v2004, %v2083
        %v2092 = vadd.f32 %v2005, %v2085
        %v2093 = vxor.u32 %v2089, 2147483648
        %v2094 = vmul.f32 %v2093, 1.442695
        %v2095 = vpow.pop %v2094
        %v2096 = vadd.f32 %v2095, 1.0
        %v2097 = vrcp.pop %v2096
        %v2098 = vmul.f32 1.0, %v2097
        %v2099 = vxor.u32 %v2090, 2147483648
        %v2100 = vmul.f32 %v2099, 1.442695
        %v2101 = vpow.pop %v2100
        %v2102 = vadd.f32 %v2101, 1.0
        %v2103 = vrcp.pop %v2102
        %v2104 = vmul.f32 1.0, %v2103
        %v2105 = vtanh.pop %v2091
        %v2106 = vxor.u32 %v2092, 2147483648
        %v2107 = vmul.f32 %v2106, 1.442695
        %v2108 = vpow.pop %v2107
        %v2109 = vadd.f32 %v2108, 1.0
        %v2110 = vrcp.pop %v2109
        %v2111 = vmul.f32 1.0, %v2110
        %v2112 = vmul.f32 %v2104, %v1998
        %v2113 = vmul.f32 %v2098, %v2105
        %v2114 = vadd.f32 %v2112, %v2113
        %v2115 = vtanh.pop %v2114
        %v2116 = vmul.f32 %v2111, %v2115
        %s2117 = scalar_lea.vmem %s459, 384 [#allocation2]
        %v2118 = vld [vmem:[%s2117] sm:$0xff]
        %v2119 = vld [vmem:[%s2117 + $0x8] sm:$0xff]
        %v2120 = vld [vmem:[%s2117 + $0x10] sm:$0xff]
        %v2121 = vld [vmem:[%s2117 + $0x18] sm:$0xff]
        %v2122 = vpack.c.bf16 %v2116, %v2116
        %2123 = vmatprep.subr.bf16.mxu0 %v668
        %2124 = vmatpush1.bf16.msra.mxu0 %v667
        %2125 = vmatprep.subr.bf16.mxu0 %v672
        %2126 = vmatpush1.bf16.msra.mxu0 %v671
        %2127 = vmatprep.subr.bf16.mxu0 %v676
        %2128 = vmatpush1.bf16.msra.mxu0 %v675
        %2129 = vmatprep.subr.bf16.mxu0 %v680
        %2130 = vmatpush1.bf16.msra.mxu0 %v679
        %2131 = vmatprep.subr.bf16.mxu0 %v684
        %2132 = vmatpush1.bf16.msra.mxu0 %v683
        %2133 = vmatprep.subr.bf16.mxu0 %v688
        %2134 = vmatpush1.bf16.msra.mxu0 %v687
        %2135 = vmatprep.subr.bf16.mxu0 %v692
        %2136 = vmatpush1.bf16.msra.mxu0 %v691
        %2137 = vmatprep.subr.bf16.mxu0 %v696
        %2138 = vmatpush1.bf16.msra.mxu0 %v695
        %2139 = vmatprep.subr.bf16.mxu0 0
        %2140 = vmatpush1.bf16.msra.mxu0 0
        %2141 = vmatprep.subr.bf16.mxu0 0
        %2142 = vmatpush1.bf16.msra.mxu0 0
        %2143 = vmatprep.subr.bf16.mxu0 0
        %2144 = vmatpush1.bf16.msra.mxu0 0
        %2145 = vmatprep.subr.bf16.mxu0 0
        %2146 = vmatpush1.bf16.msra.mxu0 0
        %2147 = vmatprep.subr.bf16.mxu0 0
        %2148 = vmatpush1.bf16.msra.mxu0 0
        %2149 = vmatprep.subr.bf16.mxu0 0
        %2150 = vmatpush1.bf16.msra.mxu0 0
        %2151 = vmatprep.subr.bf16.mxu0 0
        %2152 = vmatpush1.bf16.msra.mxu0 0
        %2153 = vmatprep.subr.bf16.mxu0 0
        %2154 = vmatpush1.bf16.msra.mxu0 0
        %2155 = vmatprep.mubr.bf16.mxu0 0
        %2156 = vmatmul.mubr.bf16.gmra.mrb[0].mxu0 %v2122
        %v2157 = vpop.f32.mrb[0].mxu0
        %v2158 = vadd.f32 0.0, %v2157
        %v2159 = vpop.f32.mrb[0].mxu0
        %v2160 = vadd.f32 0.0, %v2159
        %v2161 = vpop.f32.mrb[0].mxu0
        %v2162 = vpop.f32.mrb[0].mxu0
        %2163 = vdwg.mxu0
        %2164 = vmatprep.subr.bf16.mxu0 %v670
        %2165 = vmatpush1.bf16.msra.mxu0 %v669
        %2166 = vmatprep.subr.bf16.mxu0 %v674
        %2167 = vmatpush1.bf16.msra.mxu0 %v673
        %2168 = vmatprep.subr.bf16.mxu0 %v678
        %2169 = vmatpush1.bf16.msra.mxu0 %v677
        %2170 = vmatprep.subr.bf16.mxu0 %v682
        %2171 = vmatpush1.bf16.msra.mxu0 %v681
        %2172 = vmatprep.subr.bf16.mxu0 %v686
        %2173 = vmatpush1.bf16.msra.mxu0 %v685
        %2174 = vmatprep.subr.bf16.mxu0 %v690
        %2175 = vmatpush1.bf16.msra.mxu0 %v689
        %2176 = vmatprep.subr.bf16.mxu0 %v694
        %2177 = vmatpush1.bf16.msra.mxu0 %v693
        %2178 = vmatprep.subr.bf16.mxu0 %v698
        %2179 = vmatpush1.bf16.msra.mxu0 %v697
        %2180 = vmatprep.subr.bf16.mxu0 0
        %2181 = vmatpush1.bf16.msra.mxu0 0
        %2182 = vmatprep.subr.bf16.mxu0 0
        %2183 = vmatpush1.bf16.msra.mxu0 0
        %2184 = vmatprep.subr.bf16.mxu0 0
        %2185 = vmatpush1.bf16.msra.mxu0 0
        %2186 = vmatprep.subr.bf16.mxu0 0
        %2187 = vmatpush1.bf16.msra.mxu0 0
        %2188 = vmatprep.subr.bf16.mxu0 0
        %2189 = vmatpush1.bf16.msra.mxu0 0
        %2190 = vmatprep.subr.bf16.mxu0 0
        %2191 = vmatpush1.bf16.msra.mxu0 0
        %2192 = vmatprep.subr.bf16.mxu0 0
        %2193 = vmatpush1.bf16.msra.mxu0 0
        %2194 = vmatprep.subr.bf16.mxu0 0
        %2195 = vmatpush1.bf16.msra.mxu0 0
        %2196 = vmatprep.mubr.bf16.mxu0 0
        %2197 = vmatmul.mubr.bf16.gmra.mrb[0].mxu0 %v2122
        %v2198 = vpop.f32.mrb[0].mxu0
        %v2199 = vadd.f32 0.0, %v2198
        %v2200 = vpop.f32.mrb[0].mxu0
        %v2201 = vadd.f32 0.0, %v2200
        %v2202 = vpop.f32.mrb[0].mxu0
        %v2203 = vpop.f32.mrb[0].mxu0
        %2204 = vdwg.mxu0
        %v2205 = vadd.f32 %v2118, %v2158
        %v2206 = vadd.f32 %v2119, %v2160
        %v2207 = vadd.f32 %v2120, %v2199
        %v2208 = vadd.f32 %v2121, %v2201
        %v2209 = vxor.u32 %v2205, 2147483648
        %v2210 = vmul.f32 %v2209, 1.442695
        %v2211 = vpow.pop %v2210
        %v2212 = vadd.f32 %v2211, 1.0
        %v2213 = vrcp.pop %v2212
        %v2214 = vmul.f32 1.0, %v2213
        %v2215 = vxor.u32 %v2206, 2147483648
        %v2216 = vmul.f32 %v2215, 1.442695
        %v2217 = vpow.pop %v2216
        %v2218 = vadd.f32 %v2217, 1.0
        %v2219 = vrcp.pop %v2218
        %v2220 = vmul.f32 1.0, %v2219
        %v2221 = vtanh.pop %v2207
        %v2222 = vxor.u32 %v2208, 2147483648
        %v2223 = vmul.f32 %v2222, 1.442695
        %v2224 = vpow.pop %v2223
        %v2225 = vadd.f32 %v2224, 1.0
        %v2226 = vrcp.pop %v2225
        %v2227 = vmul.f32 1.0, %v2226
        %v2228 = vmul.f32 %v2220, %v2114
        %v2229 = vmul.f32 %v2214, %v2221
        %v2230 = vadd.f32 %v2228, %v2229
        %v2231 = vtanh.pop %v2230
        %v2232 = vmul.f32 %v2227, %v2231
        %s2233 = scalar_lea.vmem %s459, 416 [#allocation2]
        %v2234 = vld [vmem:[%s2233] sm:$0xff]
        %v2235 = vld [vmem:[%s2233 + $0x8] sm:$0xff]
        %v2236 = vld [vmem:[%s2233 + $0x10] sm:$0xff]
        %v2237 = vld [vmem:[%s2233 + $0x18] sm:$0xff]
        %v2238 = vpack.c.bf16 %v2232, %v2232
        %2239 = vmatprep.subr.bf16.mxu0 %v668
        %2240 = vmatpush1.bf16.msra.mxu0 %v667
        %2241 = vmatprep.subr.bf16.mxu0 %v672
        %2242 = vmatpush1.bf16.msra.mxu0 %v671
        %2243 = vmatprep.subr.bf16.mxu0 %v676
        %2244 = vmatpush1.bf16.msra.mxu0 %v675
        %2245 = vmatprep.subr.bf16.mxu0 %v680
        %2246 = vmatpush1.bf16.msra.mxu0 %v679
        %2247 = vmatprep.subr.bf16.mxu0 %v684
        %2248 = vmatpush1.bf16.msra.mxu0 %v683
        %2249 = vmatprep.subr.bf16.mxu0 %v688
        %2250 = vmatpush1.bf16.msra.mxu0 %v687
        %2251 = vmatprep.subr.bf16.mxu0 %v692
        %2252 = vmatpush1.bf16.msra.mxu0 %v691
        %2253 = vmatprep.subr.bf16.mxu0 %v696
        %2254 = vmatpush1.bf16.msra.mxu0 %v695
        %2255 = vmatprep.subr.bf16.mxu0 0
        %2256 = vmatpush1.bf16.msra.mxu0 0
        %2257 = vmatprep.subr.bf16.mxu0 0
        %2258 = vmatpush1.bf16.msra.mxu0 0
        %2259 = vmatprep.subr.bf16.mxu0 0
        %2260 = vmatpush1.bf16.msra.mxu0 0
        %2261 = vmatprep.subr.bf16.mxu0 0
        %2262 = vmatpush1.bf16.msra.mxu0 0
        %2263 = vmatprep.subr.bf16.mxu0 0
        %2264 = vmatpush1.bf16.msra.mxu0 0
        %2265 = vmatprep.subr.bf16.mxu0 0
        %2266 = vmatpush1.bf16.msra.mxu0 0
        %2267 = vmatprep.subr.bf16.mxu0 0
        %2268 = vmatpush1.bf16.msra.mxu0 0
        %2269 = vmatprep.subr.bf16.mxu0 0
        %2270 = vmatpush1.bf16.msra.mxu0 0
        %2271 = vmatprep.mubr.bf16.mxu0 0
        %2272 = vmatmul.mubr.bf16.gmra.mrb[0].mxu0 %v2238
        %v2273 = vpop.f32.mrb[0].mxu0
        %v2274 = vadd.f32 0.0, %v2273
        %v2275 = vpop.f32.mrb[0].mxu0
        %v2276 = vadd.f32 0.0, %v2275
        %v2277 = vpop.f32.mrb[0].mxu0
        %v2278 = vpop.f32.mrb[0].mxu0
        %2279 = vdwg.mxu0
        %2280 = vmatprep.subr.bf16.mxu0 %v670
        %2281 = vmatpush1.bf16.msra.mxu0 %v669
        %2282 = vmatprep.subr.bf16.mxu0 %v674
        %2283 = vmatpush1.bf16.msra.mxu0 %v673
        %2284 = vmatprep.subr.bf16.mxu0 %v678
        %2285 = vmatpush1.bf16.msra.mxu0 %v677
        %2286 = vmatprep.subr.bf16.mxu0 %v682
        %2287 = vmatpush1.bf16.msra.mxu0 %v681
        %2288 = vmatprep.subr.bf16.mxu0 %v686
        %2289 = vmatpush1.bf16.msra.mxu0 %v685
        %2290 = vmatprep.subr.bf16.mxu0 %v690
        %2291 = vmatpush1.bf16.msra.mxu0 %v689
        %2292 = vmatprep.subr.bf16.mxu0 %v694
        %2293 = vmatpush1.bf16.msra.mxu0 %v693
        %2294 = vmatprep.subr.bf16.mxu0 %v698
        %2295 = vmatpush1.bf16.msra.mxu0 %v697
        %2296 = vmatprep.subr.bf16.mxu0 0
        %2297 = vmatpush1.bf16.msra.mxu0 0
        %2298 = vmatprep.subr.bf16.mxu0 0
        %2299 = vmatpush1.bf16.msra.mxu0 0
        %2300 = vmatprep.subr.bf16.mxu0 0
        %2301 = vmatpush1.bf16.msra.mxu0 0
        %2302 = vmatprep.subr.bf16.mxu0 0
        %2303 = vmatpush1.bf16.msra.mxu0 0
        %2304 = vmatprep.subr.bf16.mxu0 0
        %2305 = vmatpush1.bf16.msra.mxu0 0
        %2306 = vmatprep.subr.bf16.mxu0 0
        %2307 = vmatpush1.bf16.msra.mxu0 0
        %2308 = vmatprep.subr.bf16.mxu0 0
        %2309 = vmatpush1.bf16.msra.mxu0 0
        %2310 = vmatprep.subr.bf16.mxu0 0
        %2311 = vmatpush1.bf16.msra.mxu0 0
        %2312 = vmatprep.mubr.bf16.mxu0 0
        %2313 = vmatmul.mubr.bf16.gmra.mrb[0].mxu0 %v2238
        %v2314 = vpop.f32.mrb[0].mxu0
        %v2315 = vadd.f32 0.0, %v2314
        %v2316 = vpop.f32.mrb[0].mxu0
        %v2317 = vadd.f32 0.0, %v2316
        %v2318 = vpop.f32.mrb[0].mxu0
        %v2319 = vpop.f32.mrb[0].mxu0
        %2320 = vdwg.mxu0
        %v2321 = vadd.f32 %v2234, %v2274
        %v2322 = vadd.f32 %v2235, %v2276
        %v2323 = vadd.f32 %v2236, %v2315
        %v2324 = vadd.f32 %v2237, %v2317
        %v2325 = vxor.u32 %v2321, 2147483648
        %v2326 = vmul.f32 %v2325, 1.442695
        %v2327 = vpow.pop %v2326
        %v2328 = vadd.f32 %v2327, 1.0
        %v2329 = vrcp.pop %v2328
        %v2330 = vmul.f32 1.0, %v2329
        %v2331 = vxor.u32 %v2322, 2147483648
        %v2332 = vmul.f32 %v2331, 1.442695
        %v2333 = vpow.pop %v2332
        %v2334 = vadd.f32 %v2333, 1.0
        %v2335 = vrcp.pop %v2334
        %v2336 = vmul.f32 1.0, %v2335
        %v2337 = vtanh.pop %v2323
        %v2338 = vxor.u32 %v2324, 2147483648
        %v2339 = vmul.f32 %v2338, 1.442695
        %v2340 = vpow.pop %v2339
        %v2341 = vadd.f32 %v2340, 1.0
        %v2342 = vrcp.pop %v2341
        %v2343 = vmul.f32 1.0, %v2342
        %v2344 = vmul.f32 %v2336, %v2230
        %v2345 = vmul.f32 %v2330, %v2337
        %v2346 = vadd.f32 %v2344, %v2345
        %v2347 = vtanh.pop %v2346
        %v2348 = vmul.f32 %v2343, %v2347
        %s2349 = scalar_lea.vmem %s459, 448 [#allocation2]
        %v2350 = vld [vmem:[%s2349] sm:$0xff]
        %v2351 = vld [vmem:[%s2349 + $0x8] sm:$0xff]
        %v2352 = vld [vmem:[%s2349 + $0x10] sm:$0xff]
        %v2353 = vld [vmem:[%s2349 + $0x18] sm:$0xff]
        %v2354 = vpack.c.bf16 %v2348, %v2348
        %2355 = vmatprep.subr.bf16.mxu0 %v668
        %2356 = vmatpush1.bf16.msra.mxu0 %v667
        %2357 = vmatprep.subr.bf16.mxu0 %v672
        %2358 = vmatpush1.bf16.msra.mxu0 %v671
        %2359 = vmatprep.subr.bf16.mxu0 %v676
        %2360 = vmatpush1.bf16.msra.mxu0 %v675
        %2361 = vmatprep.subr.bf16.mxu0 %v680
        %2362 = vmatpush1.bf16.msra.mxu0 %v679
        %2363 = vmatprep.subr.bf16.mxu0 %v684
        %2364 = vmatpush1.bf16.msra.mxu0 %v683
        %2365 = vmatprep.subr.bf16.mxu0 %v688
        %2366 = vmatpush1.bf16.msra.mxu0 %v687
        %2367 = vmatprep.subr.bf16.mxu0 %v692
        %2368 = vmatpush1.bf16.msra.mxu0 %v691
        %2369 = vmatprep.subr.bf16.mxu0 %v696
        %2370 = vmatpush1.bf16.msra.mxu0 %v695
        %2371 = vmatprep.subr.bf16.mxu0 0
        %2372 = vmatpush1.bf16.msra.mxu0 0
        %2373 = vmatprep.subr.bf16.mxu0 0
        %2374 = vmatpush1.bf16.msra.mxu0 0
        %2375 = vmatprep.subr.bf16.mxu0 0
        %2376 = vmatpush1.bf16.msra.mxu0 0
        %2377 = vmatprep.subr.bf16.mxu0 0
        %2378 = vmatpush1.bf16.msra.mxu0 0
        %2379 = vmatprep.subr.bf16.mxu0 0
        %2380 = vmatpush1.bf16.msra.mxu0 0
        %2381 = vmatprep.subr.bf16.mxu0 0
        %2382 = vmatpush1.bf16.msra.mxu0 0
        %2383 = vmatprep.subr.bf16.mxu0 0
        %2384 = vmatpush1.bf16.msra.mxu0 0
        %2385 = vmatprep.subr.bf16.mxu0 0
        %2386 = vmatpush1.bf16.msra.mxu0 0
        %2387 = vmatprep.mubr.bf16.mxu0 0
        %2388 = vmatmul.mubr.bf16.gmra.mrb[0].mxu0 %v2354
        %v2389 = vpop.f32.mrb[0].mxu0
        %v2390 = vadd.f32 0.0, %v2389
        %v2391 = vpop.f32.mrb[0].mxu0
        %v2392 = vadd.f32 0.0, %v2391
        %v2393 = vpop.f32.mrb[0].mxu0
        %v2394 = vpop.f32.mrb[0].mxu0
        %2395 = vdwg.mxu0
        %2396 = vmatprep.subr.bf16.mxu0 %v670
        %2397 = vmatpush1.bf16.msra.mxu0 %v669
        %2398 = vmatprep.subr.bf16.mxu0 %v674
        %2399 = vmatpush1.bf16.msra.mxu0 %v673
        %2400 = vmatprep.subr.bf16.mxu0 %v678
        %2401 = vmatpush1.bf16.msra.mxu0 %v677
        %2402 = vmatprep.subr.bf16.mxu0 %v682
        %2403 = vmatpush1.bf16.msra.mxu0 %v681
        %2404 = vmatprep.subr.bf16.mxu0 %v686
        %2405 = vmatpush1.bf16.msra.mxu0 %v685
        %2406 = vmatprep.subr.bf16.mxu0 %v690
        %2407 = vmatpush1.bf16.msra.mxu0 %v689
        %2408 = vmatprep.subr.bf16.mxu0 %v694
        %2409 = vmatpush1.bf16.msra.mxu0 %v693
        %2410 = vmatprep.subr.bf16.mxu0 %v698
        %2411 = vmatpush1.bf16.msra.mxu0 %v697
        %2412 = vmatprep.subr.bf16.mxu0 0
        %2413 = vmatpush1.bf16.msra.mxu0 0
        %2414 = vmatprep.subr.bf16.mxu0 0
        %2415 = vmatpush1.bf16.msra.mxu0 0
        %2416 = vmatprep.subr.bf16.mxu0 0
        %2417 = vmatpush1.bf16.msra.mxu0 0
        %2418 = vmatprep.subr.bf16.mxu0 0
        %2419 = vmatpush1.bf16.msra.mxu0 0
        %2420 = vmatprep.subr.bf16.mxu0 0
        %2421 = vmatpush1.bf16.msra.mxu0 0
        %2422 = vmatprep.subr.bf16.mxu0 0
        %2423 = vmatpush1.bf16.msra.mxu0 0
        %2424 = vmatprep.subr.bf16.mxu0 0
        %2425 = vmatpush1.bf16.msra.mxu0 0
        %2426 = vmatprep.subr.bf16.mxu0 0
        %2427 = vmatpush1.bf16.msra.mxu0 0
        %2428 = vmatprep.mubr.bf16.mxu0 0
        %2429 = vmatmul.mubr.bf16.gmra.mrb[0].mxu0 %v2354
        %v2430 = vpop.f32.mrb[0].mxu0
        %v2431 = vadd.f32 0.0, %v2430
        %v2432 = vpop.f32.mrb[0].mxu0
        %v2433 = vadd.f32 0.0, %v2432
        %v2434 = vpop.f32.mrb[0].mxu0
        %v2435 = vpop.f32.mrb[0].mxu0
        %2436 = vdwg.mxu0
        %v2437 = vadd.f32 %v2350, %v2390
        %v2438 = vadd.f32 %v2351, %v2392
        %v2439 = vadd.f32 %v2352, %v2431
        %v2440 = vadd.f32 %v2353, %v2433
        %v2441 = vxor.u32 %v2437, 2147483648
        %v2442 = vmul.f32 %v2441, 1.442695
        %v2443 = vpow.pop %v2442
        %v2444 = vadd.f32 %v2443, 1.0
        %v2445 = vrcp.pop %v2444
        %v2446 = vmul.f32 1.0, %v2445
        %v2447 = vxor.u32 %v2438, 2147483648
        %v2448 = vmul.f32 %v2447, 1.442695
        %v2449 = vpow.pop %v2448
        %v2450 = vadd.f32 %v2449, 1.0
        %v2451 = vrcp.pop %v2450
        %v2452 = vmul.f32 1.0, %v2451
        %v2453 = vtanh.pop %v2439
        %v2454 = vxor.u32 %v2440, 2147483648
        %v2455 = vmul.f32 %v2454, 1.442695
        %v2456 = vpow.pop %v2455
        %v2457 = vadd.f32 %v2456, 1.0
        %v2458 = vrcp.pop %v2457
        %v2459 = vmul.f32 1.0, %v2458
        %v2460 = vmul.f32 %v2452, %v2346
        %v2461 = vmul.f32 %v2446, %v2453
        %v2462 = vadd.f32 %v2460, %v2461
        %v2463 = vtanh.pop %v2462
        %v2464 = vmul.f32 %v2459, %v2463
        %s2465 = scalar_lea.vmem %s459, 480 [#allocation2]
        %v2466 = vld [vmem:[%s2465] sm:$0xff]
        %v2467 = vld [vmem:[%s2465 + $0x8] sm:$0xff]
        %v2468 = vld [vmem:[%s2465 + $0x10] sm:$0xff]
        %v2469 = vld [vmem:[%s2465 + $0x18] sm:$0xff]
        %v2470 = vpack.c.bf16 %v2464, %v2464
        %2471 = vmatprep.subr.bf16.mxu0 %v668
        %2472 = vmatpush1.bf16.msra.mxu0 %v667
        %2473 = vmatprep.subr.bf16.mxu0 %v672
        %2474 = vmatpush1.bf16.msra.mxu0 %v671
        %2475 = vmatprep.subr.bf16.mxu0 %v676
        %2476 = vmatpush1.bf16.msra.mxu0 %v675
        %2477 = vmatprep.subr.bf16.mxu0 %v680
        %2478 = vmatpush1.bf16.msra.mxu0 %v679
        %2479 = vmatprep.subr.bf16.mxu0 %v684
        %2480 = vmatpush1.bf16.msra.mxu0 %v683
        %2481 = vmatprep.subr.bf16.mxu0 %v688
        %2482 = vmatpush1.bf16.msra.mxu0 %v687
        %2483 = vmatprep.subr.bf16.mxu0 %v692
        %2484 = vmatpush1.bf16.msra.mxu0 %v691
        %2485 = vmatprep.subr.bf16.mxu0 %v696
        %2486 = vmatpush1.bf16.msra.mxu0 %v695
        %2487 = vmatprep.subr.bf16.mxu0 0
        %2488 = vmatpush1.bf16.msra.mxu0 0
        %2489 = vmatprep.subr.bf16.mxu0 0
        %2490 = vmatpush1.bf16.msra.mxu0 0
        %2491 = vmatprep.subr.bf16.mxu0 0
        %2492 = vmatpush1.bf16.msra.mxu0 0
        %2493 = vmatprep.subr.bf16.mxu0 0
        %2494 = vmatpush1.bf16.msra.mxu0 0
        %2495 = vmatprep.subr.bf16.mxu0 0
        %2496 = vmatpush1.bf16.msra.mxu0 0
        %2497 = vmatprep.subr.bf16.mxu0 0
        %2498 = vmatpush1.bf16.msra.mxu0 0
        %2499 = vmatprep.subr.bf16.mxu0 0
        %2500 = vmatpush1.bf16.msra.mxu0 0
        %2501 = vmatprep.subr.bf16.mxu0 0
        %2502 = vmatpush1.bf16.msra.mxu0 0
        %2503 = vmatprep.mubr.bf16.mxu0 0
        %2504 = vmatmul.mubr.bf16.gmra.mrb[0].mxu0 %v2470
        %v2505 = vpop.f32.mrb[0].mxu0
        %v2506 = vadd.f32 0.0, %v2505
        %v2507 = vpop.f32.mrb[0].mxu0
        %v2508 = vadd.f32 0.0, %v2507
        %v2509 = vpop.f32.mrb[0].mxu0
        %v2510 = vpop.f32.mrb[0].mxu0
        %2511 = vdwg.mxu0
        %2512 = vmatprep.subr.bf16.mxu0 %v670
        %2513 = vmatpush1.bf16.msra.mxu0 %v669
        %2514 = vmatprep.subr.bf16.mxu0 %v674
        %2515 = vmatpush1.bf16.msra.mxu0 %v673
        %2516 = vmatprep.subr.bf16.mxu0 %v678
        %2517 = vmatpush1.bf16.msra.mxu0 %v677
        %2518 = vmatprep.subr.bf16.mxu0 %v682
        %2519 = vmatpush1.bf16.msra.mxu0 %v681
        %2520 = vmatprep.subr.bf16.mxu0 %v686
        %2521 = vmatpush1.bf16.msra.mxu0 %v685
        %2522 = vmatprep.subr.bf16.mxu0 %v690
        %2523 = vmatpush1.bf16.msra.mxu0 %v689
        %2524 = vmatprep.subr.bf16.mxu0 %v694
        %2525 = vmatpush1.bf16.msra.mxu0 %v693
        %2526 = vmatprep.subr.bf16.mxu0 %v698
        %2527 = vmatpush1.bf16.msra.mxu0 %v697
        %2528 = vmatprep.subr.bf16.mxu0 0
        %2529 = vmatpush1.bf16.msra.mxu0 0
        %2530 = vmatprep.subr.bf16.mxu0 0
        %2531 = vmatpush1.bf16.msra.mxu0 0
        %2532 = vmatprep.subr.bf16.mxu0 0
        %2533 = vmatpush1.bf16.msra.mxu0 0
        %2534 = vmatprep.subr.bf16.mxu0 0
        %2535 = vmatpush1.bf16.msra.mxu0 0
        %2536 = vmatprep.subr.bf16.mxu0 0
        %2537 = vmatpush1.bf16.msra.mxu0 0
        %2538 = vmatprep.subr.bf16.mxu0 0
        %2539 = vmatpush1.bf16.msra.mxu0 0
        %2540 = vmatprep.subr.bf16.mxu0 0
        %2541 = vmatpush1.bf16.msra.mxu0 0
        %2542 = vmatprep.subr.bf16.mxu0 0
        %2543 = vmatpush1.bf16.msra.mxu0 0
        %2544 = vmatprep.mubr.bf16.mxu0 0
        %2545 = vmatmul.mubr.bf16.gmra.mrb[0].mxu0 %v2470
        %v2546 = vpop.f32.mrb[0].mxu0
        %v2547 = vadd.f32 0.0, %v2546
        %v2548 = vpop.f32.mrb[0].mxu0
        %v2549 = vadd.f32 0.0, %v2548
        %v2550 = vpop.f32.mrb[0].mxu0
        %v2551 = vpop.f32.mrb[0].mxu0
        %2552 = vdwg.mxu0
        %v2553 = vadd.f32 %v2466, %v2506
        %v2554 = vadd.f32 %v2467, %v2508
        %v2555 = vadd.f32 %v2468, %v2547
        %v2556 = vadd.f32 %v2469, %v2549
        %v2557 = vxor.u32 %v2553, 2147483648
        %v2558 = vmul.f32 %v2557, 1.442695
        %v2559 = vpow.pop %v2558
        %v2560 = vadd.f32 %v2559, 1.0
        %v2561 = vrcp.pop %v2560
        %v2562 = vmul.f32 1.0, %v2561
        %v2563 = vxor.u32 %v2554, 2147483648
        %v2564 = vmul.f32 %v2563, 1.442695
        %v2565 = vpow.pop %v2564
        %v2566 = vadd.f32 %v2565, 1.0
        %v2567 = vrcp.pop %v2566
        %v2568 = vmul.f32 1.0, %v2567
        %v2569 = vtanh.pop %v2555
        %v2570 = vxor.u32 %v2556, 2147483648
        %v2571 = vmul.f32 %v2570, 1.442695
        %v2572 = vpow.pop %v2571
        %v2573 = vadd.f32 %v2572, 1.0
        %v2574 = vrcp.pop %v2573
        %v2575 = vmul.f32 1.0, %v2574
        %v2576 = vmul.f32 %v2568, %v2462
        %v2577 = vmul.f32 %v2562, %v2569
        %v2578 = vadd.f32 %v2576, %v2577
        %v2579 = vtanh.pop %v2578
        %v2580 = vmul.f32 %v2575, %v2579
        %2581 = vst [vmem:[%s518] sm:$0xff] %v2580
        %2582 = vst [vmem:[%s522] sm:$0xff] %v2578
        %p2583 = scmp.eq.s32.totalorder %s28, 3
        // Predicated region
        $region72: #{rnn_forward.1} parent=62 // pred_check
          %p2584 = pneg %p2583
        $region73: #{rnn_forward.1} parent=62 // pred_check_branch
          %2586 = sbr.rel (%p2584) target = $region75
        $region74: #{rnn_forward.1} parent=62 // pred_region
          %v2587 = vld [vmem:[%s4] sm:$0xff]
          %v2588 = vld [vmem:[%s4 + $0x8] sm:$0xff]
          %v2589 = vld [vmem:[%s4 + $0x10] sm:$0xff]
          %v2590 = vld [vmem:[%s4 + $0x18] sm:$0xff]
          %v2591 = vld [vmem:[%s4 + $0x20] sm:$0xff]
          %v2592 = vld [vmem:[%s4 + $0x28] sm:$0xff]
          %v2593 = vld [vmem:[%s4 + $0x30] sm:$0xff]
          %v2594 = vld [vmem:[%s4 + $0x38] sm:$0xff]
          %v2595 = vld [vmem:[%s4 + $0x40] sm:$0xff]
          %v2596 = vld [vmem:[%s4 + $0x48] sm:$0xff]
          %v2597 = vld [vmem:[%s4 + $0x50] sm:$0xff]
          %v2598 = vld [vmem:[%s4 + $0x58] sm:$0xff]
          %v2599 = vld [vmem:[%s4 + $0x60] sm:$0xff]
          %v2600 = vld [vmem:[%s4 + $0x68] sm:$0xff]
          %v2601 = vld [vmem:[%s4 + $0x70] sm:$0xff]
          %v2602 = vld [vmem:[%s4 + $0x78] sm:$0xff]
          %v2603 = vld [vmem:[%s5] sm:$0x1]
          %v2605 = vlaneseq
          %v2606 = vshrl.u32 %v2605, 7
          %v2607 = vsub.s32 0, %v2606
          %v2608 = vrot.slane %v2603, %v2607
          %2610 = vmatprep.subr.mxu0 0.0
          %2611 = vmatpush1.msra.mxu0 %v2587
          %2612 = vmatprep.subr.mxu0 0.0
          %2613 = vmatpush1.msra.mxu0 %v2588
          %2614 = vmatprep.subr.mxu0 0.0
          %2615 = vmatpush1.msra.mxu0 %v2589
          %2616 = vmatprep.subr.mxu0 0.0
          %2617 = vmatpush1.msra.mxu0 %v2590
          %2618 = vmatprep.subr.mxu0 0.0
          %2619 = vmatpush1.msra.mxu0 %v2591
          %2620 = vmatprep.subr.mxu0 0.0
          %2621 = vmatpush1.msra.mxu0 %v2592
          %2622 = vmatprep.subr.mxu0 0.0
          %2623 = vmatpush1.msra.mxu0 %v2593
          %2624 = vmatprep.subr.mxu0 0.0
          %2625 = vmatpush1.msra.mxu0 %v2594
          %2626 = vmatprep.subr.mxu0 0.0
          %2627 = vmatpush1.msra.mxu0 %v2595
          %2628 = vmatprep.subr.mxu0 0.0
          %2629 = vmatpush1.msra.mxu0 %v2596
          %2630 = vmatprep.subr.mxu0 0.0
          %2631 = vmatpush1.msra.mxu0 %v2597
          %2632 = vmatprep.subr.mxu0 0.0
          %2633 = vmatpush1.msra.mxu0 %v2598
          %2634 = vmatprep.subr.mxu0 0.0
          %2635 = vmatpush1.msra.mxu0 %v2599
          %2636 = vmatprep.subr.mxu0 0.0
          %2637 = vmatpush1.msra.mxu0 %v2600
          %2638 = vmatprep.subr.mxu0 0.0
          %2639 = vmatpush1.msra.mxu0 %v2601
          %2640 = vmatprep.subr.mxu0 0.0
          %2641 = vmatpush1.msra.mxu0 %v2602
          %2642 = vmatprep.subr.mxu0 0.0
          %2643 = vmatpush1.msra.mxu0 0.0
          %2644 = vmatprep.subr.mxu0 0.0
          %2645 = vmatpush1.msra.mxu0 0.0
          %2646 = vmatprep.subr.mxu0 0.0
          %2647 = vmatpush1.msra.mxu0 0.0
          %2648 = vmatprep.subr.mxu0 0.0
          %2649 = vmatpush1.msra.mxu0 0.0
          %2650 = vmatprep.subr.mxu0 0.0
          %2651 = vmatpush1.msra.mxu0 0.0
          %2652 = vmatprep.subr.mxu0 0.0
          %2653 = vmatpush1.msra.mxu0 0.0
          %2654 = vmatprep.subr.mxu0 0.0
          %2655 = vmatpush1.msra.mxu0 0.0
          %2656 = vmatprep.subr.mxu0 0.0
          %2657 = vmatpush1.msra.mxu0 0.0
          %2658 = vmatprep.subr.mxu0 0.0
          %2659 = vmatpush1.msra.mxu0 0.0
          %2660 = vmatprep.subr.mxu0 0.0
          %2661 = vmatpush1.msra.mxu0 0.0
          %2662 = vmatprep.subr.mxu0 0.0
          %2663 = vmatpush1.msra.mxu0 0.0
          %2664 = vmatprep.subr.mxu0 0.0
          %2665 = vmatpush1.msra.mxu0 0.0
          %2666 = vmatprep.subr.mxu0 0.0
          %2667 = vmatpush1.msra.mxu0 0.0
          %2668 = vmatprep.subr.mxu0 0.0
          %2669 = vmatpush1.msra.mxu0 0.0
          %2670 = vmatprep.subr.mxu0 0.0
          %2671 = vmatpush1.msra.mxu0 0.0
          %2672 = vmatprep.subr.mxu0 0.0
          %2673 = vmatpush1.msra.mxu0 0.0
          %2674 = vmatprep.mubr.f32.mxu0 0.0
          %2675 = vmatmul.mubr.f32.gmra.mrb[0].mxu0 %v2580
          %v2676 = vpop.f32.mrb[0].mxu0
          %v2677 = vadd.f32 %v2608, %v2676
          %v2678 = vpop.f32.mrb[0].mxu0
          %2679 = vdwg.mxu0
          %2680 = vst [vmem:[%s493] sm:$0xff] %v2677
        $region75: #{rnn_forward.1} parent=62 // pred_fallthru
          _
        %s2681 = sand.u32 %s186, 1
        %s2682 = scalar_lea.sflag [#allocation4], %s2681
        %s2683 = sand.u32 %s186, 1
        %s2684 = smul.addr %s2683, 8
        %s2685 = scalar_lea.vmem [#allocation3], %s2684
        %p2686 = scmp.lt.s32.totalorder %s27, 1
        %s2687 = scalar_select %p2686, %s27, 1
        %s2688 = smul.addr %s2687, 8
        %s2689 = scalar_lea.vmem %s7, %s2688
        %p2690 = scmp.lt.s32.totalorder %s27, 1
        %s2691 = scalar_select %p2690, %s27, 1
        %s2692 = smul.addr %s2691, 8
        %s2693 = scalar_lea.vmem %s8, %s2692
        // Predicated region
        $region76: #{rnn_forward.1} parent=62 // pred_check
          %p2694 = pneg %p196
        $region77: #{rnn_forward.1} parent=62 // pred_check_branch
          %2696 = sbr.rel (%p2694) target = $region79
        $region78: #{rnn_forward.1} parent=62 // pred_region
          %s2698 = ssub.s32 128, 128
          %2699 = vsyncadd %s2682, %s2698
          %s2700 = smul.addr %s27, 128
          %s2701 = scalar_lea.hbm %s6, %s2700
          %s2703 = sshll.u32 %s2685, 4
          %s2704 = int_to_ptr.vmem [resolvable:$true] %s2703
          %2706 = dma.vmem_to_hbm [thread:$0]  %s2704, 128, %s2701, %s2682
        $region79: #{rnn_forward.1} parent=62 // pred_fallthru
          _
        // Predicated region
        $region80: #{rnn_forward.1} parent=62 // pred_check
          %p2707 = pneg %p222
        $region81: #{rnn_forward.1} parent=62 // pred_check_branch
          %2709 = sbr.rel (%p2707) target = $region83
        $region82: #{rnn_forward.1} parent=62 // pred_region
          _
        $region83: #{rnn_forward.1} parent=62 // pred_fallthru
          _
        // Predicated region
        $region84: #{rnn_forward.1} parent=62 // pred_check
          %p2710 = pneg %p248
        $region85: #{rnn_forward.1} parent=62 // pred_check_branch
          %2712 = sbr.rel (%p2710) target = $region87
        $region86: #{rnn_forward.1} parent=62 // pred_region
          _
        $region87: #{rnn_forward.1} parent=62 // pred_fallthru
          _
      $region63: #{rnn_forward.1} parent=5 // pred_fallthru
        _
      %p2713 = scmp.le.s32.totalorder 2, %s18
      // Predicated region
      $region88: #{rnn_forward.1} parent=5 // pred_check
        %p2714 = pneg %p2713
      $region89: #{rnn_forward.1} parent=5 // pred_check_branch
        %2716 = sbr.rel (%p2714) target = $region91
      $region90: #{rnn_forward.1} parent=5 // pred_region
        %s2717 = ssub.s32 %s18, 2
        // Predicated region
        $region92: #{rnn_forward.1} parent=90 // pred_check
          %p2718 = pneg %p202
        $region93: #{rnn_forward.1} parent=90 // pred_check_branch
          %2720 = sbr.rel (%p2718) target = $region95
        $region94: #{rnn_forward.1} parent=90 // pred_region
          %s2721 = sand.u32 %s187, 1
          %s2722 = scalar_lea.sflag [#allocation4], %s2721
          %s2723 = sand.u32 %s187, 1
          %s2724 = smul.addr %s2723, 8
          %s2725 = scalar_lea.vmem [#allocation3], %s2724
          %2726 = dma.done %s2722, 128
        $region95: #{rnn_forward.1} parent=90 // pred_fallthru
          _
        // Predicated region
        $region96: #{rnn_forward.1} parent=90 // pred_check
          %p2727 = pneg %p228
        $region97: #{rnn_forward.1} parent=90 // pred_check_branch
          %2729 = sbr.rel (%p2727) target = $region99
        $region98: #{rnn_forward.1} parent=90 // pred_region
          %p2730 = scmp.lt.s32.totalorder %s29, 1
          %s2731 = scalar_select %p2730, %s29, 1
          %s2732 = smul.addr %s2731, 8
          %s2733 = scalar_lea.vmem %s7, %s2732
        $region99: #{rnn_forward.1} parent=90 // pred_fallthru
          _
        // Predicated region
        $region100: #{rnn_forward.1} parent=90 // pred_check
          %p2734 = pneg %p254
        $region101: #{rnn_forward.1} parent=90 // pred_check_branch
          %2736 = sbr.rel (%p2734) target = $region103
        $region102: #{rnn_forward.1} parent=90 // pred_region
          %p2737 = scmp.lt.s32.totalorder %s29, 1
          %s2738 = scalar_select %p2737, %s29, 1
          %s2739 = smul.addr %s2738, 8
          %s2740 = scalar_lea.vmem %s8, %s2739
        $region103: #{rnn_forward.1} parent=90 // pred_fallthru
          _
      $region91: #{rnn_forward.1} parent=5 // pred_fallthru
        _
    $region6: #{rnn_forward.1} parent=1 // loop_footer
      %s22 = sadd.s32 1, %s18
    $region7: #{rnn_forward.1} parent=1 // loop_footer_branch
      %17 = sbr.rel target = $region3
    $region8: #{rnn_forward.1} parent=1 // loop_exit
      _
    %2741 = vsyncpa [#allocation4], 1
    %s2742 = scalar_lea.sflag [#allocation4], 1
    %2743 = vsyncpa %s2742, 1

</llo_original>
